<compile_context>
chip_gen: v7x
topology: tpu7x:2x2x1
jax: 0.10.0
libtpu: 0.0.40
codegen_flags: <defaults>
</compile_context>

<pallas_src>
import jax
import jax.numpy as jnp
from jax import lax
from jax.experimental import pallas as pl
from jax.experimental.pallas import tpu as pltpu


def gru_fc_kernel(x_ref, w_ih_ref, w_hh_ref, b_ref, fc_ref, out_ref):
    """Full GRU recurrence + final linear layer, entirely in VMEM.

    x_ref    : (S, B, I)   f32 input sequence (unpadded batch)
    w_ih_ref : (3, I, H)   f32 per-gate input->hidden weights, order (r, z, n)
    w_hh_ref : (3, H, H)   bf16 per-gate hidden->hidden weights, order (r, z, n)
    b_ref    : (4, 1, H)   f32 biases: [b_ir+b_hr, b_iz+b_hz, b_in, b_hn]
    fc_ref   : (H+1, O)    f32 final dense: rows 0..H-1 = W_fc^T, row H = b_fc
    out_ref  : (B, O)
    """
    S, B, I = x_ref.shape
    H = w_hh_ref.shape[-1]

    # --- Loop-invariant operands: loaded / broadcast exactly once ----------
    w_ih_r, w_ih_z, w_ih_n = w_ih_ref[0], w_ih_ref[1], w_ih_ref[2]   # (I, H) f32
    w_hh_r, w_hh_z, w_hh_n = w_hh_ref[0], w_hh_ref[1], w_hh_ref[2]   # (H, H) bf16
    b_r = jnp.broadcast_to(b_ref[0], (B, H))
    b_z = jnp.broadcast_to(b_ref[1], (B, H))
    b_in = jnp.broadcast_to(b_ref[2], (B, H))
    b_hn = jnp.broadcast_to(b_ref[3], (B, H))

    # --- Fully unrolled recurrence (S static). Only h @ W_hh (bf16) sits on
    # --- the serial dependence chain; the x_t projections depend only on x
    # --- and are free for the scheduler to hoist/overlap across steps. -----
    h = jnp.zeros((B, H), dtype=jnp.float32)
    for t in range(S):
        x_t = x_ref[t]                                                # (B, I)
        gi_r = jnp.dot(x_t, w_ih_r, preferred_element_type=jnp.float32) + b_r
        gi_z = jnp.dot(x_t, w_ih_z, preferred_element_type=jnp.float32) + b_z
        gi_n = jnp.dot(x_t, w_ih_n, preferred_element_type=jnp.float32) + b_in

        hb = h.astype(jnp.bfloat16)                       # serial path in bf16
        hr = jnp.dot(hb, w_hh_r, preferred_element_type=jnp.float32)
        hz = jnp.dot(hb, w_hh_z, preferred_element_type=jnp.float32)
        hn = jnp.dot(hb, w_hh_n, preferred_element_type=jnp.float32)

        r = jax.nn.sigmoid(gi_r + hr)
        z = jax.nn.sigmoid(gi_z + hz)
        n = jnp.tanh(gi_n + r * (hn + b_hn))
        h = n + z * (h - n)                 # == (1 - z) * n + z * h

    # --- Final dense layer (off the serial path) ----------------------------
    w_fc = fc_ref[pl.ds(0, H), :]                                     # (H, O)
    b_fc = fc_ref[pl.ds(H, 1), :]                                     # (1, O)
    out = jnp.dot(h, w_fc, preferred_element_type=jnp.float32) + b_fc
    out_ref[...] = out.astype(out_ref.dtype)


def prepare_params(params):
    """ONE-TIME preprocessing: split gates, fold biases, pack, bf16-cast.

    Keeps all of this off the per-call path (the forward is just the
    pallas_call).  PyTorch gate order is (r, z, n).
    """
    w_ih_t, w_hh_t, b_ih, b_hh, w_fc_t, b_fc = params
    H = w_hh_t.shape[0]
    w_ih_g = jnp.stack(
        [w_ih_t[:, :H], w_ih_t[:, H:2 * H], w_ih_t[:, 2 * H:]])       # (3, I, H)
    w_hh_g = jnp.stack(
        [w_hh_t[:, :H], w_hh_t[:, H:2 * H], w_hh_t[:, 2 * H:]]
    ).astype(jnp.bfloat16)                                            # (3, H, H)
    b_g = jnp.stack([
        b_ih[:, :H] + b_hh[:, :H],            # b_ir + b_hr
        b_ih[:, H:2 * H] + b_hh[:, H:2 * H],  # b_iz + b_hz
        b_ih[:, 2 * H:],                      # b_in
        b_hh[:, 2 * H:],                      # b_hn (stays inside r*(...))
    ])                                                                # (4, 1, H)
    fc_packed = jnp.concatenate([w_fc_t, b_fc], axis=0)               # (H+1, O)
    return w_ih_g, w_hh_g, b_g, fc_packed


@jax.jit
def gru_model_forward(x, w_ih_g, w_hh_g, b_g, fc_packed):
    """x: (seq_len, batch, input_size) -> (batch, n_outputs)."""
    S, B, I = x.shape
    H = w_hh_g.shape[-1]
    O = fc_packed.shape[-1]

    cost = pl.CostEstimate(
        flops=(2 * S * B * I * H * 3        # input projections
               + 2 * S * B * H * H * 3      # hidden projections
               + 2 * B * H * O              # final dense
               + 12 * S * B * H),           # gate elementwise
        transcendentals=3 * S * B * H,       # 2x sigmoid + 1x tanh per step
        bytes_accessed=(x.size * 4 + w_ih_g.size * 4 + w_hh_g.size * 2
                        + b_g.size * 4 + fc_packed.size * 4 + B * O * 4),
    )

    vmem = pl.BlockSpec(memory_space=pltpu.MemorySpace.VMEM)
    return pl.pallas_call(
        gru_fc_kernel,
        out_shape=jax.ShapeDtypeStruct((B, O), jnp.float32),
        in_specs=[vmem] * 5,
        out_specs=vmem,
        cost_estimate=cost,
    )(x, w_ih_g, w_hh_g, b_g, fc_packed)


def gru_reference(x, params):
    """Pure-JAX f32 reference of the same forward (sanity check)."""
    w_ih_t, w_hh_t, b_ih, b_hh, w_fc_t, b_fc = params
    H = w_hh_t.shape[0]
    B = x.shape[1]
    h = jnp.zeros((B, H), jnp.float32)

    def step(h, x_t):
        gi = x_t @ w_ih_t + b_ih
        gh = h @ w_hh_t + b_hh
        r = jax.nn.sigmoid(gi[:, :H] + gh[:, :H])
        z = jax.nn.sigmoid(gi[:, H:2 * H] + gh[:, H:2 * H])
        n = jnp.tanh(gi[:, 2 * H:] + r * gh[:, 2 * H:])
        h_new = (1.0 - z) * n + z * h
        return h_new, None

    h_last, _ = lax.scan(step, h, x)
    return h_last @ w_fc_t + b_fc


def init_params(key, input_size, hidden_size, n_outputs):
    """Deterministic param init mirroring PyTorch shapes (uniform +/-1/sqrt(H))."""
    ks = jax.random.split(key, 6)
    bound = 1.0 / jnp.sqrt(jnp.float32(hidden_size))
    # PyTorch stores weight_ih_l0 as (3H, I); we use the transpose (I, 3H).
    w_ih_t = jax.random.uniform(ks[0], (input_size, 3 * hidden_size),
                                jnp.float32, -bound, bound)
    w_hh_t = jax.random.uniform(ks[1], (hidden_size, 3 * hidden_size),
                                jnp.float32, -bound, bound)
    b_ih = jax.random.uniform(ks[2], (1, 3 * hidden_size), jnp.float32, -bound, bound)
    b_hh = jax.random.uniform(ks[3], (1, 3 * hidden_size), jnp.float32, -bound, bound)
    # nn.Linear(hidden, n_outputs): weight (O, H); we use the transpose (H, O).
    w_fc_t = jax.random.uniform(ks[4], (hidden_size, n_outputs),
                                jnp.float32, -bound, bound)
    b_fc = jax.random.uniform(ks[5], (1, n_outputs), jnp.float32, -bound, bound)
    return (w_ih_t, w_hh_t, b_ih, b_hh, w_fc_t, b_fc)


if __name__ == "__main__":
    seq_len, batch, input_size, hidden_size, n_outputs = 8, 2, 4, 32, 3

    key = jax.random.PRNGKey(0)
    k_x, k_p = jax.random.split(key)
    x = jax.random.normal(k_x, (seq_len, batch, input_size), jnp.float32)
    params = init_params(k_p, input_size, hidden_size, n_outputs)

    prepared = prepare_params(params)   # one-time; NOT on the per-call path
    out = jax.block_until_ready(gru_model_forward(x, *prepared))

    ref = jax.block_until_ready(gru_reference(x, params))
    assert out.shape == (batch, n_outputs)
    # Tolerance relaxed (per review) because the serial-path h @ W_hh matmuls
    # use bf16 operands; the f32 reference differs by ~1e-2-scale rounding.
    assert jnp.allclose(out, ref, atol=5e-2, rtol=2e-2), "mismatch vs JAX reference"

    print("KERNEL_OK")
</pallas_src>

<mosaic_0001>
module attributes {stable_mosaic.version = 11 : i64} {
  func.func @gru_fc_kernel(%arg0: memref<8x2x4xf32, #tpu.memory_space<vmem>>, %arg1: memref<3x4x32xf32, #tpu.memory_space<vmem>>, %arg2: memref<3x32x32xbf16, #tpu.memory_space<vmem>>, %arg3: memref<4x1x32xf32, #tpu.memory_space<vmem>>, %arg4: memref<33x3xf32, #tpu.memory_space<vmem>>, %arg5: memref<2x3xf32, #tpu.memory_space<vmem>>) attributes {dimension_semantics = [], scalar_prefetch = 0 : i64, scratch_operands = 0 : i64, tpu.core_type = #tpu.core_type<tc>} {
    %c0 = arith.constant 0 : index
    %c0_0 = arith.constant 0 : index
    %c0_1 = arith.constant 0 : index
    %0 = vector.load %arg1[%c0, %c0_0, %c0_1] : memref<3x4x32xf32, #tpu.memory_space<vmem>>, vector<1x4x32xf32>
    %1 = vector.shape_cast %0 : vector<1x4x32xf32> to vector<4x32xf32>
    %c1 = arith.constant 1 : index
    %c0_2 = arith.constant 0 : index
    %c0_3 = arith.constant 0 : index
    %2 = vector.load %arg1[%c1, %c0_2, %c0_3] : memref<3x4x32xf32, #tpu.memory_space<vmem>>, vector<1x4x32xf32>
    %3 = vector.shape_cast %2 : vector<1x4x32xf32> to vector<4x32xf32>
    %c2 = arith.constant 2 : index
    %c0_4 = arith.constant 0 : index
    %c0_5 = arith.constant 0 : index
    %4 = vector.load %arg1[%c2, %c0_4, %c0_5] : memref<3x4x32xf32, #tpu.memory_space<vmem>>, vector<1x4x32xf32>
    %5 = vector.shape_cast %4 : vector<1x4x32xf32> to vector<4x32xf32>
    %c0_6 = arith.constant 0 : index
    %c0_7 = arith.constant 0 : index
    %c0_8 = arith.constant 0 : index
    %6 = vector.load %arg2[%c0_6, %c0_7, %c0_8] : memref<3x32x32xbf16, #tpu.memory_space<vmem>>, vector<1x32x32xbf16>
    %7 = vector.shape_cast %6 : vector<1x32x32xbf16> to vector<32x32xbf16>
    %c1_9 = arith.constant 1 : index
    %c0_10 = arith.constant 0 : index
    %c0_11 = arith.constant 0 : index
    %8 = vector.load %arg2[%c1_9, %c0_10, %c0_11] : memref<3x32x32xbf16, #tpu.memory_space<vmem>>, vector<1x32x32xbf16>
    %9 = vector.shape_cast %8 : vector<1x32x32xbf16> to vector<32x32xbf16>
    %c2_12 = arith.constant 2 : index
    %c0_13 = arith.constant 0 : index
    %c0_14 = arith.constant 0 : index
    %10 = vector.load %arg2[%c2_12, %c0_13, %c0_14] : memref<3x32x32xbf16, #tpu.memory_space<vmem>>, vector<1x32x32xbf16>
    %11 = vector.shape_cast %10 : vector<1x32x32xbf16> to vector<32x32xbf16>
    %c0_15 = arith.constant 0 : index
    %c0_16 = arith.constant 0 : index
    %c0_17 = arith.constant 0 : index
    %12 = vector.load %arg3[%c0_15, %c0_16, %c0_17] : memref<4x1x32xf32, #tpu.memory_space<vmem>>, vector<1x1x32xf32>
    %13 = vector.shape_cast %12 : vector<1x1x32xf32> to vector<1x32xf32>
    %14 = vector.shape_cast %13 : vector<1x32xf32> to vector<1x32xf32>
    %15 = vector.broadcast %14 : vector<1x32xf32> to vector<2x32xf32>
    %c1_18 = arith.constant 1 : index
    %c0_19 = arith.constant 0 : index
    %c0_20 = arith.constant 0 : index
    %16 = vector.load %arg3[%c1_18, %c0_19, %c0_20] : memref<4x1x32xf32, #tpu.memory_space<vmem>>, vector<1x1x32xf32>
    %17 = vector.shape_cast %16 : vector<1x1x32xf32> to vector<1x32xf32>
    %18 = vector.shape_cast %17 : vector<1x32xf32> to vector<1x32xf32>
    %19 = vector.broadcast %18 : vector<1x32xf32> to vector<2x32xf32>
    %c2_21 = arith.constant 2 : index
    %c0_22 = arith.constant 0 : index
    %c0_23 = arith.constant 0 : index
    %20 = vector.load %arg3[%c2_21, %c0_22, %c0_23] : memref<4x1x32xf32, #tpu.memory_space<vmem>>, vector<1x1x32xf32>
    %21 = vector.shape_cast %20 : vector<1x1x32xf32> to vector<1x32xf32>
    %22 = vector.shape_cast %21 : vector<1x32xf32> to vector<1x32xf32>
    %23 = vector.broadcast %22 : vector<1x32xf32> to vector<2x32xf32>
    %c3 = arith.constant 3 : index
    %c0_24 = arith.constant 0 : index
    %c0_25 = arith.constant 0 : index
    %24 = vector.load %arg3[%c3, %c0_24, %c0_25] : memref<4x1x32xf32, #tpu.memory_space<vmem>>, vector<1x1x32xf32>
    %25 = vector.shape_cast %24 : vector<1x1x32xf32> to vector<1x32xf32>
    %26 = vector.shape_cast %25 : vector<1x32xf32> to vector<1x32xf32>
    %27 = vector.broadcast %26 : vector<1x32xf32> to vector<2x32xf32>
    %cst = arith.constant 0.000000e+00 : f32
    %28 = vector.broadcast %cst : f32 to vector<2x32xf32>
    %c0_26 = arith.constant 0 : index
    %c0_27 = arith.constant 0 : index
    %c0_28 = arith.constant 0 : index
    %29 = vector.load %arg0[%c0_26, %c0_27, %c0_28] : memref<8x2x4xf32, #tpu.memory_space<vmem>>, vector<1x2x4xf32>
    %30 = vector.shape_cast %29 : vector<1x2x4xf32> to vector<2x4xf32>
    %cst_29 = arith.constant dense<0.000000e+00> : vector<2x32xf32>
    %31 = tpu.matmul %30, %1, %cst_29 {dimension_numbers = #tpu.dot_dimension_numbers<[1], [0], [0], [1], [0, 0, 1, 1], [], []>} : vector<2x4xf32>, vector<4x32xf32>, vector<2x32xf32> -> vector<2x32xf32>
    %32 = arith.addf %31, %15 : vector<2x32xf32>
    %cst_30 = arith.constant dense<0.000000e+00> : vector<2x32xf32>
    %33 = tpu.matmul %30, %3, %cst_30 {dimension_numbers = #tpu.dot_dimension_numbers<[1], [0], [0], [1], [0, 0, 1, 1], [], []>} : vector<2x4xf32>, vector<4x32xf32>, vector<2x32xf32> -> vector<2x32xf32>
    %34 = arith.addf %33, %19 : vector<2x32xf32>
    %cst_31 = arith.constant dense<0.000000e+00> : vector<2x32xf32>
    %35 = tpu.matmul %30, %5, %cst_31 {dimension_numbers = #tpu.dot_dimension_numbers<[1], [0], [0], [1], [0, 0, 1, 1], [], []>} : vector<2x4xf32>, vector<4x32xf32>, vector<2x32xf32> -> vector<2x32xf32>
    %36 = arith.addf %35, %23 : vector<2x32xf32>
    %37 = arith.truncf %28 : vector<2x32xf32> to vector<2x32xbf16>
    %cst_32 = arith.constant dense<0.000000e+00> : vector<2x32xf32>
    %38 = tpu.matmul %37, %7, %cst_32 {dimension_numbers = #tpu.dot_dimension_numbers<[1], [0], [0], [1], [0, 0, 1, 1], [], []>} : vector<2x32xbf16>, vector<32x32xbf16>, vector<2x32xf32> -> vector<2x32xf32>
    %cst_33 = arith.constant dense<0.000000e+00> : vector<2x32xf32>
    %39 = tpu.matmul %37, %9, %cst_33 {dimension_numbers = #tpu.dot_dimension_numbers<[1], [0], [0], [1], [0, 0, 1, 1], [], []>} : vector<2x32xbf16>, vector<32x32xbf16>, vector<2x32xf32> -> vector<2x32xf32>
    %cst_34 = arith.constant dense<0.000000e+00> : vector<2x32xf32>
    %40 = tpu.matmul %37, %11, %cst_34 {dimension_numbers = #tpu.dot_dimension_numbers<[1], [0], [0], [1], [0, 0, 1, 1], [], []>} : vector<2x32xbf16>, vector<32x32xbf16>, vector<2x32xf32> -> vector<2x32xf32>
    %41 = arith.addf %32, %38 : vector<2x32xf32>
    %42 = arith.negf %41 : vector<2x32xf32>
    %43 = math.exp %42 : vector<2x32xf32>
    %cst_35 = arith.constant 1.000000e+00 : f32
    %44 = vector.broadcast %cst_35 : f32 to vector<2x32xf32>
    %45 = arith.addf %44, %43 : vector<2x32xf32>
    %46 = arith.divf %44, %45 : vector<2x32xf32>
    %47 = arith.addf %34, %39 : vector<2x32xf32>
    %48 = arith.negf %47 : vector<2x32xf32>
    %49 = math.exp %48 : vector<2x32xf32>
    %cst_36 = arith.constant 1.000000e+00 : f32
    %50 = vector.broadcast %cst_36 : f32 to vector<2x32xf32>
    %51 = arith.addf %50, %49 : vector<2x32xf32>
    %52 = arith.divf %50, %51 : vector<2x32xf32>
    %53 = arith.addf %40, %27 : vector<2x32xf32>
    %54 = arith.mulf %46, %53 : vector<2x32xf32>
    %55 = arith.addf %36, %54 : vector<2x32xf32>
    %56 = math.tanh %55 : vector<2x32xf32>
    %57 = arith.subf %28, %56 : vector<2x32xf32>
    %58 = arith.mulf %52, %57 : vector<2x32xf32>
    %59 = arith.addf %56, %58 : vector<2x32xf32>
    %c1_37 = arith.constant 1 : index
    %c0_38 = arith.constant 0 : index
    %c0_39 = arith.constant 0 : index
    %60 = vector.load %arg0[%c1_37, %c0_38, %c0_39] : memref<8x2x4xf32, #tpu.memory_space<vmem>>, vector<1x2x4xf32>
    %61 = vector.shape_cast %60 : vector<1x2x4xf32> to vector<2x4xf32>
    %cst_40 = arith.constant dense<0.000000e+00> : vector<2x32xf32>
    %62 = tpu.matmul %61, %1, %cst_40 {dimension_numbers = #tpu.dot_dimension_numbers<[1], [0], [0], [1], [0, 0, 1, 1], [], []>} : vector<2x4xf32>, vector<4x32xf32>, vector<2x32xf32> -> vector<2x32xf32>
    %63 = arith.addf %62, %15 : vector<2x32xf32>
    %cst_41 = arith.constant dense<0.000000e+00> : vector<2x32xf32>
    %64 = tpu.matmul %61, %3, %cst_41 {dimension_numbers = #tpu.dot_dimension_numbers<[1], [0], [0], [1], [0, 0, 1, 1], [], []>} : vector<2x4xf32>, vector<4x32xf32>, vector<2x32xf32> -> vector<2x32xf32>
    %65 = arith.addf %64, %19 : vector<2x32xf32>
    %cst_42 = arith.constant dense<0.000000e+00> : vector<2x32xf32>
    %66 = tpu.matmul %61, %5, %cst_42 {dimension_numbers = #tpu.dot_dimension_numbers<[1], [0], [0], [1], [0, 0, 1, 1], [], []>} : vector<2x4xf32>, vector<4x32xf32>, vector<2x32xf32> -> vector<2x32xf32>
    %67 = arith.addf %66, %23 : vector<2x32xf32>
    %68 = arith.truncf %59 : vector<2x32xf32> to vector<2x32xbf16>
    %cst_43 = arith.constant dense<0.000000e+00> : vector<2x32xf32>
    %69 = tpu.matmul %68, %7, %cst_43 {dimension_numbers = #tpu.dot_dimension_numbers<[1], [0], [0], [1], [0, 0, 1, 1], [], []>} : vector<2x32xbf16>, vector<32x32xbf16>, vector<2x32xf32> -> vector<2x32xf32>
    %cst_44 = arith.constant dense<0.000000e+00> : vector<2x32xf32>
    %70 = tpu.matmul %68, %9, %cst_44 {dimension_numbers = #tpu.dot_dimension_numbers<[1], [0], [0], [1], [0, 0, 1, 1], [], []>} : vector<2x32xbf16>, vector<32x32xbf16>, vector<2x32xf32> -> vector<2x32xf32>
    %cst_45 = arith.constant dense<0.000000e+00> : vector<2x32xf32>
    %71 = tpu.matmul %68, %11, %cst_45 {dimension_numbers = #tpu.dot_dimension_numbers<[1], [0], [0], [1], [0, 0, 1, 1], [], []>} : vector<2x32xbf16>, vector<32x32xbf16>, vector<2x32xf32> -> vector<2x32xf32>
    %72 = arith.addf %63, %69 : vector<2x32xf32>
    %73 = arith.negf %72 : vector<2x32xf32>
    %74 = math.exp %73 : vector<2x32xf32>
    %cst_46 = arith.constant 1.000000e+00 : f32
    %75 = vector.broadcast %cst_46 : f32 to vector<2x32xf32>
    %76 = arith.addf %75, %74 : vector<2x32xf32>
    %77 = arith.divf %75, %76 : vector<2x32xf32>
    %78 = arith.addf %65, %70 : vector<2x32xf32>
    %79 = arith.negf %78 : vector<2x32xf32>
    %80 = math.exp %79 : vector<2x32xf32>
    %cst_47 = arith.constant 1.000000e+00 : f32
    %81 = vector.broadcast %cst_47 : f32 to vector<2x32xf32>
    %82 = arith.addf %81, %80 : vector<2x32xf32>
    %83 = arith.divf %81, %82 : vector<2x32xf32>
    %84 = arith.addf %71, %27 : vector<2x32xf32>
    %85 = arith.mulf %77, %84 : vector<2x32xf32>
    %86 = arith.addf %67, %85 : vector<2x32xf32>
    %87 = math.tanh %86 : vector<2x32xf32>
    %88 = arith.subf %59, %87 : vector<2x32xf32>
    %89 = arith.mulf %83, %88 : vector<2x32xf32>
    %90 = arith.addf %87, %89 : vector<2x32xf32>
    %c2_48 = arith.constant 2 : index
    %c0_49 = arith.constant 0 : index
    %c0_50 = arith.constant 0 : index
    %91 = vector.load %arg0[%c2_48, %c0_49, %c0_50] : memref<8x2x4xf32, #tpu.memory_space<vmem>>, vector<1x2x4xf32>
    %92 = vector.shape_cast %91 : vector<1x2x4xf32> to vector<2x4xf32>
    %cst_51 = arith.constant dense<0.000000e+00> : vector<2x32xf32>
    %93 = tpu.matmul %92, %1, %cst_51 {dimension_numbers = #tpu.dot_dimension_numbers<[1], [0], [0], [1], [0, 0, 1, 1], [], []>} : vector<2x4xf32>, vector<4x32xf32>, vector<2x32xf32> -> vector<2x32xf32>
    %94 = arith.addf %93, %15 : vector<2x32xf32>
    %cst_52 = arith.constant dense<0.000000e+00> : vector<2x32xf32>
    %95 = tpu.matmul %92, %3, %cst_52 {dimension_numbers = #tpu.dot_dimension_numbers<[1], [0], [0], [1], [0, 0, 1, 1], [], []>} : vector<2x4xf32>, vector<4x32xf32>, vector<2x32xf32> -> vector<2x32xf32>
    %96 = arith.addf %95, %19 : vector<2x32xf32>
    %cst_53 = arith.constant dense<0.000000e+00> : vector<2x32xf32>
    %97 = tpu.matmul %92, %5, %cst_53 {dimension_numbers = #tpu.dot_dimension_numbers<[1], [0], [0], [1], [0, 0, 1, 1], [], []>} : vector<2x4xf32>, vector<4x32xf32>, vector<2x32xf32> -> vector<2x32xf32>
    %98 = arith.addf %97, %23 : vector<2x32xf32>
    %99 = arith.truncf %90 : vector<2x32xf32> to vector<2x32xbf16>
    %cst_54 = arith.constant dense<0.000000e+00> : vector<2x32xf32>
    %100 = tpu.matmul %99, %7, %cst_54 {dimension_numbers = #tpu.dot_dimension_numbers<[1], [0], [0], [1], [0, 0, 1, 1], [], []>} : vector<2x32xbf16>, vector<32x32xbf16>, vector<2x32xf32> -> vector<2x32xf32>
    %cst_55 = arith.constant dense<0.000000e+00> : vector<2x32xf32>
    %101 = tpu.matmul %99, %9, %cst_55 {dimension_numbers = #tpu.dot_dimension_numbers<[1], [0], [0], [1], [0, 0, 1, 1], [], []>} : vector<2x32xbf16>, vector<32x32xbf16>, vector<2x32xf32> -> vector<2x32xf32>
    %cst_56 = arith.constant dense<0.000000e+00> : vector<2x32xf32>
    %102 = tpu.matmul %99, %11, %cst_56 {dimension_numbers = #tpu.dot_dimension_numbers<[1], [0], [0], [1], [0, 0, 1, 1], [], []>} : vector<2x32xbf16>, vector<32x32xbf16>, vector<2x32xf32> -> vector<2x32xf32>
    %103 = arith.addf %94, %100 : vector<2x32xf32>
    %104 = arith.negf %103 : vector<2x32xf32>
    %105 = math.exp %104 : vector<2x32xf32>
    %cst_57 = arith.constant 1.000000e+00 : f32
    %106 = vector.broadcast %cst_57 : f32 to vector<2x32xf32>
    %107 = arith.addf %106, %105 : vector<2x32xf32>
    %108 = arith.divf %106, %107 : vector<2x32xf32>
    %109 = arith.addf %96, %101 : vector<2x32xf32>
    %110 = arith.negf %109 : vector<2x32xf32>
    %111 = math.exp %110 : vector<2x32xf32>
    %cst_58 = arith.constant 1.000000e+00 : f32
    %112 = vector.broadcast %cst_58 : f32 to vector<2x32xf32>
    %113 = arith.addf %112, %111 : vector<2x32xf32>
    %114 = arith.divf %112, %113 : vector<2x32xf32>
    %115 = arith.addf %102, %27 : vector<2x32xf32>
    %116 = arith.mulf %108, %115 : vector<2x32xf32>
    %117 = arith.addf %98, %116 : vector<2x32xf32>
    %118 = math.tanh %117 : vector<2x32xf32>
    %119 = arith.subf %90, %118 : vector<2x32xf32>
    %120 = arith.mulf %114, %119 : vector<2x32xf32>
    %121 = arith.addf %118, %120 : vector<2x32xf32>
    %c3_59 = arith.constant 3 : index
    %c0_60 = arith.constant 0 : index
    %c0_61 = arith.constant 0 : index
    %122 = vector.load %arg0[%c3_59, %c0_60, %c0_61] : memref<8x2x4xf32, #tpu.memory_space<vmem>>, vector<1x2x4xf32>
    %123 = vector.shape_cast %122 : vector<1x2x4xf32> to vector<2x4xf32>
    %cst_62 = arith.constant dense<0.000000e+00> : vector<2x32xf32>
    %124 = tpu.matmul %123, %1, %cst_62 {dimension_numbers = #tpu.dot_dimension_numbers<[1], [0], [0], [1], [0, 0, 1, 1], [], []>} : vector<2x4xf32>, vector<4x32xf32>, vector<2x32xf32> -> vector<2x32xf32>
    %125 = arith.addf %124, %15 : vector<2x32xf32>
    %cst_63 = arith.constant dense<0.000000e+00> : vector<2x32xf32>
    %126 = tpu.matmul %123, %3, %cst_63 {dimension_numbers = #tpu.dot_dimension_numbers<[1], [0], [0], [1], [0, 0, 1, 1], [], []>} : vector<2x4xf32>, vector<4x32xf32>, vector<2x32xf32> -> vector<2x32xf32>
    %127 = arith.addf %126, %19 : vector<2x32xf32>
    %cst_64 = arith.constant dense<0.000000e+00> : vector<2x32xf32>
    %128 = tpu.matmul %123, %5, %cst_64 {dimension_numbers = #tpu.dot_dimension_numbers<[1], [0], [0], [1], [0, 0, 1, 1], [], []>} : vector<2x4xf32>, vector<4x32xf32>, vector<2x32xf32> -> vector<2x32xf32>
    %129 = arith.addf %128, %23 : vector<2x32xf32>
    %130 = arith.truncf %121 : vector<2x32xf32> to vector<2x32xbf16>
    %cst_65 = arith.constant dense<0.000000e+00> : vector<2x32xf32>
    %131 = tpu.matmul %130, %7, %cst_65 {dimension_numbers = #tpu.dot_dimension_numbers<[1], [0], [0], [1], [0, 0, 1, 1], [], []>} : vector<2x32xbf16>, vector<32x32xbf16>, vector<2x32xf32> -> vector<2x32xf32>
    %cst_66 = arith.constant dense<0.000000e+00> : vector<2x32xf32>
    %132 = tpu.matmul %130, %9, %cst_66 {dimension_numbers = #tpu.dot_dimension_numbers<[1], [0], [0], [1], [0, 0, 1, 1], [], []>} : vector<2x32xbf16>, vector<32x32xbf16>, vector<2x32xf32> -> vector<2x32xf32>
    %cst_67 = arith.constant dense<0.000000e+00> : vector<2x32xf32>
    %133 = tpu.matmul %130, %11, %cst_67 {dimension_numbers = #tpu.dot_dimension_numbers<[1], [0], [0], [1], [0, 0, 1, 1], [], []>} : vector<2x32xbf16>, vector<32x32xbf16>, vector<2x32xf32> -> vector<2x32xf32>
    %134 = arith.addf %125, %131 : vector<2x32xf32>
    %135 = arith.negf %134 : vector<2x32xf32>
    %136 = math.exp %135 : vector<2x32xf32>
    %cst_68 = arith.constant 1.000000e+00 : f32
    %137 = vector.broadcast %cst_68 : f32 to vector<2x32xf32>
    %138 = arith.addf %137, %136 : vector<2x32xf32>
    %139 = arith.divf %137, %138 : vector<2x32xf32>
    %140 = arith.addf %127, %132 : vector<2x32xf32>
    %141 = arith.negf %140 : vector<2x32xf32>
    %142 = math.exp %141 : vector<2x32xf32>
    %cst_69 = arith.constant 1.000000e+00 : f32
    %143 = vector.broadcast %cst_69 : f32 to vector<2x32xf32>
    %144 = arith.addf %143, %142 : vector<2x32xf32>
    %145 = arith.divf %143, %144 : vector<2x32xf32>
    %146 = arith.addf %133, %27 : vector<2x32xf32>
    %147 = arith.mulf %139, %146 : vector<2x32xf32>
    %148 = arith.addf %129, %147 : vector<2x32xf32>
    %149 = math.tanh %148 : vector<2x32xf32>
    %150 = arith.subf %121, %149 : vector<2x32xf32>
    %151 = arith.mulf %145, %150 : vector<2x32xf32>
    %152 = arith.addf %149, %151 : vector<2x32xf32>
    %c4 = arith.constant 4 : index
    %c0_70 = arith.constant 0 : index
    %c0_71 = arith.constant 0 : index
    %153 = vector.load %arg0[%c4, %c0_70, %c0_71] : memref<8x2x4xf32, #tpu.memory_space<vmem>>, vector<1x2x4xf32>
    %154 = vector.shape_cast %153 : vector<1x2x4xf32> to vector<2x4xf32>
    %cst_72 = arith.constant dense<0.000000e+00> : vector<2x32xf32>
    %155 = tpu.matmul %154, %1, %cst_72 {dimension_numbers = #tpu.dot_dimension_numbers<[1], [0], [0], [1], [0, 0, 1, 1], [], []>} : vector<2x4xf32>, vector<4x32xf32>, vector<2x32xf32> -> vector<2x32xf32>
    %156 = arith.addf %155, %15 : vector<2x32xf32>
    %cst_73 = arith.constant dense<0.000000e+00> : vector<2x32xf32>
    %157 = tpu.matmul %154, %3, %cst_73 {dimension_numbers = #tpu.dot_dimension_numbers<[1], [0], [0], [1], [0, 0, 1, 1], [], []>} : vector<2x4xf32>, vector<4x32xf32>, vector<2x32xf32> -> vector<2x32xf32>
    %158 = arith.addf %157, %19 : vector<2x32xf32>
    %cst_74 = arith.constant dense<0.000000e+00> : vector<2x32xf32>
    %159 = tpu.matmul %154, %5, %cst_74 {dimension_numbers = #tpu.dot_dimension_numbers<[1], [0], [0], [1], [0, 0, 1, 1], [], []>} : vector<2x4xf32>, vector<4x32xf32>, vector<2x32xf32> -> vector<2x32xf32>
    %160 = arith.addf %159, %23 : vector<2x32xf32>
    %161 = arith.truncf %152 : vector<2x32xf32> to vector<2x32xbf16>
    %cst_75 = arith.constant dense<0.000000e+00> : vector<2x32xf32>
    %162 = tpu.matmul %161, %7, %cst_75 {dimension_numbers = #tpu.dot_dimension_numbers<[1], [0], [0], [1], [0, 0, 1, 1], [], []>} : vector<2x32xbf16>, vector<32x32xbf16>, vector<2x32xf32> -> vector<2x32xf32>
    %cst_76 = arith.constant dense<0.000000e+00> : vector<2x32xf32>
    %163 = tpu.matmul %161, %9, %cst_76 {dimension_numbers = #tpu.dot_dimension_numbers<[1], [0], [0], [1], [0, 0, 1, 1], [], []>} : vector<2x32xbf16>, vector<32x32xbf16>, vector<2x32xf32> -> vector<2x32xf32>
    %cst_77 = arith.constant dense<0.000000e+00> : vector<2x32xf32>
    %164 = tpu.matmul %161, %11, %cst_77 {dimension_numbers = #tpu.dot_dimension_numbers<[1], [0], [0], [1], [0, 0, 1, 1], [], []>} : vector<2x32xbf16>, vector<32x32xbf16>, vector<2x32xf32> -> vector<2x32xf32>
    %165 = arith.addf %156, %162 : vector<2x32xf32>
    %166 = arith.negf %165 : vector<2x32xf32>
    %167 = math.exp %166 : vector<2x32xf32>
    %cst_78 = arith.constant 1.000000e+00 : f32
    %168 = vector.broadcast %cst_78 : f32 to vector<2x32xf32>
    %169 = arith.addf %168, %167 : vector<2x32xf32>
    %170 = arith.divf %168, %169 : vector<2x32xf32>
    %171 = arith.addf %158, %163 : vector<2x32xf32>
    %172 = arith.negf %171 : vector<2x32xf32>
    %173 = math.exp %172 : vector<2x32xf32>
    %cst_79 = arith.constant 1.000000e+00 : f32
    %174 = vector.broadcast %cst_79 : f32 to vector<2x32xf32>
    %175 = arith.addf %174, %173 : vector<2x32xf32>
    %176 = arith.divf %174, %175 : vector<2x32xf32>
    %177 = arith.addf %164, %27 : vector<2x32xf32>
    %178 = arith.mulf %170, %177 : vector<2x32xf32>
    %179 = arith.addf %160, %178 : vector<2x32xf32>
    %180 = math.tanh %179 : vector<2x32xf32>
    %181 = arith.subf %152, %180 : vector<2x32xf32>
    %182 = arith.mulf %176, %181 : vector<2x32xf32>
    %183 = arith.addf %180, %182 : vector<2x32xf32>
    %c5 = arith.constant 5 : index
    %c0_80 = arith.constant 0 : index
    %c0_81 = arith.constant 0 : index
    %184 = vector.load %arg0[%c5, %c0_80, %c0_81] : memref<8x2x4xf32, #tpu.memory_space<vmem>>, vector<1x2x4xf32>
    %185 = vector.shape_cast %184 : vector<1x2x4xf32> to vector<2x4xf32>
    %cst_82 = arith.constant dense<0.000000e+00> : vector<2x32xf32>
    %186 = tpu.matmul %185, %1, %cst_82 {dimension_numbers = #tpu.dot_dimension_numbers<[1], [0], [0], [1], [0, 0, 1, 1], [], []>} : vector<2x4xf32>, vector<4x32xf32>, vector<2x32xf32> -> vector<2x32xf32>
    %187 = arith.addf %186, %15 : vector<2x32xf32>
    %cst_83 = arith.constant dense<0.000000e+00> : vector<2x32xf32>
    %188 = tpu.matmul %185, %3, %cst_83 {dimension_numbers = #tpu.dot_dimension_numbers<[1], [0], [0], [1], [0, 0, 1, 1], [], []>} : vector<2x4xf32>, vector<4x32xf32>, vector<2x32xf32> -> vector<2x32xf32>
    %189 = arith.addf %188, %19 : vector<2x32xf32>
    %cst_84 = arith.constant dense<0.000000e+00> : vector<2x32xf32>
    %190 = tpu.matmul %185, %5, %cst_84 {dimension_numbers = #tpu.dot_dimension_numbers<[1], [0], [0], [1], [0, 0, 1, 1], [], []>} : vector<2x4xf32>, vector<4x32xf32>, vector<2x32xf32> -> vector<2x32xf32>
    %191 = arith.addf %190, %23 : vector<2x32xf32>
    %192 = arith.truncf %183 : vector<2x32xf32> to vector<2x32xbf16>
    %cst_85 = arith.constant dense<0.000000e+00> : vector<2x32xf32>
    %193 = tpu.matmul %192, %7, %cst_85 {dimension_numbers = #tpu.dot_dimension_numbers<[1], [0], [0], [1], [0, 0, 1, 1], [], []>} : vector<2x32xbf16>, vector<32x32xbf16>, vector<2x32xf32> -> vector<2x32xf32>
    %cst_86 = arith.constant dense<0.000000e+00> : vector<2x32xf32>
    %194 = tpu.matmul %192, %9, %cst_86 {dimension_numbers = #tpu.dot_dimension_numbers<[1], [0], [0], [1], [0, 0, 1, 1], [], []>} : vector<2x32xbf16>, vector<32x32xbf16>, vector<2x32xf32> -> vector<2x32xf32>
    %cst_87 = arith.constant dense<0.000000e+00> : vector<2x32xf32>
    %195 = tpu.matmul %192, %11, %cst_87 {dimension_numbers = #tpu.dot_dimension_numbers<[1], [0], [0], [1], [0, 0, 1, 1], [], []>} : vector<2x32xbf16>, vector<32x32xbf16>, vector<2x32xf32> -> vector<2x32xf32>
    %196 = arith.addf %187, %193 : vector<2x32xf32>
    %197 = arith.negf %196 : vector<2x32xf32>
    %198 = math.exp %197 : vector<2x32xf32>
    %cst_88 = arith.constant 1.000000e+00 : f32
    %199 = vector.broadcast %cst_88 : f32 to vector<2x32xf32>
    %200 = arith.addf %199, %198 : vector<2x32xf32>
    %201 = arith.divf %199, %200 : vector<2x32xf32>
    %202 = arith.addf %189, %194 : vector<2x32xf32>
    %203 = arith.negf %202 : vector<2x32xf32>
    %204 = math.exp %203 : vector<2x32xf32>
    %cst_89 = arith.constant 1.000000e+00 : f32
    %205 = vector.broadcast %cst_89 : f32 to vector<2x32xf32>
    %206 = arith.addf %205, %204 : vector<2x32xf32>
    %207 = arith.divf %205, %206 : vector<2x32xf32>
    %208 = arith.addf %195, %27 : vector<2x32xf32>
    %209 = arith.mulf %201, %208 : vector<2x32xf32>
    %210 = arith.addf %191, %209 : vector<2x32xf32>
    %211 = math.tanh %210 : vector<2x32xf32>
    %212 = arith.subf %183, %211 : vector<2x32xf32>
    %213 = arith.mulf %207, %212 : vector<2x32xf32>
    %214 = arith.addf %211, %213 : vector<2x32xf32>
    %c6 = arith.constant 6 : index
    %c0_90 = arith.constant 0 : index
    %c0_91 = arith.constant 0 : index
    %215 = vector.load %arg0[%c6, %c0_90, %c0_91] : memref<8x2x4xf32, #tpu.memory_space<vmem>>, vector<1x2x4xf32>
    %216 = vector.shape_cast %215 : vector<1x2x4xf32> to vector<2x4xf32>
    %cst_92 = arith.constant dense<0.000000e+00> : vector<2x32xf32>
    %217 = tpu.matmul %216, %1, %cst_92 {dimension_numbers = #tpu.dot_dimension_numbers<[1], [0], [0], [1], [0, 0, 1, 1], [], []>} : vector<2x4xf32>, vector<4x32xf32>, vector<2x32xf32> -> vector<2x32xf32>
    %218 = arith.addf %217, %15 : vector<2x32xf32>
    %cst_93 = arith.constant dense<0.000000e+00> : vector<2x32xf32>
    %219 = tpu.matmul %216, %3, %cst_93 {dimension_numbers = #tpu.dot_dimension_numbers<[1], [0], [0], [1], [0, 0, 1, 1], [], []>} : vector<2x4xf32>, vector<4x32xf32>, vector<2x32xf32> -> vector<2x32xf32>
    %220 = arith.addf %219, %19 : vector<2x32xf32>
    %cst_94 = arith.constant dense<0.000000e+00> : vector<2x32xf32>
    %221 = tpu.matmul %216, %5, %cst_94 {dimension_numbers = #tpu.dot_dimension_numbers<[1], [0], [0], [1], [0, 0, 1, 1], [], []>} : vector<2x4xf32>, vector<4x32xf32>, vector<2x32xf32> -> vector<2x32xf32>
    %222 = arith.addf %221, %23 : vector<2x32xf32>
    %223 = arith.truncf %214 : vector<2x32xf32> to vector<2x32xbf16>
    %cst_95 = arith.constant dense<0.000000e+00> : vector<2x32xf32>
    %224 = tpu.matmul %223, %7, %cst_95 {dimension_numbers = #tpu.dot_dimension_numbers<[1], [0], [0], [1], [0, 0, 1, 1], [], []>} : vector<2x32xbf16>, vector<32x32xbf16>, vector<2x32xf32> -> vector<2x32xf32>
    %cst_96 = arith.constant dense<0.000000e+00> : vector<2x32xf32>
    %225 = tpu.matmul %223, %9, %cst_96 {dimension_numbers = #tpu.dot_dimension_numbers<[1], [0], [0], [1], [0, 0, 1, 1], [], []>} : vector<2x32xbf16>, vector<32x32xbf16>, vector<2x32xf32> -> vector<2x32xf32>
    %cst_97 = arith.constant dense<0.000000e+00> : vector<2x32xf32>
    %226 = tpu.matmul %223, %11, %cst_97 {dimension_numbers = #tpu.dot_dimension_numbers<[1], [0], [0], [1], [0, 0, 1, 1], [], []>} : vector<2x32xbf16>, vector<32x32xbf16>, vector<2x32xf32> -> vector<2x32xf32>
    %227 = arith.addf %218, %224 : vector<2x32xf32>
    %228 = arith.negf %227 : vector<2x32xf32>
    %229 = math.exp %228 : vector<2x32xf32>
    %cst_98 = arith.constant 1.000000e+00 : f32
    %230 = vector.broadcast %cst_98 : f32 to vector<2x32xf32>
    %231 = arith.addf %230, %229 : vector<2x32xf32>
    %232 = arith.divf %230, %231 : vector<2x32xf32>
    %233 = arith.addf %220, %225 : vector<2x32xf32>
    %234 = arith.negf %233 : vector<2x32xf32>
    %235 = math.exp %234 : vector<2x32xf32>
    %cst_99 = arith.constant 1.000000e+00 : f32
    %236 = vector.broadcast %cst_99 : f32 to vector<2x32xf32>
    %237 = arith.addf %236, %235 : vector<2x32xf32>
    %238 = arith.divf %236, %237 : vector<2x32xf32>
    %239 = arith.addf %226, %27 : vector<2x32xf32>
    %240 = arith.mulf %232, %239 : vector<2x32xf32>
    %241 = arith.addf %222, %240 : vector<2x32xf32>
    %242 = math.tanh %241 : vector<2x32xf32>
    %243 = arith.subf %214, %242 : vector<2x32xf32>
    %244 = arith.mulf %238, %243 : vector<2x32xf32>
    %245 = arith.addf %242, %244 : vector<2x32xf32>
    %c7 = arith.constant 7 : index
    %c0_100 = arith.constant 0 : index
    %c0_101 = arith.constant 0 : index
    %246 = vector.load %arg0[%c7, %c0_100, %c0_101] : memref<8x2x4xf32, #tpu.memory_space<vmem>>, vector<1x2x4xf32>
    %247 = vector.shape_cast %246 : vector<1x2x4xf32> to vector<2x4xf32>
    %cst_102 = arith.constant dense<0.000000e+00> : vector<2x32xf32>
    %248 = tpu.matmul %247, %1, %cst_102 {dimension_numbers = #tpu.dot_dimension_numbers<[1], [0], [0], [1], [0, 0, 1, 1], [], []>} : vector<2x4xf32>, vector<4x32xf32>, vector<2x32xf32> -> vector<2x32xf32>
    %249 = arith.addf %248, %15 : vector<2x32xf32>
    %cst_103 = arith.constant dense<0.000000e+00> : vector<2x32xf32>
    %250 = tpu.matmul %247, %3, %cst_103 {dimension_numbers = #tpu.dot_dimension_numbers<[1], [0], [0], [1], [0, 0, 1, 1], [], []>} : vector<2x4xf32>, vector<4x32xf32>, vector<2x32xf32> -> vector<2x32xf32>
    %251 = arith.addf %250, %19 : vector<2x32xf32>
    %cst_104 = arith.constant dense<0.000000e+00> : vector<2x32xf32>
    %252 = tpu.matmul %247, %5, %cst_104 {dimension_numbers = #tpu.dot_dimension_numbers<[1], [0], [0], [1], [0, 0, 1, 1], [], []>} : vector<2x4xf32>, vector<4x32xf32>, vector<2x32xf32> -> vector<2x32xf32>
    %253 = arith.addf %252, %23 : vector<2x32xf32>
    %254 = arith.truncf %245 : vector<2x32xf32> to vector<2x32xbf16>
    %cst_105 = arith.constant dense<0.000000e+00> : vector<2x32xf32>
    %255 = tpu.matmul %254, %7, %cst_105 {dimension_numbers = #tpu.dot_dimension_numbers<[1], [0], [0], [1], [0, 0, 1, 1], [], []>} : vector<2x32xbf16>, vector<32x32xbf16>, vector<2x32xf32> -> vector<2x32xf32>
    %cst_106 = arith.constant dense<0.000000e+00> : vector<2x32xf32>
    %256 = tpu.matmul %254, %9, %cst_106 {dimension_numbers = #tpu.dot_dimension_numbers<[1], [0], [0], [1], [0, 0, 1, 1], [], []>} : vector<2x32xbf16>, vector<32x32xbf16>, vector<2x32xf32> -> vector<2x32xf32>
    %cst_107 = arith.constant dense<0.000000e+00> : vector<2x32xf32>
    %257 = tpu.matmul %254, %11, %cst_107 {dimension_numbers = #tpu.dot_dimension_numbers<[1], [0], [0], [1], [0, 0, 1, 1], [], []>} : vector<2x32xbf16>, vector<32x32xbf16>, vector<2x32xf32> -> vector<2x32xf32>
    %258 = arith.addf %249, %255 : vector<2x32xf32>
    %259 = arith.negf %258 : vector<2x32xf32>
    %260 = math.exp %259 : vector<2x32xf32>
    %cst_108 = arith.constant 1.000000e+00 : f32
    %261 = vector.broadcast %cst_108 : f32 to vector<2x32xf32>
    %262 = arith.addf %261, %260 : vector<2x32xf32>
    %263 = arith.divf %261, %262 : vector<2x32xf32>
    %264 = arith.addf %251, %256 : vector<2x32xf32>
    %265 = arith.negf %264 : vector<2x32xf32>
    %266 = math.exp %265 : vector<2x32xf32>
    %cst_109 = arith.constant 1.000000e+00 : f32
    %267 = vector.broadcast %cst_109 : f32 to vector<2x32xf32>
    %268 = arith.addf %267, %266 : vector<2x32xf32>
    %269 = arith.divf %267, %268 : vector<2x32xf32>
    %270 = arith.addf %257, %27 : vector<2x32xf32>
    %271 = arith.mulf %263, %270 : vector<2x32xf32>
    %272 = arith.addf %253, %271 : vector<2x32xf32>
    %273 = math.tanh %272 : vector<2x32xf32>
    %274 = arith.subf %245, %273 : vector<2x32xf32>
    %275 = arith.mulf %269, %274 : vector<2x32xf32>
    %276 = arith.addf %273, %275 : vector<2x32xf32>
    %c0_110 = arith.constant 0 : index
    %c0_111 = arith.constant 0 : index
    %277 = vector.load %arg4[%c0_110, %c0_111] : memref<33x3xf32, #tpu.memory_space<vmem>>, vector<32x3xf32>
    %c32 = arith.constant 32 : index
    %c0_112 = arith.constant 0 : index
    %278 = vector.load %arg4[%c32, %c0_112] : memref<33x3xf32, #tpu.memory_space<vmem>>, vector<1x3xf32>
    %cst_113 = arith.constant dense<0.000000e+00> : vector<2x3xf32>
    %279 = tpu.matmul %276, %277, %cst_113 {dimension_numbers = #tpu.dot_dimension_numbers<[1], [0], [0], [1], [0, 0, 1, 1], [], []>} : vector<2x32xf32>, vector<32x3xf32>, vector<2x3xf32> -> vector<2x3xf32>
    %280 = vector.broadcast %278 : vector<1x3xf32> to vector<2x3xf32>
    %281 = arith.addf %279, %280 : vector<2x3xf32>
    %c0_114 = arith.constant 0 : index
    %c0_115 = arith.constant 0 : index
    %282 = vector.load %arg5[%c0_114, %c0_115] : memref<2x3xf32, #tpu.memory_space<vmem>>, vector<2x3xf32>
    tpu.vector_store %arg5[%c0_114, %c0_115], %281 {strides = array<i32>} : memref<2x3xf32, #tpu.memory_space<vmem>>, vector<2x3xf32>,
    return
  }
}

</mosaic_0001>

<llo_original>
// kernel: gru_model_forward.1
$region0: #{gru_model_forward.1}
  #allocation0 [shape = 'u32[]', space=smem, size = 0x4, offset = 0x4, fixed_abs, tag = 'smem constant byte address 0x4 - core index']
  #allocation1 [shape = 'u32[144,128]{1,0:T(1,128)}', space=vmem, size = 0x12000, scoped, tag = 'internal scratch']
  %s0 = inlined_call_operand.vmem [shape: f32[8,2,4], index: 0, kind: input, shape index: {}]
  %s1 = inlined_call_operand.vmem [shape: f32[3,4,32], index: 1, kind: input, shape index: {}]
  %s2 = inlined_call_operand.vmem [shape: bf16[3,32,32], index: 2, kind: input, shape index: {}]
  %s3 = inlined_call_operand.vmem [shape: f32[4,1,32], index: 3, kind: input, shape index: {}]
  %s4 = inlined_call_operand.vmem [shape: f32[33,3], index: 4, kind: input, shape index: {}]
  %s5 = inlined_call_operand.hbm [shape: f32[2,3], index: 5, kind: output, shape index: {}]
  %s6 = sld [smem:[#allocation0]]
  $region30: #{gru_model_forward.1} parent=0
    _
  %s8 = ssub.s32 1, %s6
  %s9 = scalar_select 0, %s8, %s6
  $region1: #{gru_model_forward.1} parent=0
    #allocation2 [shape = 'u8[1024]{0}', space=vmem, size = 0x400, scoped, tag = 'output window, operand 0, single buffered']
    #allocation3 [shape = 's32[1]{0}', space=sflag, size = 0x4, scoped, tag = 'scoped memory for gru_model_forward.1']
    %10 = vsyncpa [#allocation3], 0
    // Predicated region
    $region2: #{gru_model_forward.1} parent=1 // pred_check
      _
    $region3: #{gru_model_forward.1} parent=1 // pred_check_branch
      %12 = sbr.rel (0) target = $region5
    $region4: #{gru_model_forward.1} parent=1 // pred_region
      _
    $region5: #{gru_model_forward.1} parent=1 // pred_fallthru
      _
    // Predicated region
    $region6: #{gru_model_forward.1} parent=1 // pred_check
      _
    $region7: #{gru_model_forward.1} parent=1 // pred_check_branch
      %14 = sbr.rel (0) target = $region9
    $region8: #{gru_model_forward.1} parent=1 // pred_region
      _
    $region9: #{gru_model_forward.1} parent=1 // pred_fallthru
      _
    // Predicated region
    $region10: #{gru_model_forward.1} parent=1 // pred_check
      _
    $region11: #{gru_model_forward.1} parent=1 // pred_check_branch
      %16 = sbr.rel (0) target = $region13
    $region12: #{gru_model_forward.1} parent=1 // pred_region
      _
    $region13: #{gru_model_forward.1} parent=1 // pred_fallthru
      _
    // Predicated region
    $region14: #{gru_model_forward.1} parent=1 // pred_check
      _
    $region15: #{gru_model_forward.1} parent=1 // pred_check_branch
      %18 = sbr.rel (0) target = $region17
    $region16: #{gru_model_forward.1} parent=1 // pred_region
      _
    $region17: #{gru_model_forward.1} parent=1 // pred_fallthru
      _
    // Predicated region
    $region18: #{gru_model_forward.1} parent=1 // pred_check
      _
    $region19: #{gru_model_forward.1} parent=1 // pred_check_branch
      %20 = sbr.rel (0) target = $region21
    $region20: #{gru_model_forward.1} parent=1 // pred_region
      _
    $region21: #{gru_model_forward.1} parent=1 // pred_fallthru
      _
    %v22 = vld [vmem:[%s1] sm:$0xf]
    %s23 = scalar_lea.vmem %s1, 4
    %v24 = vld [vmem:[%s23] sm:$0xf]
    %s25 = scalar_lea.vmem %s1, 8
    %v26 = vld [vmem:[%s25] sm:$0xf]
    %v27 = vld [vmem:[%s2] sm:$0xf]
    %v28 = vld [vmem:[%s2 + $0x4] sm:$0xf]
    %v29 = vld [vmem:[%s2 + $0x8] sm:$0xf]
    %v30 = vld [vmem:[%s2 + $0xc] sm:$0xf]
    %s31 = scalar_lea.vmem %s2, 16
    %v32 = vld [vmem:[%s31] sm:$0xf]
    %v33 = vld [vmem:[%s31 + $0x4] sm:$0xf]
    %v34 = vld [vmem:[%s31 + $0x8] sm:$0xf]
    %v35 = vld [vmem:[%s31 + $0xc] sm:$0xf]
    %s36 = scalar_lea.vmem %s2, 32
    %v37 = vld [vmem:[%s36] sm:$0xf]
    %v38 = vld [vmem:[%s36 + $0x4] sm:$0xf]
    %v39 = vld [vmem:[%s36 + $0x8] sm:$0xf]
    %v40 = vld [vmem:[%s36 + $0xc] sm:$0xf]
    %v41 = vld [vmem:[%s3] sm:$0x1]
    %v43 = vlaneseq
    %v44 = vshrl.u32 %v43, 7
    %v45 = vsub.s32 0, %v44
    %v46 = vrot.slane %v41, %v45
    %s48 = scalar_lea.vmem %s3, 1
    %v49 = vld [vmem:[%s48] sm:$0x1]
    %v51 = vlaneseq
    %v52 = vshrl.u32 %v51, 7
    %v53 = vsub.s32 0, %v52
    %v54 = vrot.slane %v49, %v53
    %s56 = scalar_lea.vmem %s3, 2
    %v57 = vld [vmem:[%s56] sm:$0x1]
    %v59 = vlaneseq
    %v60 = vshrl.u32 %v59, 7
    %v61 = vsub.s32 0, %v60
    %v62 = vrot.slane %v57, %v61
    %s64 = scalar_lea.vmem %s3, 3
    %v65 = vld [vmem:[%s64] sm:$0x1]
    %v67 = vlaneseq
    %v68 = vshrl.u32 %v67, 7
    %v69 = vsub.s32 0, %v68
    %v70 = vrot.slane %v65, %v69
    %v72 = vld [vmem:[%s0] sm:$0x3]
    %vm73 = vcmask 31744
    %v75 = vsel %vm73, %v72, 0
    %vm77 = vcmask 1043456
    %v79 = vsel %vm77, %v22, 0
    %81 = vmatprep.subr.mxu0 0.0
    %82 = vmatpush1.msra.mxu0 %v79
    %83 = vmatprep.subr.mxu0 0.0
    %84 = vmatpush1.msra.mxu0 0.0
    %85 = vmatprep.subr.mxu0 0.0
    %86 = vmatpush1.msra.mxu0 0.0
    %87 = vmatprep.subr.mxu0 0.0
    %88 = vmatpush1.msra.mxu0 0.0
    %89 = vmatprep.subr.mxu0 0.0
    %90 = vmatpush1.msra.mxu0 0.0
    %91 = vmatprep.subr.mxu0 0.0
    %92 = vmatpush1.msra.mxu0 0.0
    %93 = vmatprep.subr.mxu0 0.0
    %94 = vmatpush1.msra.mxu0 0.0
    %95 = vmatprep.subr.mxu0 0.0
    %96 = vmatpush1.msra.mxu0 0.0
    %97 = vmatprep.subr.mxu0 0.0
    %98 = vmatpush1.msra.mxu0 0.0
    %99 = vmatprep.subr.mxu0 0.0
    %100 = vmatpush1.msra.mxu0 0.0
    %101 = vmatprep.subr.mxu0 0.0
    %102 = vmatpush1.msra.mxu0 0.0
    %103 = vmatprep.subr.mxu0 0.0
    %104 = vmatpush1.msra.mxu0 0.0
    %105 = vmatprep.subr.mxu0 0.0
    %106 = vmatpush1.msra.mxu0 0.0
    %107 = vmatprep.subr.mxu0 0.0
    %108 = vmatpush1.msra.mxu0 0.0
    %109 = vmatprep.subr.mxu0 0.0
    %110 = vmatpush1.msra.mxu0 0.0
    %111 = vmatprep.subr.mxu0 0.0
    %112 = vmatpush1.msra.mxu0 0.0
    %113 = vmatprep.subr.mxu0 0.0
    %114 = vmatpush1.msra.mxu0 0.0
    %115 = vmatprep.subr.mxu0 0.0
    %116 = vmatpush1.msra.mxu0 0.0
    %117 = vmatprep.subr.mxu0 0.0
    %118 = vmatpush1.msra.mxu0 0.0
    %119 = vmatprep.subr.mxu0 0.0
    %120 = vmatpush1.msra.mxu0 0.0
    %121 = vmatprep.subr.mxu0 0.0
    %122 = vmatpush1.msra.mxu0 0.0
    %123 = vmatprep.subr.mxu0 0.0
    %124 = vmatpush1.msra.mxu0 0.0
    %125 = vmatprep.subr.mxu0 0.0
    %126 = vmatpush1.msra.mxu0 0.0
    %127 = vmatprep.subr.mxu0 0.0
    %128 = vmatpush1.msra.mxu0 0.0
    %129 = vmatprep.subr.mxu0 0.0
    %130 = vmatpush1.msra.mxu0 0.0
    %131 = vmatprep.subr.mxu0 0.0
    %132 = vmatpush1.msra.mxu0 0.0
    %133 = vmatprep.subr.mxu0 0.0
    %134 = vmatpush1.msra.mxu0 0.0
    %135 = vmatprep.subr.mxu0 0.0
    %136 = vmatpush1.msra.mxu0 0.0
    %137 = vmatprep.subr.mxu0 0.0
    %138 = vmatpush1.msra.mxu0 0.0
    %139 = vmatprep.subr.mxu0 0.0
    %140 = vmatpush1.msra.mxu0 0.0
    %141 = vmatprep.subr.mxu0 0.0
    %142 = vmatpush1.msra.mxu0 0.0
    %143 = vmatprep.subr.mxu0 0.0
    %144 = vmatpush1.msra.mxu0 0.0
    %145 = vmatprep.mubr.f32.mxu0 0.0
    %146 = vmatmul.mubr.f32.gmra.mrb[0].mxu0 %v75
    %v147 = vpop.f32.mrb[0].mxu0
    %v148 = vadd.f32 %v46, %v147
    %v149 = vpop.f32.mrb[0].mxu0
    %150 = vdwg.mxu0
    %v152 = vsel %vm77, %v24, 0
    %154 = vmatprep.subr.mxu0 0.0
    %155 = vmatpush1.msra.mxu0 %v152
    %156 = vmatprep.subr.mxu0 0.0
    %157 = vmatpush1.msra.mxu0 0.0
    %158 = vmatprep.subr.mxu0 0.0
    %159 = vmatpush1.msra.mxu0 0.0
    %160 = vmatprep.subr.mxu0 0.0
    %161 = vmatpush1.msra.mxu0 0.0
    %162 = vmatprep.subr.mxu0 0.0
    %163 = vmatpush1.msra.mxu0 0.0
    %164 = vmatprep.subr.mxu0 0.0
    %165 = vmatpush1.msra.mxu0 0.0
    %166 = vmatprep.subr.mxu0 0.0
    %167 = vmatpush1.msra.mxu0 0.0
    %168 = vmatprep.subr.mxu0 0.0
    %169 = vmatpush1.msra.mxu0 0.0
    %170 = vmatprep.subr.mxu0 0.0
    %171 = vmatpush1.msra.mxu0 0.0
    %172 = vmatprep.subr.mxu0 0.0
    %173 = vmatpush1.msra.mxu0 0.0
    %174 = vmatprep.subr.mxu0 0.0
    %175 = vmatpush1.msra.mxu0 0.0
    %176 = vmatprep.subr.mxu0 0.0
    %177 = vmatpush1.msra.mxu0 0.0
    %178 = vmatprep.subr.mxu0 0.0
    %179 = vmatpush1.msra.mxu0 0.0
    %180 = vmatprep.subr.mxu0 0.0
    %181 = vmatpush1.msra.mxu0 0.0
    %182 = vmatprep.subr.mxu0 0.0
    %183 = vmatpush1.msra.mxu0 0.0
    %184 = vmatprep.subr.mxu0 0.0
    %185 = vmatpush1.msra.mxu0 0.0
    %186 = vmatprep.subr.mxu0 0.0
    %187 = vmatpush1.msra.mxu0 0.0
    %188 = vmatprep.subr.mxu0 0.0
    %189 = vmatpush1.msra.mxu0 0.0
    %190 = vmatprep.subr.mxu0 0.0
    %191 = vmatpush1.msra.mxu0 0.0
    %192 = vmatprep.subr.mxu0 0.0
    %193 = vmatpush1.msra.mxu0 0.0
    %194 = vmatprep.subr.mxu0 0.0
    %195 = vmatpush1.msra.mxu0 0.0
    %196 = vmatprep.subr.mxu0 0.0
    %197 = vmatpush1.msra.mxu0 0.0
    %198 = vmatprep.subr.mxu0 0.0
    %199 = vmatpush1.msra.mxu0 0.0
    %200 = vmatprep.subr.mxu0 0.0
    %201 = vmatpush1.msra.mxu0 0.0
    %202 = vmatprep.subr.mxu0 0.0
    %203 = vmatpush1.msra.mxu0 0.0
    %204 = vmatprep.subr.mxu0 0.0
    %205 = vmatpush1.msra.mxu0 0.0
    %206 = vmatprep.subr.mxu0 0.0
    %207 = vmatpush1.msra.mxu0 0.0
    %208 = vmatprep.subr.mxu0 0.0
    %209 = vmatpush1.msra.mxu0 0.0
    %210 = vmatprep.subr.mxu0 0.0
    %211 = vmatpush1.msra.mxu0 0.0
    %212 = vmatprep.subr.mxu0 0.0
    %213 = vmatpush1.msra.mxu0 0.0
    %214 = vmatprep.subr.mxu0 0.0
    %215 = vmatpush1.msra.mxu0 0.0
    %216 = vmatprep.subr.mxu0 0.0
    %217 = vmatpush1.msra.mxu0 0.0
    %218 = vmatprep.mubr.f32.mxu0 0.0
    %219 = vmatmul.mubr.f32.gmra.mrb[0].mxu0 %v75
    %v220 = vpop.f32.mrb[0].mxu0
    %v221 = vadd.f32 %v54, %v220
    %v222 = vpop.f32.mrb[0].mxu0
    %223 = vdwg.mxu0
    %v225 = vsel %vm77, %v26, 0
    %227 = vmatprep.subr.mxu0 0.0
    %228 = vmatpush1.msra.mxu0 %v225
    %229 = vmatprep.subr.mxu0 0.0
    %230 = vmatpush1.msra.mxu0 0.0
    %231 = vmatprep.subr.mxu0 0.0
    %232 = vmatpush1.msra.mxu0 0.0
    %233 = vmatprep.subr.mxu0 0.0
    %234 = vmatpush1.msra.mxu0 0.0
    %235 = vmatprep.subr.mxu0 0.0
    %236 = vmatpush1.msra.mxu0 0.0
    %237 = vmatprep.subr.mxu0 0.0
    %238 = vmatpush1.msra.mxu0 0.0
    %239 = vmatprep.subr.mxu0 0.0
    %240 = vmatpush1.msra.mxu0 0.0
    %241 = vmatprep.subr.mxu0 0.0
    %242 = vmatpush1.msra.mxu0 0.0
    %243 = vmatprep.subr.mxu0 0.0
    %244 = vmatpush1.msra.mxu0 0.0
    %245 = vmatprep.subr.mxu0 0.0
    %246 = vmatpush1.msra.mxu0 0.0
    %247 = vmatprep.subr.mxu0 0.0
    %248 = vmatpush1.msra.mxu0 0.0
    %249 = vmatprep.subr.mxu0 0.0
    %250 = vmatpush1.msra.mxu0 0.0
    %251 = vmatprep.subr.mxu0 0.0
    %252 = vmatpush1.msra.mxu0 0.0
    %253 = vmatprep.subr.mxu0 0.0
    %254 = vmatpush1.msra.mxu0 0.0
    %255 = vmatprep.subr.mxu0 0.0
    %256 = vmatpush1.msra.mxu0 0.0
    %257 = vmatprep.subr.mxu0 0.0
    %258 = vmatpush1.msra.mxu0 0.0
    %259 = vmatprep.subr.mxu0 0.0
    %260 = vmatpush1.msra.mxu0 0.0
    %261 = vmatprep.subr.mxu0 0.0
    %262 = vmatpush1.msra.mxu0 0.0
    %263 = vmatprep.subr.mxu0 0.0
    %264 = vmatpush1.msra.mxu0 0.0
    %265 = vmatprep.subr.mxu0 0.0
    %266 = vmatpush1.msra.mxu0 0.0
    %267 = vmatprep.subr.mxu0 0.0
    %268 = vmatpush1.msra.mxu0 0.0
    %269 = vmatprep.subr.mxu0 0.0
    %270 = vmatpush1.msra.mxu0 0.0
    %271 = vmatprep.subr.mxu0 0.0
    %272 = vmatpush1.msra.mxu0 0.0
    %273 = vmatprep.subr.mxu0 0.0
    %274 = vmatpush1.msra.mxu0 0.0
    %275 = vmatprep.subr.mxu0 0.0
    %276 = vmatpush1.msra.mxu0 0.0
    %277 = vmatprep.subr.mxu0 0.0
    %278 = vmatpush1.msra.mxu0 0.0
    %279 = vmatprep.subr.mxu0 0.0
    %280 = vmatpush1.msra.mxu0 0.0
    %281 = vmatprep.subr.mxu0 0.0
    %282 = vmatpush1.msra.mxu0 0.0
    %283 = vmatprep.subr.mxu0 0.0
    %284 = vmatpush1.msra.mxu0 0.0
    %285 = vmatprep.subr.mxu0 0.0
    %286 = vmatpush1.msra.mxu0 0.0
    %287 = vmatprep.subr.mxu0 0.0
    %288 = vmatpush1.msra.mxu0 0.0
    %289 = vmatprep.subr.mxu0 0.0
    %290 = vmatpush1.msra.mxu0 0.0
    %291 = vmatprep.mubr.f32.mxu0 0.0
    %292 = vmatmul.mubr.f32.gmra.mrb[0].mxu0 %v75
    %v293 = vpop.f32.mrb[0].mxu0
    %v294 = vadd.f32 %v62, %v293
    %v295 = vpop.f32.mrb[0].mxu0
    %296 = vdwg.mxu0
    %v301 = vunpack.c.l.b16 %v27
    %v302 = vunpack.c.l.b16 %v28
    %v303 = vunpack.c.l.b16 %v29
    %v304 = vunpack.c.l.b16 %v30
    %v305 = vpack.c.b16 %v302, %v301
    %v306 = vpack.c.b16 %v304, %v303
    %vm309 = vcmask 261120
    %v311 = vsel %vm309, 0, 0
    %313 = vmatprep.subr.bf16.mxu0 0
    %314 = vmatpush1.bf16.msra.mxu0 %v305
    %315 = vmatprep.subr.bf16.mxu0 0
    %316 = vmatpush1.bf16.msra.mxu0 %v306
    %317 = vmatprep.subr.bf16.mxu0 0
    %318 = vmatpush1.bf16.msra.mxu0 0
    %319 = vmatprep.subr.bf16.mxu0 0
    %320 = vmatpush1.bf16.msra.mxu0 0
    %321 = vmatprep.subr.bf16.mxu0 0
    %322 = vmatpush1.bf16.msra.mxu0 0
    %323 = vmatprep.subr.bf16.mxu0 0
    %324 = vmatpush1.bf16.msra.mxu0 0
    %325 = vmatprep.subr.bf16.mxu0 0
    %326 = vmatpush1.bf16.msra.mxu0 0
    %327 = vmatprep.subr.bf16.mxu0 0
    %328 = vmatpush1.bf16.msra.mxu0 0
    %329 = vmatprep.subr.bf16.mxu0 0
    %330 = vmatpush1.bf16.msra.mxu0 0
    %331 = vmatprep.subr.bf16.mxu0 0
    %332 = vmatpush1.bf16.msra.mxu0 0
    %333 = vmatprep.subr.bf16.mxu0 0
    %334 = vmatpush1.bf16.msra.mxu0 0
    %335 = vmatprep.subr.bf16.mxu0 0
    %336 = vmatpush1.bf16.msra.mxu0 0
    %337 = vmatprep.subr.bf16.mxu0 0
    %338 = vmatpush1.bf16.msra.mxu0 0
    %339 = vmatprep.subr.bf16.mxu0 0
    %340 = vmatpush1.bf16.msra.mxu0 0
    %341 = vmatprep.subr.bf16.mxu0 0
    %342 = vmatpush1.bf16.msra.mxu0 0
    %343 = vmatprep.subr.bf16.mxu0 0
    %344 = vmatpush1.bf16.msra.mxu0 0
    %345 = vmatprep.mubr.bf16.mxu0 0
    %346 = vmatmul.mubr.bf16.gmra.mrb[0].mxu0 %v311
    %v347 = vpop.f32.mrb[0].mxu0
    %v348 = vadd.f32 0.0, %v347
    %v349 = vpop.f32.mrb[0].mxu0
    %v350 = vpop.f32.mrb[0].mxu0
    %v351 = vpop.f32.mrb[0].mxu0
    %352 = vdwg.mxu0
    %v357 = vunpack.c.l.b16 %v32
    %v358 = vunpack.c.l.b16 %v33
    %v359 = vunpack.c.l.b16 %v34
    %v360 = vunpack.c.l.b16 %v35
    %v361 = vpack.c.b16 %v358, %v357
    %v362 = vpack.c.b16 %v360, %v359
    %365 = vmatprep.subr.bf16.mxu0 0
    %366 = vmatpush1.bf16.msra.mxu0 %v361
    %367 = vmatprep.subr.bf16.mxu0 0
    %368 = vmatpush1.bf16.msra.mxu0 %v362
    %369 = vmatprep.subr.bf16.mxu0 0
    %370 = vmatpush1.bf16.msra.mxu0 0
    %371 = vmatprep.subr.bf16.mxu0 0
    %372 = vmatpush1.bf16.msra.mxu0 0
    %373 = vmatprep.subr.bf16.mxu0 0
    %374 = vmatpush1.bf16.msra.mxu0 0
    %375 = vmatprep.subr.bf16.mxu0 0
    %376 = vmatpush1.bf16.msra.mxu0 0
    %377 = vmatprep.subr.bf16.mxu0 0
    %378 = vmatpush1.bf16.msra.mxu0 0
    %379 = vmatprep.subr.bf16.mxu0 0
    %380 = vmatpush1.bf16.msra.mxu0 0
    %381 = vmatprep.subr.bf16.mxu0 0
    %382 = vmatpush1.bf16.msra.mxu0 0
    %383 = vmatprep.subr.bf16.mxu0 0
    %384 = vmatpush1.bf16.msra.mxu0 0
    %385 = vmatprep.subr.bf16.mxu0 0
    %386 = vmatpush1.bf16.msra.mxu0 0
    %387 = vmatprep.subr.bf16.mxu0 0
    %388 = vmatpush1.bf16.msra.mxu0 0
    %389 = vmatprep.subr.bf16.mxu0 0
    %390 = vmatpush1.bf16.msra.mxu0 0
    %391 = vmatprep.subr.bf16.mxu0 0
    %392 = vmatpush1.bf16.msra.mxu0 0
    %393 = vmatprep.subr.bf16.mxu0 0
    %394 = vmatpush1.bf16.msra.mxu0 0
    %395 = vmatprep.subr.bf16.mxu0 0
    %396 = vmatpush1.bf16.msra.mxu0 0
    %397 = vmatprep.mubr.bf16.mxu0 0
    %398 = vmatmul.mubr.bf16.gmra.mrb[0].mxu0 %v311
    %v399 = vpop.f32.mrb[0].mxu0
    %v400 = vadd.f32 0.0, %v399
    %v401 = vpop.f32.mrb[0].mxu0
    %v402 = vpop.f32.mrb[0].mxu0
    %v403 = vpop.f32.mrb[0].mxu0
    %404 = vdwg.mxu0
    %v405 = vadd.f32 %v148, %v348
    %v406 = vxor.u32 %v405, 2147483648
    %v407 = vmul.f32 %v406, 1.442695
    %v408 = vpow.pop %v407
    %v409 = vadd.f32 %v408, 1.0
    %v410 = vrcp.pop %v409
    %v411 = vmul.f32 1.0, %v410
    %v412 = vadd.f32 %v221, %v400
    %v413 = vxor.u32 %v412, 2147483648
    %v414 = vmul.f32 %v413, 1.442695
    %v415 = vpow.pop %v414
    %v416 = vadd.f32 %v415, 1.0
    %v417 = vrcp.pop %v416
    %v418 = vmul.f32 1.0, %v417
    %v423 = vunpack.c.l.b16 %v37
    %v424 = vunpack.c.l.b16 %v38
    %v425 = vunpack.c.l.b16 %v39
    %v426 = vunpack.c.l.b16 %v40
    %v427 = vpack.c.b16 %v424, %v423
    %v428 = vpack.c.b16 %v426, %v425
    %431 = vmatprep.subr.bf16.mxu0 0
    %432 = vmatpush1.bf16.msra.mxu0 %v427
    %433 = vmatprep.subr.bf16.mxu0 0
    %434 = vmatpush1.bf16.msra.mxu0 %v428
    %435 = vmatprep.subr.bf16.mxu0 0
    %436 = vmatpush1.bf16.msra.mxu0 0
    %437 = vmatprep.subr.bf16.mxu0 0
    %438 = vmatpush1.bf16.msra.mxu0 0
    %439 = vmatprep.subr.bf16.mxu0 0
    %440 = vmatpush1.bf16.msra.mxu0 0
    %441 = vmatprep.subr.bf16.mxu0 0
    %442 = vmatpush1.bf16.msra.mxu0 0
    %443 = vmatprep.subr.bf16.mxu0 0
    %444 = vmatpush1.bf16.msra.mxu0 0
    %445 = vmatprep.subr.bf16.mxu0 0
    %446 = vmatpush1.bf16.msra.mxu0 0
    %447 = vmatprep.subr.bf16.mxu0 0
    %448 = vmatpush1.bf16.msra.mxu0 0
    %449 = vmatprep.subr.bf16.mxu0 0
    %450 = vmatpush1.bf16.msra.mxu0 0
    %451 = vmatprep.subr.bf16.mxu0 0
    %452 = vmatpush1.bf16.msra.mxu0 0
    %453 = vmatprep.subr.bf16.mxu0 0
    %454 = vmatpush1.bf16.msra.mxu0 0
    %455 = vmatprep.subr.bf16.mxu0 0
    %456 = vmatpush1.bf16.msra.mxu0 0
    %457 = vmatprep.subr.bf16.mxu0 0
    %458 = vmatpush1.bf16.msra.mxu0 0
    %459 = vmatprep.subr.bf16.mxu0 0
    %460 = vmatpush1.bf16.msra.mxu0 0
    %461 = vmatprep.subr.bf16.mxu0 0
    %462 = vmatpush1.bf16.msra.mxu0 0
    %463 = vmatprep.mubr.bf16.mxu0 0
    %464 = vmatmul.mubr.bf16.gmra.mrb[0].mxu0 %v311
    %v465 = vpop.f32.mrb[0].mxu0
    %v466 = vadd.f32 %v70, %v465
    %v467 = vpop.f32.mrb[0].mxu0
    %v468 = vpop.f32.mrb[0].mxu0
    %v469 = vpop.f32.mrb[0].mxu0
    %470 = vdwg.mxu0
    %v471 = vmul.f32 %v411, %v466
    %v472 = vadd.f32 %v294, %v471
    %v473 = vtanh.pop %v472
    %v474 = vsub.f32 0.0, %v473
    %v475 = vmul.f32 %v418, %v474
    %v476 = vadd.f32 %v473, %v475
    %s477 = scalar_lea.vmem %s0, 2
    %v478 = vld [vmem:[%s477] sm:$0x3]
    %v480 = vsel %vm73, %v478, 0
    %482 = vmatprep.subr.mxu0 0.0
    %483 = vmatpush1.msra.mxu0 %v79
    %484 = vmatprep.subr.mxu0 0.0
    %485 = vmatpush1.msra.mxu0 0.0
    %486 = vmatprep.subr.mxu0 0.0
    %487 = vmatpush1.msra.mxu0 0.0
    %488 = vmatprep.subr.mxu0 0.0
    %489 = vmatpush1.msra.mxu0 0.0
    %490 = vmatprep.subr.mxu0 0.0
    %491 = vmatpush1.msra.mxu0 0.0
    %492 = vmatprep.subr.mxu0 0.0
    %493 = vmatpush1.msra.mxu0 0.0
    %494 = vmatprep.subr.mxu0 0.0
    %495 = vmatpush1.msra.mxu0 0.0
    %496 = vmatprep.subr.mxu0 0.0
    %497 = vmatpush1.msra.mxu0 0.0
    %498 = vmatprep.subr.mxu0 0.0
    %499 = vmatpush1.msra.mxu0 0.0
    %500 = vmatprep.subr.mxu0 0.0
    %501 = vmatpush1.msra.mxu0 0.0
    %502 = vmatprep.subr.mxu0 0.0
    %503 = vmatpush1.msra.mxu0 0.0
    %504 = vmatprep.subr.mxu0 0.0
    %505 = vmatpush1.msra.mxu0 0.0
    %506 = vmatprep.subr.mxu0 0.0
    %507 = vmatpush1.msra.mxu0 0.0
    %508 = vmatprep.subr.mxu0 0.0
    %509 = vmatpush1.msra.mxu0 0.0
    %510 = vmatprep.subr.mxu0 0.0
    %511 = vmatpush1.msra.mxu0 0.0
    %512 = vmatprep.subr.mxu0 0.0
    %513 = vmatpush1.msra.mxu0 0.0
    %514 = vmatprep.subr.mxu0 0.0
    %515 = vmatpush1.msra.mxu0 0.0
    %516 = vmatprep.subr.mxu0 0.0
    %517 = vmatpush1.msra.mxu0 0.0
    %518 = vmatprep.subr.mxu0 0.0
    %519 = vmatpush1.msra.mxu0 0.0
    %520 = vmatprep.subr.mxu0 0.0
    %521 = vmatpush1.msra.mxu0 0.0
    %522 = vmatprep.subr.mxu0 0.0
    %523 = vmatpush1.msra.mxu0 0.0
    %524 = vmatprep.subr.mxu0 0.0
    %525 = vmatpush1.msra.mxu0 0.0
    %526 = vmatprep.subr.mxu0 0.0
    %527 = vmatpush1.msra.mxu0 0.0
    %528 = vmatprep.subr.mxu0 0.0
    %529 = vmatpush1.msra.mxu0 0.0
    %530 = vmatprep.subr.mxu0 0.0
    %531 = vmatpush1.msra.mxu0 0.0
    %532 = vmatprep.subr.mxu0 0.0
    %533 = vmatpush1.msra.mxu0 0.0
    %534 = vmatprep.subr.mxu0 0.0
    %535 = vmatpush1.msra.mxu0 0.0
    %536 = vmatprep.subr.mxu0 0.0
    %537 = vmatpush1.msra.mxu0 0.0
    %538 = vmatprep.subr.mxu0 0.0
    %539 = vmatpush1.msra.mxu0 0.0
    %540 = vmatprep.subr.mxu0 0.0
    %541 = vmatpush1.msra.mxu0 0.0
    %542 = vmatprep.subr.mxu0 0.0
    %543 = vmatpush1.msra.mxu0 0.0
    %544 = vmatprep.subr.mxu0 0.0
    %545 = vmatpush1.msra.mxu0 0.0
    %546 = vmatprep.mubr.f32.mxu0 0.0
    %547 = vmatmul.mubr.f32.gmra.mrb[0].mxu0 %v480
    %v548 = vpop.f32.mrb[0].mxu0
    %v549 = vadd.f32 %v46, %v548
    %v550 = vpop.f32.mrb[0].mxu0
    %551 = vdwg.mxu0
    %552 = vmatprep.subr.mxu0 0.0
    %553 = vmatpush1.msra.mxu0 %v152
    %554 = vmatprep.subr.mxu0 0.0
    %555 = vmatpush1.msra.mxu0 0.0
    %556 = vmatprep.subr.mxu0 0.0
    %557 = vmatpush1.msra.mxu0 0.0
    %558 = vmatprep.subr.mxu0 0.0
    %559 = vmatpush1.msra.mxu0 0.0
    %560 = vmatprep.subr.mxu0 0.0
    %561 = vmatpush1.msra.mxu0 0.0
    %562 = vmatprep.subr.mxu0 0.0
    %563 = vmatpush1.msra.mxu0 0.0
    %564 = vmatprep.subr.mxu0 0.0
    %565 = vmatpush1.msra.mxu0 0.0
    %566 = vmatprep.subr.mxu0 0.0
    %567 = vmatpush1.msra.mxu0 0.0
    %568 = vmatprep.subr.mxu0 0.0
    %569 = vmatpush1.msra.mxu0 0.0
    %570 = vmatprep.subr.mxu0 0.0
    %571 = vmatpush1.msra.mxu0 0.0
    %572 = vmatprep.subr.mxu0 0.0
    %573 = vmatpush1.msra.mxu0 0.0
    %574 = vmatprep.subr.mxu0 0.0
    %575 = vmatpush1.msra.mxu0 0.0
    %576 = vmatprep.subr.mxu0 0.0
    %577 = vmatpush1.msra.mxu0 0.0
    %578 = vmatprep.subr.mxu0 0.0
    %579 = vmatpush1.msra.mxu0 0.0
    %580 = vmatprep.subr.mxu0 0.0
    %581 = vmatpush1.msra.mxu0 0.0
    %582 = vmatprep.subr.mxu0 0.0
    %583 = vmatpush1.msra.mxu0 0.0
    %584 = vmatprep.subr.mxu0 0.0
    %585 = vmatpush1.msra.mxu0 0.0
    %586 = vmatprep.subr.mxu0 0.0
    %587 = vmatpush1.msra.mxu0 0.0
    %588 = vmatprep.subr.mxu0 0.0
    %589 = vmatpush1.msra.mxu0 0.0
    %590 = vmatprep.subr.mxu0 0.0
    %591 = vmatpush1.msra.mxu0 0.0
    %592 = vmatprep.subr.mxu0 0.0
    %593 = vmatpush1.msra.mxu0 0.0
    %594 = vmatprep.subr.mxu0 0.0
    %595 = vmatpush1.msra.mxu0 0.0
    %596 = vmatprep.subr.mxu0 0.0
    %597 = vmatpush1.msra.mxu0 0.0
    %598 = vmatprep.subr.mxu0 0.0
    %599 = vmatpush1.msra.mxu0 0.0
    %600 = vmatprep.subr.mxu0 0.0
    %601 = vmatpush1.msra.mxu0 0.0
    %602 = vmatprep.subr.mxu0 0.0
    %603 = vmatpush1.msra.mxu0 0.0
    %604 = vmatprep.subr.mxu0 0.0
    %605 = vmatpush1.msra.mxu0 0.0
    %606 = vmatprep.subr.mxu0 0.0
    %607 = vmatpush1.msra.mxu0 0.0
    %608 = vmatprep.subr.mxu0 0.0
    %609 = vmatpush1.msra.mxu0 0.0
    %610 = vmatprep.subr.mxu0 0.0
    %611 = vmatpush1.msra.mxu0 0.0
    %612 = vmatprep.subr.mxu0 0.0
    %613 = vmatpush1.msra.mxu0 0.0
    %614 = vmatprep.subr.mxu0 0.0
    %615 = vmatpush1.msra.mxu0 0.0
    %616 = vmatprep.mubr.f32.mxu0 0.0
    %617 = vmatmul.mubr.f32.gmra.mrb[0].mxu0 %v480
    %v618 = vpop.f32.mrb[0].mxu0
    %v619 = vadd.f32 %v54, %v618
    %v620 = vpop.f32.mrb[0].mxu0
    %621 = vdwg.mxu0
    %622 = vmatprep.subr.mxu0 0.0
    %623 = vmatpush1.msra.mxu0 %v225
    %624 = vmatprep.subr.mxu0 0.0
    %625 = vmatpush1.msra.mxu0 0.0
    %626 = vmatprep.subr.mxu0 0.0
    %627 = vmatpush1.msra.mxu0 0.0
    %628 = vmatprep.subr.mxu0 0.0
    %629 = vmatpush1.msra.mxu0 0.0
    %630 = vmatprep.subr.mxu0 0.0
    %631 = vmatpush1.msra.mxu0 0.0
    %632 = vmatprep.subr.mxu0 0.0
    %633 = vmatpush1.msra.mxu0 0.0
    %634 = vmatprep.subr.mxu0 0.0
    %635 = vmatpush1.msra.mxu0 0.0
    %636 = vmatprep.subr.mxu0 0.0
    %637 = vmatpush1.msra.mxu0 0.0
    %638 = vmatprep.subr.mxu0 0.0
    %639 = vmatpush1.msra.mxu0 0.0
    %640 = vmatprep.subr.mxu0 0.0
    %641 = vmatpush1.msra.mxu0 0.0
    %642 = vmatprep.subr.mxu0 0.0
    %643 = vmatpush1.msra.mxu0 0.0
    %644 = vmatprep.subr.mxu0 0.0
    %645 = vmatpush1.msra.mxu0 0.0
    %646 = vmatprep.subr.mxu0 0.0
    %647 = vmatpush1.msra.mxu0 0.0
    %648 = vmatprep.subr.mxu0 0.0
    %649 = vmatpush1.msra.mxu0 0.0
    %650 = vmatprep.subr.mxu0 0.0
    %651 = vmatpush1.msra.mxu0 0.0
    %652 = vmatprep.subr.mxu0 0.0
    %653 = vmatpush1.msra.mxu0 0.0
    %654 = vmatprep.subr.mxu0 0.0
    %655 = vmatpush1.msra.mxu0 0.0
    %656 = vmatprep.subr.mxu0 0.0
    %657 = vmatpush1.msra.mxu0 0.0
    %658 = vmatprep.subr.mxu0 0.0
    %659 = vmatpush1.msra.mxu0 0.0
    %660 = vmatprep.subr.mxu0 0.0
    %661 = vmatpush1.msra.mxu0 0.0
    %662 = vmatprep.subr.mxu0 0.0
    %663 = vmatpush1.msra.mxu0 0.0
    %664 = vmatprep.subr.mxu0 0.0
    %665 = vmatpush1.msra.mxu0 0.0
    %666 = vmatprep.subr.mxu0 0.0
    %667 = vmatpush1.msra.mxu0 0.0
    %668 = vmatprep.subr.mxu0 0.0
    %669 = vmatpush1.msra.mxu0 0.0
    %670 = vmatprep.subr.mxu0 0.0
    %671 = vmatpush1.msra.mxu0 0.0
    %672 = vmatprep.subr.mxu0 0.0
    %673 = vmatpush1.msra.mxu0 0.0
    %674 = vmatprep.subr.mxu0 0.0
    %675 = vmatpush1.msra.mxu0 0.0
    %676 = vmatprep.subr.mxu0 0.0
    %677 = vmatpush1.msra.mxu0 0.0
    %678 = vmatprep.subr.mxu0 0.0
    %679 = vmatpush1.msra.mxu0 0.0
    %680 = vmatprep.subr.mxu0 0.0
    %681 = vmatpush1.msra.mxu0 0.0
    %682 = vmatprep.subr.mxu0 0.0
    %683 = vmatpush1.msra.mxu0 0.0
    %684 = vmatprep.subr.mxu0 0.0
    %685 = vmatpush1.msra.mxu0 0.0
    %686 = vmatprep.mubr.f32.mxu0 0.0
    %687 = vmatmul.mubr.f32.gmra.mrb[0].mxu0 %v480
    %v688 = vpop.f32.mrb[0].mxu0
    %v689 = vadd.f32 %v62, %v688
    %v690 = vpop.f32.mrb[0].mxu0
    %691 = vdwg.mxu0
    %v692 = vpack.c.bf16 %v476, %v476
    %v694 = vsel %vm309, %v692, 0
    %696 = vmatprep.subr.bf16.mxu0 0
    %697 = vmatpush1.bf16.msra.mxu0 %v305
    %698 = vmatprep.subr.bf16.mxu0 0
    %699 = vmatpush1.bf16.msra.mxu0 %v306
    %700 = vmatprep.subr.bf16.mxu0 0
    %701 = vmatpush1.bf16.msra.mxu0 0
    %702 = vmatprep.subr.bf16.mxu0 0
    %703 = vmatpush1.bf16.msra.mxu0 0
    %704 = vmatprep.subr.bf16.mxu0 0
    %705 = vmatpush1.bf16.msra.mxu0 0
    %706 = vmatprep.subr.bf16.mxu0 0
    %707 = vmatpush1.bf16.msra.mxu0 0
    %708 = vmatprep.subr.bf16.mxu0 0
    %709 = vmatpush1.bf16.msra.mxu0 0
    %710 = vmatprep.subr.bf16.mxu0 0
    %711 = vmatpush1.bf16.msra.mxu0 0
    %712 = vmatprep.subr.bf16.mxu0 0
    %713 = vmatpush1.bf16.msra.mxu0 0
    %714 = vmatprep.subr.bf16.mxu0 0
    %715 = vmatpush1.bf16.msra.mxu0 0
    %716 = vmatprep.subr.bf16.mxu0 0
    %717 = vmatpush1.bf16.msra.mxu0 0
    %718 = vmatprep.subr.bf16.mxu0 0
    %719 = vmatpush1.bf16.msra.mxu0 0
    %720 = vmatprep.subr.bf16.mxu0 0
    %721 = vmatpush1.bf16.msra.mxu0 0
    %722 = vmatprep.subr.bf16.mxu0 0
    %723 = vmatpush1.bf16.msra.mxu0 0
    %724 = vmatprep.subr.bf16.mxu0 0
    %725 = vmatpush1.bf16.msra.mxu0 0
    %726 = vmatprep.subr.bf16.mxu0 0
    %727 = vmatpush1.bf16.msra.mxu0 0
    %728 = vmatprep.mubr.bf16.mxu0 0
    %729 = vmatmul.mubr.bf16.gmra.mrb[0].mxu0 %v694
    %v730 = vpop.f32.mrb[0].mxu0
    %v731 = vadd.f32 0.0, %v730
    %v732 = vpop.f32.mrb[0].mxu0
    %v733 = vpop.f32.mrb[0].mxu0
    %v734 = vpop.f32.mrb[0].mxu0
    %735 = vdwg.mxu0
    %736 = vmatprep.subr.bf16.mxu0 0
    %737 = vmatpush1.bf16.msra.mxu0 %v361
    %738 = vmatprep.subr.bf16.mxu0 0
    %739 = vmatpush1.bf16.msra.mxu0 %v362
    %740 = vmatprep.subr.bf16.mxu0 0
    %741 = vmatpush1.bf16.msra.mxu0 0
    %742 = vmatprep.subr.bf16.mxu0 0
    %743 = vmatpush1.bf16.msra.mxu0 0
    %744 = vmatprep.subr.bf16.mxu0 0
    %745 = vmatpush1.bf16.msra.mxu0 0
    %746 = vmatprep.subr.bf16.mxu0 0
    %747 = vmatpush1.bf16.msra.mxu0 0
    %748 = vmatprep.subr.bf16.mxu0 0
    %749 = vmatpush1.bf16.msra.mxu0 0
    %750 = vmatprep.subr.bf16.mxu0 0
    %751 = vmatpush1.bf16.msra.mxu0 0
    %752 = vmatprep.subr.bf16.mxu0 0
    %753 = vmatpush1.bf16.msra.mxu0 0
    %754 = vmatprep.subr.bf16.mxu0 0
    %755 = vmatpush1.bf16.msra.mxu0 0
    %756 = vmatprep.subr.bf16.mxu0 0
    %757 = vmatpush1.bf16.msra.mxu0 0
    %758 = vmatprep.subr.bf16.mxu0 0
    %759 = vmatpush1.bf16.msra.mxu0 0
    %760 = vmatprep.subr.bf16.mxu0 0
    %761 = vmatpush1.bf16.msra.mxu0 0
    %762 = vmatprep.subr.bf16.mxu0 0
    %763 = vmatpush1.bf16.msra.mxu0 0
    %764 = vmatprep.subr.bf16.mxu0 0
    %765 = vmatpush1.bf16.msra.mxu0 0
    %766 = vmatprep.subr.bf16.mxu0 0
    %767 = vmatpush1.bf16.msra.mxu0 0
    %768 = vmatprep.mubr.bf16.mxu0 0
    %769 = vmatmul.mubr.bf16.gmra.mrb[0].mxu0 %v694
    %v770 = vpop.f32.mrb[0].mxu0
    %v771 = vadd.f32 0.0, %v770
    %v772 = vpop.f32.mrb[0].mxu0
    %v773 = vpop.f32.mrb[0].mxu0
    %v774 = vpop.f32.mrb[0].mxu0
    %775 = vdwg.mxu0
    %v776 = vadd.f32 %v549, %v731
    %v777 = vxor.u32 %v776, 2147483648
    %v778 = vmul.f32 %v777, 1.442695
    %v779 = vpow.pop %v778
    %v780 = vadd.f32 %v779, 1.0
    %v781 = vrcp.pop %v780
    %v782 = vmul.f32 1.0, %v781
    %v783 = vadd.f32 %v619, %v771
    %v784 = vxor.u32 %v783, 2147483648
    %v785 = vmul.f32 %v784, 1.442695
    %v786 = vpow.pop %v785
    %v787 = vadd.f32 %v786, 1.0
    %v788 = vrcp.pop %v787
    %v789 = vmul.f32 1.0, %v788
    %790 = vmatprep.subr.bf16.mxu0 0
    %791 = vmatpush1.bf16.msra.mxu0 %v427
    %792 = vmatprep.subr.bf16.mxu0 0
    %793 = vmatpush1.bf16.msra.mxu0 %v428
    %794 = vmatprep.subr.bf16.mxu0 0
    %795 = vmatpush1.bf16.msra.mxu0 0
    %796 = vmatprep.subr.bf16.mxu0 0
    %797 = vmatpush1.bf16.msra.mxu0 0
    %798 = vmatprep.subr.bf16.mxu0 0
    %799 = vmatpush1.bf16.msra.mxu0 0
    %800 = vmatprep.subr.bf16.mxu0 0
    %801 = vmatpush1.bf16.msra.mxu0 0
    %802 = vmatprep.subr.bf16.mxu0 0
    %803 = vmatpush1.bf16.msra.mxu0 0
    %804 = vmatprep.subr.bf16.mxu0 0
    %805 = vmatpush1.bf16.msra.mxu0 0
    %806 = vmatprep.subr.bf16.mxu0 0
    %807 = vmatpush1.bf16.msra.mxu0 0
    %808 = vmatprep.subr.bf16.mxu0 0
    %809 = vmatpush1.bf16.msra.mxu0 0
    %810 = vmatprep.subr.bf16.mxu0 0
    %811 = vmatpush1.bf16.msra.mxu0 0
    %812 = vmatprep.subr.bf16.mxu0 0
    %813 = vmatpush1.bf16.msra.mxu0 0
    %814 = vmatprep.subr.bf16.mxu0 0
    %815 = vmatpush1.bf16.msra.mxu0 0
    %816 = vmatprep.subr.bf16.mxu0 0
    %817 = vmatpush1.bf16.msra.mxu0 0
    %818 = vmatprep.subr.bf16.mxu0 0
    %819 = vmatpush1.bf16.msra.mxu0 0
    %820 = vmatprep.subr.bf16.mxu0 0
    %821 = vmatpush1.bf16.msra.mxu0 0
    %822 = vmatprep.mubr.bf16.mxu0 0
    %823 = vmatmul.mubr.bf16.gmra.mrb[0].mxu0 %v694
    %v824 = vpop.f32.mrb[0].mxu0
    %v825 = vadd.f32 %v70, %v824
    %v826 = vpop.f32.mrb[0].mxu0
    %v827 = vpop.f32.mrb[0].mxu0
    %v828 = vpop.f32.mrb[0].mxu0
    %829 = vdwg.mxu0
    %v830 = vmul.f32 %v782, %v825
    %v831 = vadd.f32 %v689, %v830
    %v832 = vtanh.pop %v831
    %v833 = vsub.f32 %v476, %v832
    %v834 = vmul.f32 %v789, %v833
    %v835 = vadd.f32 %v832, %v834
    %s836 = scalar_lea.vmem %s0, 4
    %v837 = vld [vmem:[%s836] sm:$0x3]
    %v839 = vsel %vm73, %v837, 0
    %841 = vmatprep.subr.mxu0 0.0
    %842 = vmatpush1.msra.mxu0 %v79
    %843 = vmatprep.subr.mxu0 0.0
    %844 = vmatpush1.msra.mxu0 0.0
    %845 = vmatprep.subr.mxu0 0.0
    %846 = vmatpush1.msra.mxu0 0.0
    %847 = vmatprep.subr.mxu0 0.0
    %848 = vmatpush1.msra.mxu0 0.0
    %849 = vmatprep.subr.mxu0 0.0
    %850 = vmatpush1.msra.mxu0 0.0
    %851 = vmatprep.subr.mxu0 0.0
    %852 = vmatpush1.msra.mxu0 0.0
    %853 = vmatprep.subr.mxu0 0.0
    %854 = vmatpush1.msra.mxu0 0.0
    %855 = vmatprep.subr.mxu0 0.0
    %856 = vmatpush1.msra.mxu0 0.0
    %857 = vmatprep.subr.mxu0 0.0
    %858 = vmatpush1.msra.mxu0 0.0
    %859 = vmatprep.subr.mxu0 0.0
    %860 = vmatpush1.msra.mxu0 0.0
    %861 = vmatprep.subr.mxu0 0.0
    %862 = vmatpush1.msra.mxu0 0.0
    %863 = vmatprep.subr.mxu0 0.0
    %864 = vmatpush1.msra.mxu0 0.0
    %865 = vmatprep.subr.mxu0 0.0
    %866 = vmatpush1.msra.mxu0 0.0
    %867 = vmatprep.subr.mxu0 0.0
    %868 = vmatpush1.msra.mxu0 0.0
    %869 = vmatprep.subr.mxu0 0.0
    %870 = vmatpush1.msra.mxu0 0.0
    %871 = vmatprep.subr.mxu0 0.0
    %872 = vmatpush1.msra.mxu0 0.0
    %873 = vmatprep.subr.mxu0 0.0
    %874 = vmatpush1.msra.mxu0 0.0
    %875 = vmatprep.subr.mxu0 0.0
    %876 = vmatpush1.msra.mxu0 0.0
    %877 = vmatprep.subr.mxu0 0.0
    %878 = vmatpush1.msra.mxu0 0.0
    %879 = vmatprep.subr.mxu0 0.0
    %880 = vmatpush1.msra.mxu0 0.0
    %881 = vmatprep.subr.mxu0 0.0
    %882 = vmatpush1.msra.mxu0 0.0
    %883 = vmatprep.subr.mxu0 0.0
    %884 = vmatpush1.msra.mxu0 0.0
    %885 = vmatprep.subr.mxu0 0.0
    %886 = vmatpush1.msra.mxu0 0.0
    %887 = vmatprep.subr.mxu0 0.0
    %888 = vmatpush1.msra.mxu0 0.0
    %889 = vmatprep.subr.mxu0 0.0
    %890 = vmatpush1.msra.mxu0 0.0
    %891 = vmatprep.subr.mxu0 0.0
    %892 = vmatpush1.msra.mxu0 0.0
    %893 = vmatprep.subr.mxu0 0.0
    %894 = vmatpush1.msra.mxu0 0.0
    %895 = vmatprep.subr.mxu0 0.0
    %896 = vmatpush1.msra.mxu0 0.0
    %897 = vmatprep.subr.mxu0 0.0
    %898 = vmatpush1.msra.mxu0 0.0
    %899 = vmatprep.subr.mxu0 0.0
    %900 = vmatpush1.msra.mxu0 0.0
    %901 = vmatprep.subr.mxu0 0.0
    %902 = vmatpush1.msra.mxu0 0.0
    %903 = vmatprep.subr.mxu0 0.0
    %904 = vmatpush1.msra.mxu0 0.0
    %905 = vmatprep.mubr.f32.mxu0 0.0
    %906 = vmatmul.mubr.f32.gmra.mrb[0].mxu0 %v839
    %v907 = vpop.f32.mrb[0].mxu0
    %v908 = vadd.f32 %v46, %v907
    %v909 = vpop.f32.mrb[0].mxu0
    %910 = vdwg.mxu0
    %911 = vmatprep.subr.mxu0 0.0
    %912 = vmatpush1.msra.mxu0 %v152
    %913 = vmatprep.subr.mxu0 0.0
    %914 = vmatpush1.msra.mxu0 0.0
    %915 = vmatprep.subr.mxu0 0.0
    %916 = vmatpush1.msra.mxu0 0.0
    %917 = vmatprep.subr.mxu0 0.0
    %918 = vmatpush1.msra.mxu0 0.0
    %919 = vmatprep.subr.mxu0 0.0
    %920 = vmatpush1.msra.mxu0 0.0
    %921 = vmatprep.subr.mxu0 0.0
    %922 = vmatpush1.msra.mxu0 0.0
    %923 = vmatprep.subr.mxu0 0.0
    %924 = vmatpush1.msra.mxu0 0.0
    %925 = vmatprep.subr.mxu0 0.0
    %926 = vmatpush1.msra.mxu0 0.0
    %927 = vmatprep.subr.mxu0 0.0
    %928 = vmatpush1.msra.mxu0 0.0
    %929 = vmatprep.subr.mxu0 0.0
    %930 = vmatpush1.msra.mxu0 0.0
    %931 = vmatprep.subr.mxu0 0.0
    %932 = vmatpush1.msra.mxu0 0.0
    %933 = vmatprep.subr.mxu0 0.0
    %934 = vmatpush1.msra.mxu0 0.0
    %935 = vmatprep.subr.mxu0 0.0
    %936 = vmatpush1.msra.mxu0 0.0
    %937 = vmatprep.subr.mxu0 0.0
    %938 = vmatpush1.msra.mxu0 0.0
    %939 = vmatprep.subr.mxu0 0.0
    %940 = vmatpush1.msra.mxu0 0.0
    %941 = vmatprep.subr.mxu0 0.0
    %942 = vmatpush1.msra.mxu0 0.0
    %943 = vmatprep.subr.mxu0 0.0
    %944 = vmatpush1.msra.mxu0 0.0
    %945 = vmatprep.subr.mxu0 0.0
    %946 = vmatpush1.msra.mxu0 0.0
    %947 = vmatprep.subr.mxu0 0.0
    %948 = vmatpush1.msra.mxu0 0.0
    %949 = vmatprep.subr.mxu0 0.0
    %950 = vmatpush1.msra.mxu0 0.0
    %951 = vmatprep.subr.mxu0 0.0
    %952 = vmatpush1.msra.mxu0 0.0
    %953 = vmatprep.subr.mxu0 0.0
    %954 = vmatpush1.msra.mxu0 0.0
    %955 = vmatprep.subr.mxu0 0.0
    %956 = vmatpush1.msra.mxu0 0.0
    %957 = vmatprep.subr.mxu0 0.0
    %958 = vmatpush1.msra.mxu0 0.0
    %959 = vmatprep.subr.mxu0 0.0
    %960 = vmatpush1.msra.mxu0 0.0
    %961 = vmatprep.subr.mxu0 0.0
    %962 = vmatpush1.msra.mxu0 0.0
    %963 = vmatprep.subr.mxu0 0.0
    %964 = vmatpush1.msra.mxu0 0.0
    %965 = vmatprep.subr.mxu0 0.0
    %966 = vmatpush1.msra.mxu0 0.0
    %967 = vmatprep.subr.mxu0 0.0
    %968 = vmatpush1.msra.mxu0 0.0
    %969 = vmatprep.subr.mxu0 0.0
    %970 = vmatpush1.msra.mxu0 0.0
    %971 = vmatprep.subr.mxu0 0.0
    %972 = vmatpush1.msra.mxu0 0.0
    %973 = vmatprep.subr.mxu0 0.0
    %974 = vmatpush1.msra.mxu0 0.0
    %975 = vmatprep.mubr.f32.mxu0 0.0
    %976 = vmatmul.mubr.f32.gmra.mrb[0].mxu0 %v839
    %v977 = vpop.f32.mrb[0].mxu0
    %v978 = vadd.f32 %v54, %v977
    %v979 = vpop.f32.mrb[0].mxu0
    %980 = vdwg.mxu0
    %981 = vmatprep.subr.mxu0 0.0
    %982 = vmatpush1.msra.mxu0 %v225
    %983 = vmatprep.subr.mxu0 0.0
    %984 = vmatpush1.msra.mxu0 0.0
    %985 = vmatprep.subr.mxu0 0.0
    %986 = vmatpush1.msra.mxu0 0.0
    %987 = vmatprep.subr.mxu0 0.0
    %988 = vmatpush1.msra.mxu0 0.0
    %989 = vmatprep.subr.mxu0 0.0
    %990 = vmatpush1.msra.mxu0 0.0
    %991 = vmatprep.subr.mxu0 0.0
    %992 = vmatpush1.msra.mxu0 0.0
    %993 = vmatprep.subr.mxu0 0.0
    %994 = vmatpush1.msra.mxu0 0.0
    %995 = vmatprep.subr.mxu0 0.0
    %996 = vmatpush1.msra.mxu0 0.0
    %997 = vmatprep.subr.mxu0 0.0
    %998 = vmatpush1.msra.mxu0 0.0
    %999 = vmatprep.subr.mxu0 0.0
    %1000 = vmatpush1.msra.mxu0 0.0
    %1001 = vmatprep.subr.mxu0 0.0
    %1002 = vmatpush1.msra.mxu0 0.0
    %1003 = vmatprep.subr.mxu0 0.0
    %1004 = vmatpush1.msra.mxu0 0.0
    %1005 = vmatprep.subr.mxu0 0.0
    %1006 = vmatpush1.msra.mxu0 0.0
    %1007 = vmatprep.subr.mxu0 0.0
    %1008 = vmatpush1.msra.mxu0 0.0
    %1009 = vmatprep.subr.mxu0 0.0
    %1010 = vmatpush1.msra.mxu0 0.0
    %1011 = vmatprep.subr.mxu0 0.0
    %1012 = vmatpush1.msra.mxu0 0.0
    %1013 = vmatprep.subr.mxu0 0.0
    %1014 = vmatpush1.msra.mxu0 0.0
    %1015 = vmatprep.subr.mxu0 0.0
    %1016 = vmatpush1.msra.mxu0 0.0
    %1017 = vmatprep.subr.mxu0 0.0
    %1018 = vmatpush1.msra.mxu0 0.0
    %1019 = vmatprep.subr.mxu0 0.0
    %1020 = vmatpush1.msra.mxu0 0.0
    %1021 = vmatprep.subr.mxu0 0.0
    %1022 = vmatpush1.msra.mxu0 0.0
    %1023 = vmatprep.subr.mxu0 0.0
    %1024 = vmatpush1.msra.mxu0 0.0
    %1025 = vmatprep.subr.mxu0 0.0
    %1026 = vmatpush1.msra.mxu0 0.0
    %1027 = vmatprep.subr.mxu0 0.0
    %1028 = vmatpush1.msra.mxu0 0.0
    %1029 = vmatprep.subr.mxu0 0.0
    %1030 = vmatpush1.msra.mxu0 0.0
    %1031 = vmatprep.subr.mxu0 0.0
    %1032 = vmatpush1.msra.mxu0 0.0
    %1033 = vmatprep.subr.mxu0 0.0
    %1034 = vmatpush1.msra.mxu0 0.0
    %1035 = vmatprep.subr.mxu0 0.0
    %1036 = vmatpush1.msra.mxu0 0.0
    %1037 = vmatprep.subr.mxu0 0.0
    %1038 = vmatpush1.msra.mxu0 0.0
    %1039 = vmatprep.subr.mxu0 0.0
    %1040 = vmatpush1.msra.mxu0 0.0
    %1041 = vmatprep.subr.mxu0 0.0
    %1042 = vmatpush1.msra.mxu0 0.0
    %1043 = vmatprep.subr.mxu0 0.0
    %1044 = vmatpush1.msra.mxu0 0.0
    %1045 = vmatprep.mubr.f32.mxu0 0.0
    %1046 = vmatmul.mubr.f32.gmra.mrb[0].mxu0 %v839
    %v1047 = vpop.f32.mrb[0].mxu0
    %v1048 = vadd.f32 %v62, %v1047
    %v1049 = vpop.f32.mrb[0].mxu0
    %1050 = vdwg.mxu0
    %v1051 = vpack.c.bf16 %v835, %v835
    %v1053 = vsel %vm309, %v1051, 0
    %1055 = vmatprep.subr.bf16.mxu0 0
    %1056 = vmatpush1.bf16.msra.mxu0 %v305
    %1057 = vmatprep.subr.bf16.mxu0 0
    %1058 = vmatpush1.bf16.msra.mxu0 %v306
    %1059 = vmatprep.subr.bf16.mxu0 0
    %1060 = vmatpush1.bf16.msra.mxu0 0
    %1061 = vmatprep.subr.bf16.mxu0 0
    %1062 = vmatpush1.bf16.msra.mxu0 0
    %1063 = vmatprep.subr.bf16.mxu0 0
    %1064 = vmatpush1.bf16.msra.mxu0 0
    %1065 = vmatprep.subr.bf16.mxu0 0
    %1066 = vmatpush1.bf16.msra.mxu0 0
    %1067 = vmatprep.subr.bf16.mxu0 0
    %1068 = vmatpush1.bf16.msra.mxu0 0
    %1069 = vmatprep.subr.bf16.mxu0 0
    %1070 = vmatpush1.bf16.msra.mxu0 0
    %1071 = vmatprep.subr.bf16.mxu0 0
    %1072 = vmatpush1.bf16.msra.mxu0 0
    %1073 = vmatprep.subr.bf16.mxu0 0
    %1074 = vmatpush1.bf16.msra.mxu0 0
    %1075 = vmatprep.subr.bf16.mxu0 0
    %1076 = vmatpush1.bf16.msra.mxu0 0
    %1077 = vmatprep.subr.bf16.mxu0 0
    %1078 = vmatpush1.bf16.msra.mxu0 0
    %1079 = vmatprep.subr.bf16.mxu0 0
    %1080 = vmatpush1.bf16.msra.mxu0 0
    %1081 = vmatprep.subr.bf16.mxu0 0
    %1082 = vmatpush1.bf16.msra.mxu0 0
    %1083 = vmatprep.subr.bf16.mxu0 0
    %1084 = vmatpush1.bf16.msra.mxu0 0
    %1085 = vmatprep.subr.bf16.mxu0 0
    %1086 = vmatpush1.bf16.msra.mxu0 0
    %1087 = vmatprep.mubr.bf16.mxu0 0
    %1088 = vmatmul.mubr.bf16.gmra.mrb[0].mxu0 %v1053
    %v1089 = vpop.f32.mrb[0].mxu0
    %v1090 = vadd.f32 0.0, %v1089
    %v1091 = vpop.f32.mrb[0].mxu0
    %v1092 = vpop.f32.mrb[0].mxu0
    %v1093 = vpop.f32.mrb[0].mxu0
    %1094 = vdwg.mxu0
    %1095 = vmatprep.subr.bf16.mxu0 0
    %1096 = vmatpush1.bf16.msra.mxu0 %v361
    %1097 = vmatprep.subr.bf16.mxu0 0
    %1098 = vmatpush1.bf16.msra.mxu0 %v362
    %1099 = vmatprep.subr.bf16.mxu0 0
    %1100 = vmatpush1.bf16.msra.mxu0 0
    %1101 = vmatprep.subr.bf16.mxu0 0
    %1102 = vmatpush1.bf16.msra.mxu0 0
    %1103 = vmatprep.subr.bf16.mxu0 0
    %1104 = vmatpush1.bf16.msra.mxu0 0
    %1105 = vmatprep.subr.bf16.mxu0 0
    %1106 = vmatpush1.bf16.msra.mxu0 0
    %1107 = vmatprep.subr.bf16.mxu0 0
    %1108 = vmatpush1.bf16.msra.mxu0 0
    %1109 = vmatprep.subr.bf16.mxu0 0
    %1110 = vmatpush1.bf16.msra.mxu0 0
    %1111 = vmatprep.subr.bf16.mxu0 0
    %1112 = vmatpush1.bf16.msra.mxu0 0
    %1113 = vmatprep.subr.bf16.mxu0 0
    %1114 = vmatpush1.bf16.msra.mxu0 0
    %1115 = vmatprep.subr.bf16.mxu0 0
    %1116 = vmatpush1.bf16.msra.mxu0 0
    %1117 = vmatprep.subr.bf16.mxu0 0
    %1118 = vmatpush1.bf16.msra.mxu0 0
    %1119 = vmatprep.subr.bf16.mxu0 0
    %1120 = vmatpush1.bf16.msra.mxu0 0
    %1121 = vmatprep.subr.bf16.mxu0 0
    %1122 = vmatpush1.bf16.msra.mxu0 0
    %1123 = vmatprep.subr.bf16.mxu0 0
    %1124 = vmatpush1.bf16.msra.mxu0 0
    %1125 = vmatprep.subr.bf16.mxu0 0
    %1126 = vmatpush1.bf16.msra.mxu0 0
    %1127 = vmatprep.mubr.bf16.mxu0 0
    %1128 = vmatmul.mubr.bf16.gmra.mrb[0].mxu0 %v1053
    %v1129 = vpop.f32.mrb[0].mxu0
    %v1130 = vadd.f32 0.0, %v1129
    %v1131 = vpop.f32.mrb[0].mxu0
    %v1132 = vpop.f32.mrb[0].mxu0
    %v1133 = vpop.f32.mrb[0].mxu0
    %1134 = vdwg.mxu0
    %v1135 = vadd.f32 %v908, %v1090
    %v1136 = vxor.u32 %v1135, 2147483648
    %v1137 = vmul.f32 %v1136, 1.442695
    %v1138 = vpow.pop %v1137
    %v1139 = vadd.f32 %v1138, 1.0
    %v1140 = vrcp.pop %v1139
    %v1141 = vmul.f32 1.0, %v1140
    %v1142 = vadd.f32 %v978, %v1130
    %v1143 = vxor.u32 %v1142, 2147483648
    %v1144 = vmul.f32 %v1143, 1.442695
    %v1145 = vpow.pop %v1144
    %v1146 = vadd.f32 %v1145, 1.0
    %v1147 = vrcp.pop %v1146
    %v1148 = vmul.f32 1.0, %v1147
    %1149 = vmatprep.subr.bf16.mxu0 0
    %1150 = vmatpush1.bf16.msra.mxu0 %v427
    %1151 = vmatprep.subr.bf16.mxu0 0
    %1152 = vmatpush1.bf16.msra.mxu0 %v428
    %1153 = vmatprep.subr.bf16.mxu0 0
    %1154 = vmatpush1.bf16.msra.mxu0 0
    %1155 = vmatprep.subr.bf16.mxu0 0
    %1156 = vmatpush1.bf16.msra.mxu0 0
    %1157 = vmatprep.subr.bf16.mxu0 0
    %1158 = vmatpush1.bf16.msra.mxu0 0
    %1159 = vmatprep.subr.bf16.mxu0 0
    %1160 = vmatpush1.bf16.msra.mxu0 0
    %1161 = vmatprep.subr.bf16.mxu0 0
    %1162 = vmatpush1.bf16.msra.mxu0 0
    %1163 = vmatprep.subr.bf16.mxu0 0
    %1164 = vmatpush1.bf16.msra.mxu0 0
    %1165 = vmatprep.subr.bf16.mxu0 0
    %1166 = vmatpush1.bf16.msra.mxu0 0
    %1167 = vmatprep.subr.bf16.mxu0 0
    %1168 = vmatpush1.bf16.msra.mxu0 0
    %1169 = vmatprep.subr.bf16.mxu0 0
    %1170 = vmatpush1.bf16.msra.mxu0 0
    %1171 = vmatprep.subr.bf16.mxu0 0
    %1172 = vmatpush1.bf16.msra.mxu0 0
    %1173 = vmatprep.subr.bf16.mxu0 0
    %1174 = vmatpush1.bf16.msra.mxu0 0
    %1175 = vmatprep.subr.bf16.mxu0 0
    %1176 = vmatpush1.bf16.msra.mxu0 0
    %1177 = vmatprep.subr.bf16.mxu0 0
    %1178 = vmatpush1.bf16.msra.mxu0 0
    %1179 = vmatprep.subr.bf16.mxu0 0
    %1180 = vmatpush1.bf16.msra.mxu0 0
    %1181 = vmatprep.mubr.bf16.mxu0 0
    %1182 = vmatmul.mubr.bf16.gmra.mrb[0].mxu0 %v1053
    %v1183 = vpop.f32.mrb[0].mxu0
    %v1184 = vadd.f32 %v70, %v1183
    %v1185 = vpop.f32.mrb[0].mxu0
    %v1186 = vpop.f32.mrb[0].mxu0
    %v1187 = vpop.f32.mrb[0].mxu0
    %1188 = vdwg.mxu0
    %v1189 = vmul.f32 %v1141, %v1184
    %v1190 = vadd.f32 %v1048, %v1189
    %v1191 = vtanh.pop %v1190
    %v1192 = vsub.f32 %v835, %v1191
    %v1193 = vmul.f32 %v1148, %v1192
    %v1194 = vadd.f32 %v1191, %v1193
    %s1195 = scalar_lea.vmem %s0, 6
    %v1196 = vld [vmem:[%s1195] sm:$0x3]
    %v1198 = vsel %vm73, %v1196, 0
    %1200 = vmatprep.subr.mxu0 0.0
    %1201 = vmatpush1.msra.mxu0 %v79
    %1202 = vmatprep.subr.mxu0 0.0
    %1203 = vmatpush1.msra.mxu0 0.0
    %1204 = vmatprep.subr.mxu0 0.0
    %1205 = vmatpush1.msra.mxu0 0.0
    %1206 = vmatprep.subr.mxu0 0.0
    %1207 = vmatpush1.msra.mxu0 0.0
    %1208 = vmatprep.subr.mxu0 0.0
    %1209 = vmatpush1.msra.mxu0 0.0
    %1210 = vmatprep.subr.mxu0 0.0
    %1211 = vmatpush1.msra.mxu0 0.0
    %1212 = vmatprep.subr.mxu0 0.0
    %1213 = vmatpush1.msra.mxu0 0.0
    %1214 = vmatprep.subr.mxu0 0.0
    %1215 = vmatpush1.msra.mxu0 0.0
    %1216 = vmatprep.subr.mxu0 0.0
    %1217 = vmatpush1.msra.mxu0 0.0
    %1218 = vmatprep.subr.mxu0 0.0
    %1219 = vmatpush1.msra.mxu0 0.0
    %1220 = vmatprep.subr.mxu0 0.0
    %1221 = vmatpush1.msra.mxu0 0.0
    %1222 = vmatprep.subr.mxu0 0.0
    %1223 = vmatpush1.msra.mxu0 0.0
    %1224 = vmatprep.subr.mxu0 0.0
    %1225 = vmatpush1.msra.mxu0 0.0
    %1226 = vmatprep.subr.mxu0 0.0
    %1227 = vmatpush1.msra.mxu0 0.0
    %1228 = vmatprep.subr.mxu0 0.0
    %1229 = vmatpush1.msra.mxu0 0.0
    %1230 = vmatprep.subr.mxu0 0.0
    %1231 = vmatpush1.msra.mxu0 0.0
    %1232 = vmatprep.subr.mxu0 0.0
    %1233 = vmatpush1.msra.mxu0 0.0
    %1234 = vmatprep.subr.mxu0 0.0
    %1235 = vmatpush1.msra.mxu0 0.0
    %1236 = vmatprep.subr.mxu0 0.0
    %1237 = vmatpush1.msra.mxu0 0.0
    %1238 = vmatprep.subr.mxu0 0.0
    %1239 = vmatpush1.msra.mxu0 0.0
    %1240 = vmatprep.subr.mxu0 0.0
    %1241 = vmatpush1.msra.mxu0 0.0
    %1242 = vmatprep.subr.mxu0 0.0
    %1243 = vmatpush1.msra.mxu0 0.0
    %1244 = vmatprep.subr.mxu0 0.0
    %1245 = vmatpush1.msra.mxu0 0.0
    %1246 = vmatprep.subr.mxu0 0.0
    %1247 = vmatpush1.msra.mxu0 0.0
    %1248 = vmatprep.subr.mxu0 0.0
    %1249 = vmatpush1.msra.mxu0 0.0
    %1250 = vmatprep.subr.mxu0 0.0
    %1251 = vmatpush1.msra.mxu0 0.0
    %1252 = vmatprep.subr.mxu0 0.0
    %1253 = vmatpush1.msra.mxu0 0.0
    %1254 = vmatprep.subr.mxu0 0.0
    %1255 = vmatpush1.msra.mxu0 0.0
    %1256 = vmatprep.subr.mxu0 0.0
    %1257 = vmatpush1.msra.mxu0 0.0
    %1258 = vmatprep.subr.mxu0 0.0
    %1259 = vmatpush1.msra.mxu0 0.0
    %1260 = vmatprep.subr.mxu0 0.0
    %1261 = vmatpush1.msra.mxu0 0.0
    %1262 = vmatprep.subr.mxu0 0.0
    %1263 = vmatpush1.msra.mxu0 0.0
    %1264 = vmatprep.mubr.f32.mxu0 0.0
    %1265 = vmatmul.mubr.f32.gmra.mrb[0].mxu0 %v1198
    %v1266 = vpop.f32.mrb[0].mxu0
    %v1267 = vadd.f32 %v46, %v1266
    %v1268 = vpop.f32.mrb[0].mxu0
    %1269 = vdwg.mxu0
    %1270 = vmatprep.subr.mxu0 0.0
    %1271 = vmatpush1.msra.mxu0 %v152
    %1272 = vmatprep.subr.mxu0 0.0
    %1273 = vmatpush1.msra.mxu0 0.0
    %1274 = vmatprep.subr.mxu0 0.0
    %1275 = vmatpush1.msra.mxu0 0.0
    %1276 = vmatprep.subr.mxu0 0.0
    %1277 = vmatpush1.msra.mxu0 0.0
    %1278 = vmatprep.subr.mxu0 0.0
    %1279 = vmatpush1.msra.mxu0 0.0
    %1280 = vmatprep.subr.mxu0 0.0
    %1281 = vmatpush1.msra.mxu0 0.0
    %1282 = vmatprep.subr.mxu0 0.0
    %1283 = vmatpush1.msra.mxu0 0.0
    %1284 = vmatprep.subr.mxu0 0.0
    %1285 = vmatpush1.msra.mxu0 0.0
    %1286 = vmatprep.subr.mxu0 0.0
    %1287 = vmatpush1.msra.mxu0 0.0
    %1288 = vmatprep.subr.mxu0 0.0
    %1289 = vmatpush1.msra.mxu0 0.0
    %1290 = vmatprep.subr.mxu0 0.0
    %1291 = vmatpush1.msra.mxu0 0.0
    %1292 = vmatprep.subr.mxu0 0.0
    %1293 = vmatpush1.msra.mxu0 0.0
    %1294 = vmatprep.subr.mxu0 0.0
    %1295 = vmatpush1.msra.mxu0 0.0
    %1296 = vmatprep.subr.mxu0 0.0
    %1297 = vmatpush1.msra.mxu0 0.0
    %1298 = vmatprep.subr.mxu0 0.0
    %1299 = vmatpush1.msra.mxu0 0.0
    %1300 = vmatprep.subr.mxu0 0.0
    %1301 = vmatpush1.msra.mxu0 0.0
    %1302 = vmatprep.subr.mxu0 0.0
    %1303 = vmatpush1.msra.mxu0 0.0
    %1304 = vmatprep.subr.mxu0 0.0
    %1305 = vmatpush1.msra.mxu0 0.0
    %1306 = vmatprep.subr.mxu0 0.0
    %1307 = vmatpush1.msra.mxu0 0.0
    %1308 = vmatprep.subr.mxu0 0.0
    %1309 = vmatpush1.msra.mxu0 0.0
    %1310 = vmatprep.subr.mxu0 0.0
    %1311 = vmatpush1.msra.mxu0 0.0
    %1312 = vmatprep.subr.mxu0 0.0
    %1313 = vmatpush1.msra.mxu0 0.0
    %1314 = vmatprep.subr.mxu0 0.0
    %1315 = vmatpush1.msra.mxu0 0.0
    %1316 = vmatprep.subr.mxu0 0.0
    %1317 = vmatpush1.msra.mxu0 0.0
    %1318 = vmatprep.subr.mxu0 0.0
    %1319 = vmatpush1.msra.mxu0 0.0
    %1320 = vmatprep.subr.mxu0 0.0
    %1321 = vmatpush1.msra.mxu0 0.0
    %1322 = vmatprep.subr.mxu0 0.0
    %1323 = vmatpush1.msra.mxu0 0.0
    %1324 = vmatprep.subr.mxu0 0.0
    %1325 = vmatpush1.msra.mxu0 0.0
    %1326 = vmatprep.subr.mxu0 0.0
    %1327 = vmatpush1.msra.mxu0 0.0
    %1328 = vmatprep.subr.mxu0 0.0
    %1329 = vmatpush1.msra.mxu0 0.0
    %1330 = vmatprep.subr.mxu0 0.0
    %1331 = vmatpush1.msra.mxu0 0.0
    %1332 = vmatprep.subr.mxu0 0.0
    %1333 = vmatpush1.msra.mxu0 0.0
    %1334 = vmatprep.mubr.f32.mxu0 0.0
    %1335 = vmatmul.mubr.f32.gmra.mrb[0].mxu0 %v1198
    %v1336 = vpop.f32.mrb[0].mxu0
    %v1337 = vadd.f32 %v54, %v1336
    %v1338 = vpop.f32.mrb[0].mxu0
    %1339 = vdwg.mxu0
    %1340 = vmatprep.subr.mxu0 0.0
    %1341 = vmatpush1.msra.mxu0 %v225
    %1342 = vmatprep.subr.mxu0 0.0
    %1343 = vmatpush1.msra.mxu0 0.0
    %1344 = vmatprep.subr.mxu0 0.0
    %1345 = vmatpush1.msra.mxu0 0.0
    %1346 = vmatprep.subr.mxu0 0.0
    %1347 = vmatpush1.msra.mxu0 0.0
    %1348 = vmatprep.subr.mxu0 0.0
    %1349 = vmatpush1.msra.mxu0 0.0
    %1350 = vmatprep.subr.mxu0 0.0
    %1351 = vmatpush1.msra.mxu0 0.0
    %1352 = vmatprep.subr.mxu0 0.0
    %1353 = vmatpush1.msra.mxu0 0.0
    %1354 = vmatprep.subr.mxu0 0.0
    %1355 = vmatpush1.msra.mxu0 0.0
    %1356 = vmatprep.subr.mxu0 0.0
    %1357 = vmatpush1.msra.mxu0 0.0
    %1358 = vmatprep.subr.mxu0 0.0
    %1359 = vmatpush1.msra.mxu0 0.0
    %1360 = vmatprep.subr.mxu0 0.0
    %1361 = vmatpush1.msra.mxu0 0.0
    %1362 = vmatprep.subr.mxu0 0.0
    %1363 = vmatpush1.msra.mxu0 0.0
    %1364 = vmatprep.subr.mxu0 0.0
    %1365 = vmatpush1.msra.mxu0 0.0
    %1366 = vmatprep.subr.mxu0 0.0
    %1367 = vmatpush1.msra.mxu0 0.0
    %1368 = vmatprep.subr.mxu0 0.0
    %1369 = vmatpush1.msra.mxu0 0.0
    %1370 = vmatprep.subr.mxu0 0.0
    %1371 = vmatpush1.msra.mxu0 0.0
    %1372 = vmatprep.subr.mxu0 0.0
    %1373 = vmatpush1.msra.mxu0 0.0
    %1374 = vmatprep.subr.mxu0 0.0
    %1375 = vmatpush1.msra.mxu0 0.0
    %1376 = vmatprep.subr.mxu0 0.0
    %1377 = vmatpush1.msra.mxu0 0.0
    %1378 = vmatprep.subr.mxu0 0.0
    %1379 = vmatpush1.msra.mxu0 0.0
    %1380 = vmatprep.subr.mxu0 0.0
    %1381 = vmatpush1.msra.mxu0 0.0
    %1382 = vmatprep.subr.mxu0 0.0
    %1383 = vmatpush1.msra.mxu0 0.0
    %1384 = vmatprep.subr.mxu0 0.0
    %1385 = vmatpush1.msra.mxu0 0.0
    %1386 = vmatprep.subr.mxu0 0.0
    %1387 = vmatpush1.msra.mxu0 0.0
    %1388 = vmatprep.subr.mxu0 0.0
    %1389 = vmatpush1.msra.mxu0 0.0
    %1390 = vmatprep.subr.mxu0 0.0
    %1391 = vmatpush1.msra.mxu0 0.0
    %1392 = vmatprep.subr.mxu0 0.0
    %1393 = vmatpush1.msra.mxu0 0.0
    %1394 = vmatprep.subr.mxu0 0.0
    %1395 = vmatpush1.msra.mxu0 0.0
    %1396 = vmatprep.subr.mxu0 0.0
    %1397 = vmatpush1.msra.mxu0 0.0
    %1398 = vmatprep.subr.mxu0 0.0
    %1399 = vmatpush1.msra.mxu0 0.0
    %1400 = vmatprep.subr.mxu0 0.0
    %1401 = vmatpush1.msra.mxu0 0.0
    %1402 = vmatprep.subr.mxu0 0.0
    %1403 = vmatpush1.msra.mxu0 0.0
    %1404 = vmatprep.mubr.f32.mxu0 0.0
    %1405 = vmatmul.mubr.f32.gmra.mrb[0].mxu0 %v1198
    %v1406 = vpop.f32.mrb[0].mxu0
    %v1407 = vadd.f32 %v62, %v1406
    %v1408 = vpop.f32.mrb[0].mxu0
    %1409 = vdwg.mxu0
    %v1410 = vpack.c.bf16 %v1194, %v1194
    %v1412 = vsel %vm309, %v1410, 0
    %1414 = vmatprep.subr.bf16.mxu0 0
    %1415 = vmatpush1.bf16.msra.mxu0 %v305
    %1416 = vmatprep.subr.bf16.mxu0 0
    %1417 = vmatpush1.bf16.msra.mxu0 %v306
    %1418 = vmatprep.subr.bf16.mxu0 0
    %1419 = vmatpush1.bf16.msra.mxu0 0
    %1420 = vmatprep.subr.bf16.mxu0 0
    %1421 = vmatpush1.bf16.msra.mxu0 0
    %1422 = vmatprep.subr.bf16.mxu0 0
    %1423 = vmatpush1.bf16.msra.mxu0 0
    %1424 = vmatprep.subr.bf16.mxu0 0
    %1425 = vmatpush1.bf16.msra.mxu0 0
    %1426 = vmatprep.subr.bf16.mxu0 0
    %1427 = vmatpush1.bf16.msra.mxu0 0
    %1428 = vmatprep.subr.bf16.mxu0 0
    %1429 = vmatpush1.bf16.msra.mxu0 0
    %1430 = vmatprep.subr.bf16.mxu0 0
    %1431 = vmatpush1.bf16.msra.mxu0 0
    %1432 = vmatprep.subr.bf16.mxu0 0
    %1433 = vmatpush1.bf16.msra.mxu0 0
    %1434 = vmatprep.subr.bf16.mxu0 0
    %1435 = vmatpush1.bf16.msra.mxu0 0
    %1436 = vmatprep.subr.bf16.mxu0 0
    %1437 = vmatpush1.bf16.msra.mxu0 0
    %1438 = vmatprep.subr.bf16.mxu0 0
    %1439 = vmatpush1.bf16.msra.mxu0 0
    %1440 = vmatprep.subr.bf16.mxu0 0
    %1441 = vmatpush1.bf16.msra.mxu0 0
    %1442 = vmatprep.subr.bf16.mxu0 0
    %1443 = vmatpush1.bf16.msra.mxu0 0
    %1444 = vmatprep.subr.bf16.mxu0 0
    %1445 = vmatpush1.bf16.msra.mxu0 0
    %1446 = vmatprep.mubr.bf16.mxu0 0
    %1447 = vmatmul.mubr.bf16.gmra.mrb[0].mxu0 %v1412
    %v1448 = vpop.f32.mrb[0].mxu0
    %v1449 = vadd.f32 0.0, %v1448
    %v1450 = vpop.f32.mrb[0].mxu0
    %v1451 = vpop.f32.mrb[0].mxu0
    %v1452 = vpop.f32.mrb[0].mxu0
    %1453 = vdwg.mxu0
    %1454 = vmatprep.subr.bf16.mxu0 0
    %1455 = vmatpush1.bf16.msra.mxu0 %v361
    %1456 = vmatprep.subr.bf16.mxu0 0
    %1457 = vmatpush1.bf16.msra.mxu0 %v362
    %1458 = vmatprep.subr.bf16.mxu0 0
    %1459 = vmatpush1.bf16.msra.mxu0 0
    %1460 = vmatprep.subr.bf16.mxu0 0
    %1461 = vmatpush1.bf16.msra.mxu0 0
    %1462 = vmatprep.subr.bf16.mxu0 0
    %1463 = vmatpush1.bf16.msra.mxu0 0
    %1464 = vmatprep.subr.bf16.mxu0 0
    %1465 = vmatpush1.bf16.msra.mxu0 0
    %1466 = vmatprep.subr.bf16.mxu0 0
    %1467 = vmatpush1.bf16.msra.mxu0 0
    %1468 = vmatprep.subr.bf16.mxu0 0
    %1469 = vmatpush1.bf16.msra.mxu0 0
    %1470 = vmatprep.subr.bf16.mxu0 0
    %1471 = vmatpush1.bf16.msra.mxu0 0
    %1472 = vmatprep.subr.bf16.mxu0 0
    %1473 = vmatpush1.bf16.msra.mxu0 0
    %1474 = vmatprep.subr.bf16.mxu0 0
    %1475 = vmatpush1.bf16.msra.mxu0 0
    %1476 = vmatprep.subr.bf16.mxu0 0
    %1477 = vmatpush1.bf16.msra.mxu0 0
    %1478 = vmatprep.subr.bf16.mxu0 0
    %1479 = vmatpush1.bf16.msra.mxu0 0
    %1480 = vmatprep.subr.bf16.mxu0 0
    %1481 = vmatpush1.bf16.msra.mxu0 0
    %1482 = vmatprep.subr.bf16.mxu0 0
    %1483 = vmatpush1.bf16.msra.mxu0 0
    %1484 = vmatprep.subr.bf16.mxu0 0
    %1485 = vmatpush1.bf16.msra.mxu0 0
    %1486 = vmatprep.mubr.bf16.mxu0 0
    %1487 = vmatmul.mubr.bf16.gmra.mrb[0].mxu0 %v1412
    %v1488 = vpop.f32.mrb[0].mxu0
    %v1489 = vadd.f32 0.0, %v1488
    %v1490 = vpop.f32.mrb[0].mxu0
    %v1491 = vpop.f32.mrb[0].mxu0
    %v1492 = vpop.f32.mrb[0].mxu0
    %1493 = vdwg.mxu0
    %v1494 = vadd.f32 %v1267, %v1449
    %v1495 = vxor.u32 %v1494, 2147483648
    %v1496 = vmul.f32 %v1495, 1.442695
    %v1497 = vpow.pop %v1496
    %v1498 = vadd.f32 %v1497, 1.0
    %v1499 = vrcp.pop %v1498
    %v1500 = vmul.f32 1.0, %v1499
    %v1501 = vadd.f32 %v1337, %v1489
    %v1502 = vxor.u32 %v1501, 2147483648
    %v1503 = vmul.f32 %v1502, 1.442695
    %v1504 = vpow.pop %v1503
    %v1505 = vadd.f32 %v1504, 1.0
    %v1506 = vrcp.pop %v1505
    %v1507 = vmul.f32 1.0, %v1506
    %1508 = vmatprep.subr.bf16.mxu0 0
    %1509 = vmatpush1.bf16.msra.mxu0 %v427
    %1510 = vmatprep.subr.bf16.mxu0 0
    %1511 = vmatpush1.bf16.msra.mxu0 %v428
    %1512 = vmatprep.subr.bf16.mxu0 0
    %1513 = vmatpush1.bf16.msra.mxu0 0
    %1514 = vmatprep.subr.bf16.mxu0 0
    %1515 = vmatpush1.bf16.msra.mxu0 0
    %1516 = vmatprep.subr.bf16.mxu0 0
    %1517 = vmatpush1.bf16.msra.mxu0 0
    %1518 = vmatprep.subr.bf16.mxu0 0
    %1519 = vmatpush1.bf16.msra.mxu0 0
    %1520 = vmatprep.subr.bf16.mxu0 0
    %1521 = vmatpush1.bf16.msra.mxu0 0
    %1522 = vmatprep.subr.bf16.mxu0 0
    %1523 = vmatpush1.bf16.msra.mxu0 0
    %1524 = vmatprep.subr.bf16.mxu0 0
    %1525 = vmatpush1.bf16.msra.mxu0 0
    %1526 = vmatprep.subr.bf16.mxu0 0
    %1527 = vmatpush1.bf16.msra.mxu0 0
    %1528 = vmatprep.subr.bf16.mxu0 0
    %1529 = vmatpush1.bf16.msra.mxu0 0
    %1530 = vmatprep.subr.bf16.mxu0 0
    %1531 = vmatpush1.bf16.msra.mxu0 0
    %1532 = vmatprep.subr.bf16.mxu0 0
    %1533 = vmatpush1.bf16.msra.mxu0 0
    %1534 = vmatprep.subr.bf16.mxu0 0
    %1535 = vmatpush1.bf16.msra.mxu0 0
    %1536 = vmatprep.subr.bf16.mxu0 0
    %1537 = vmatpush1.bf16.msra.mxu0 0
    %1538 = vmatprep.subr.bf16.mxu0 0
    %1539 = vmatpush1.bf16.msra.mxu0 0
    %1540 = vmatprep.mubr.bf16.mxu0 0
    %1541 = vmatmul.mubr.bf16.gmra.mrb[0].mxu0 %v1412
    %v1542 = vpop.f32.mrb[0].mxu0
    %v1543 = vadd.f32 %v70, %v1542
    %v1544 = vpop.f32.mrb[0].mxu0
    %v1545 = vpop.f32.mrb[0].mxu0
    %v1546 = vpop.f32.mrb[0].mxu0
    %1547 = vdwg.mxu0
    %v1548 = vmul.f32 %v1500, %v1543
    %v1549 = vadd.f32 %v1407, %v1548
    %v1550 = vtanh.pop %v1549
    %v1551 = vsub.f32 %v1194, %v1550
    %v1552 = vmul.f32 %v1507, %v1551
    %v1553 = vadd.f32 %v1550, %v1552
    %s1554 = scalar_lea.vmem %s0, 8
    %v1555 = vld [vmem:[%s1554] sm:$0x3]
    %v1557 = vsel %vm73, %v1555, 0
    %1559 = vmatprep.subr.mxu0 0.0
    %1560 = vmatpush1.msra.mxu0 %v79
    %1561 = vmatprep.subr.mxu0 0.0
    %1562 = vmatpush1.msra.mxu0 0.0
    %1563 = vmatprep.subr.mxu0 0.0
    %1564 = vmatpush1.msra.mxu0 0.0
    %1565 = vmatprep.subr.mxu0 0.0
    %1566 = vmatpush1.msra.mxu0 0.0
    %1567 = vmatprep.subr.mxu0 0.0
    %1568 = vmatpush1.msra.mxu0 0.0
    %1569 = vmatprep.subr.mxu0 0.0
    %1570 = vmatpush1.msra.mxu0 0.0
    %1571 = vmatprep.subr.mxu0 0.0
    %1572 = vmatpush1.msra.mxu0 0.0
    %1573 = vmatprep.subr.mxu0 0.0
    %1574 = vmatpush1.msra.mxu0 0.0
    %1575 = vmatprep.subr.mxu0 0.0
    %1576 = vmatpush1.msra.mxu0 0.0
    %1577 = vmatprep.subr.mxu0 0.0
    %1578 = vmatpush1.msra.mxu0 0.0
    %1579 = vmatprep.subr.mxu0 0.0
    %1580 = vmatpush1.msra.mxu0 0.0
    %1581 = vmatprep.subr.mxu0 0.0
    %1582 = vmatpush1.msra.mxu0 0.0
    %1583 = vmatprep.subr.mxu0 0.0
    %1584 = vmatpush1.msra.mxu0 0.0
    %1585 = vmatprep.subr.mxu0 0.0
    %1586 = vmatpush1.msra.mxu0 0.0
    %1587 = vmatprep.subr.mxu0 0.0
    %1588 = vmatpush1.msra.mxu0 0.0
    %1589 = vmatprep.subr.mxu0 0.0
    %1590 = vmatpush1.msra.mxu0 0.0
    %1591 = vmatprep.subr.mxu0 0.0
    %1592 = vmatpush1.msra.mxu0 0.0
    %1593 = vmatprep.subr.mxu0 0.0
    %1594 = vmatpush1.msra.mxu0 0.0
    %1595 = vmatprep.subr.mxu0 0.0
    %1596 = vmatpush1.msra.mxu0 0.0
    %1597 = vmatprep.subr.mxu0 0.0
    %1598 = vmatpush1.msra.mxu0 0.0
    %1599 = vmatprep.subr.mxu0 0.0
    %1600 = vmatpush1.msra.mxu0 0.0
    %1601 = vmatprep.subr.mxu0 0.0
    %1602 = vmatpush1.msra.mxu0 0.0
    %1603 = vmatprep.subr.mxu0 0.0
    %1604 = vmatpush1.msra.mxu0 0.0
    %1605 = vmatprep.subr.mxu0 0.0
    %1606 = vmatpush1.msra.mxu0 0.0
    %1607 = vmatprep.subr.mxu0 0.0
    %1608 = vmatpush1.msra.mxu0 0.0
    %1609 = vmatprep.subr.mxu0 0.0
    %1610 = vmatpush1.msra.mxu0 0.0
    %1611 = vmatprep.subr.mxu0 0.0
    %1612 = vmatpush1.msra.mxu0 0.0
    %1613 = vmatprep.subr.mxu0 0.0
    %1614 = vmatpush1.msra.mxu0 0.0
    %1615 = vmatprep.subr.mxu0 0.0
    %1616 = vmatpush1.msra.mxu0 0.0
    %1617 = vmatprep.subr.mxu0 0.0
    %1618 = vmatpush1.msra.mxu0 0.0
    %1619 = vmatprep.subr.mxu0 0.0
    %1620 = vmatpush1.msra.mxu0 0.0
    %1621 = vmatprep.subr.mxu0 0.0
    %1622 = vmatpush1.msra.mxu0 0.0
    %1623 = vmatprep.mubr.f32.mxu0 0.0
    %1624 = vmatmul.mubr.f32.gmra.mrb[0].mxu0 %v1557
    %v1625 = vpop.f32.mrb[0].mxu0
    %v1626 = vadd.f32 %v46, %v1625
    %v1627 = vpop.f32.mrb[0].mxu0
    %1628 = vdwg.mxu0
    %1629 = vmatprep.subr.mxu0 0.0
    %1630 = vmatpush1.msra.mxu0 %v152
    %1631 = vmatprep.subr.mxu0 0.0
    %1632 = vmatpush1.msra.mxu0 0.0
    %1633 = vmatprep.subr.mxu0 0.0
    %1634 = vmatpush1.msra.mxu0 0.0
    %1635 = vmatprep.subr.mxu0 0.0
    %1636 = vmatpush1.msra.mxu0 0.0
    %1637 = vmatprep.subr.mxu0 0.0
    %1638 = vmatpush1.msra.mxu0 0.0
    %1639 = vmatprep.subr.mxu0 0.0
    %1640 = vmatpush1.msra.mxu0 0.0
    %1641 = vmatprep.subr.mxu0 0.0
    %1642 = vmatpush1.msra.mxu0 0.0
    %1643 = vmatprep.subr.mxu0 0.0
    %1644 = vmatpush1.msra.mxu0 0.0
    %1645 = vmatprep.subr.mxu0 0.0
    %1646 = vmatpush1.msra.mxu0 0.0
    %1647 = vmatprep.subr.mxu0 0.0
    %1648 = vmatpush1.msra.mxu0 0.0
    %1649 = vmatprep.subr.mxu0 0.0
    %1650 = vmatpush1.msra.mxu0 0.0
    %1651 = vmatprep.subr.mxu0 0.0
    %1652 = vmatpush1.msra.mxu0 0.0
    %1653 = vmatprep.subr.mxu0 0.0
    %1654 = vmatpush1.msra.mxu0 0.0
    %1655 = vmatprep.subr.mxu0 0.0
    %1656 = vmatpush1.msra.mxu0 0.0
    %1657 = vmatprep.subr.mxu0 0.0
    %1658 = vmatpush1.msra.mxu0 0.0
    %1659 = vmatprep.subr.mxu0 0.0
    %1660 = vmatpush1.msra.mxu0 0.0
    %1661 = vmatprep.subr.mxu0 0.0
    %1662 = vmatpush1.msra.mxu0 0.0
    %1663 = vmatprep.subr.mxu0 0.0
    %1664 = vmatpush1.msra.mxu0 0.0
    %1665 = vmatprep.subr.mxu0 0.0
    %1666 = vmatpush1.msra.mxu0 0.0
    %1667 = vmatprep.subr.mxu0 0.0
    %1668 = vmatpush1.msra.mxu0 0.0
    %1669 = vmatprep.subr.mxu0 0.0
    %1670 = vmatpush1.msra.mxu0 0.0
    %1671 = vmatprep.subr.mxu0 0.0
    %1672 = vmatpush1.msra.mxu0 0.0
    %1673 = vmatprep.subr.mxu0 0.0
    %1674 = vmatpush1.msra.mxu0 0.0
    %1675 = vmatprep.subr.mxu0 0.0
    %1676 = vmatpush1.msra.mxu0 0.0
    %1677 = vmatprep.subr.mxu0 0.0
    %1678 = vmatpush1.msra.mxu0 0.0
    %1679 = vmatprep.subr.mxu0 0.0
    %1680 = vmatpush1.msra.mxu0 0.0
    %1681 = vmatprep.subr.mxu0 0.0
    %1682 = vmatpush1.msra.mxu0 0.0
    %1683 = vmatprep.subr.mxu0 0.0
    %1684 = vmatpush1.msra.mxu0 0.0
    %1685 = vmatprep.subr.mxu0 0.0
    %1686 = vmatpush1.msra.mxu0 0.0
    %1687 = vmatprep.subr.mxu0 0.0
    %1688 = vmatpush1.msra.mxu0 0.0
    %1689 = vmatprep.subr.mxu0 0.0
    %1690 = vmatpush1.msra.mxu0 0.0
    %1691 = vmatprep.subr.mxu0 0.0
    %1692 = vmatpush1.msra.mxu0 0.0
    %1693 = vmatprep.mubr.f32.mxu0 0.0
    %1694 = vmatmul.mubr.f32.gmra.mrb[0].mxu0 %v1557
    %v1695 = vpop.f32.mrb[0].mxu0
    %v1696 = vadd.f32 %v54, %v1695
    %v1697 = vpop.f32.mrb[0].mxu0
    %1698 = vdwg.mxu0
    %1699 = vmatprep.subr.mxu0 0.0
    %1700 = vmatpush1.msra.mxu0 %v225
    %1701 = vmatprep.subr.mxu0 0.0
    %1702 = vmatpush1.msra.mxu0 0.0
    %1703 = vmatprep.subr.mxu0 0.0
    %1704 = vmatpush1.msra.mxu0 0.0
    %1705 = vmatprep.subr.mxu0 0.0
    %1706 = vmatpush1.msra.mxu0 0.0
    %1707 = vmatprep.subr.mxu0 0.0
    %1708 = vmatpush1.msra.mxu0 0.0
    %1709 = vmatprep.subr.mxu0 0.0
    %1710 = vmatpush1.msra.mxu0 0.0
    %1711 = vmatprep.subr.mxu0 0.0
    %1712 = vmatpush1.msra.mxu0 0.0
    %1713 = vmatprep.subr.mxu0 0.0
    %1714 = vmatpush1.msra.mxu0 0.0
    %1715 = vmatprep.subr.mxu0 0.0
    %1716 = vmatpush1.msra.mxu0 0.0
    %1717 = vmatprep.subr.mxu0 0.0
    %1718 = vmatpush1.msra.mxu0 0.0
    %1719 = vmatprep.subr.mxu0 0.0
    %1720 = vmatpush1.msra.mxu0 0.0
    %1721 = vmatprep.subr.mxu0 0.0
    %1722 = vmatpush1.msra.mxu0 0.0
    %1723 = vmatprep.subr.mxu0 0.0
    %1724 = vmatpush1.msra.mxu0 0.0
    %1725 = vmatprep.subr.mxu0 0.0
    %1726 = vmatpush1.msra.mxu0 0.0
    %1727 = vmatprep.subr.mxu0 0.0
    %1728 = vmatpush1.msra.mxu0 0.0
    %1729 = vmatprep.subr.mxu0 0.0
    %1730 = vmatpush1.msra.mxu0 0.0
    %1731 = vmatprep.subr.mxu0 0.0
    %1732 = vmatpush1.msra.mxu0 0.0
    %1733 = vmatprep.subr.mxu0 0.0
    %1734 = vmatpush1.msra.mxu0 0.0
    %1735 = vmatprep.subr.mxu0 0.0
    %1736 = vmatpush1.msra.mxu0 0.0
    %1737 = vmatprep.subr.mxu0 0.0
    %1738 = vmatpush1.msra.mxu0 0.0
    %1739 = vmatprep.subr.mxu0 0.0
    %1740 = vmatpush1.msra.mxu0 0.0
    %1741 = vmatprep.subr.mxu0 0.0
    %1742 = vmatpush1.msra.mxu0 0.0
    %1743 = vmatprep.subr.mxu0 0.0
    %1744 = vmatpush1.msra.mxu0 0.0
    %1745 = vmatprep.subr.mxu0 0.0
    %1746 = vmatpush1.msra.mxu0 0.0
    %1747 = vmatprep.subr.mxu0 0.0
    %1748 = vmatpush1.msra.mxu0 0.0
    %1749 = vmatprep.subr.mxu0 0.0
    %1750 = vmatpush1.msra.mxu0 0.0
    %1751 = vmatprep.subr.mxu0 0.0
    %1752 = vmatpush1.msra.mxu0 0.0
    %1753 = vmatprep.subr.mxu0 0.0
    %1754 = vmatpush1.msra.mxu0 0.0
    %1755 = vmatprep.subr.mxu0 0.0
    %1756 = vmatpush1.msra.mxu0 0.0
    %1757 = vmatprep.subr.mxu0 0.0
    %1758 = vmatpush1.msra.mxu0 0.0
    %1759 = vmatprep.subr.mxu0 0.0
    %1760 = vmatpush1.msra.mxu0 0.0
    %1761 = vmatprep.subr.mxu0 0.0
    %1762 = vmatpush1.msra.mxu0 0.0
    %1763 = vmatprep.mubr.f32.mxu0 0.0
    %1764 = vmatmul.mubr.f32.gmra.mrb[0].mxu0 %v1557
    %v1765 = vpop.f32.mrb[0].mxu0
    %v1766 = vadd.f32 %v62, %v1765
    %v1767 = vpop.f32.mrb[0].mxu0
    %1768 = vdwg.mxu0
    %v1769 = vpack.c.bf16 %v1553, %v1553
    %v1771 = vsel %vm309, %v1769, 0
    %1773 = vmatprep.subr.bf16.mxu0 0
    %1774 = vmatpush1.bf16.msra.mxu0 %v305
    %1775 = vmatprep.subr.bf16.mxu0 0
    %1776 = vmatpush1.bf16.msra.mxu0 %v306
    %1777 = vmatprep.subr.bf16.mxu0 0
    %1778 = vmatpush1.bf16.msra.mxu0 0
    %1779 = vmatprep.subr.bf16.mxu0 0
    %1780 = vmatpush1.bf16.msra.mxu0 0
    %1781 = vmatprep.subr.bf16.mxu0 0
    %1782 = vmatpush1.bf16.msra.mxu0 0
    %1783 = vmatprep.subr.bf16.mxu0 0
    %1784 = vmatpush1.bf16.msra.mxu0 0
    %1785 = vmatprep.subr.bf16.mxu0 0
    %1786 = vmatpush1.bf16.msra.mxu0 0
    %1787 = vmatprep.subr.bf16.mxu0 0
    %1788 = vmatpush1.bf16.msra.mxu0 0
    %1789 = vmatprep.subr.bf16.mxu0 0
    %1790 = vmatpush1.bf16.msra.mxu0 0
    %1791 = vmatprep.subr.bf16.mxu0 0
    %1792 = vmatpush1.bf16.msra.mxu0 0
    %1793 = vmatprep.subr.bf16.mxu0 0
    %1794 = vmatpush1.bf16.msra.mxu0 0
    %1795 = vmatprep.subr.bf16.mxu0 0
    %1796 = vmatpush1.bf16.msra.mxu0 0
    %1797 = vmatprep.subr.bf16.mxu0 0
    %1798 = vmatpush1.bf16.msra.mxu0 0
    %1799 = vmatprep.subr.bf16.mxu0 0
    %1800 = vmatpush1.bf16.msra.mxu0 0
    %1801 = vmatprep.subr.bf16.mxu0 0
    %1802 = vmatpush1.bf16.msra.mxu0 0
    %1803 = vmatprep.subr.bf16.mxu0 0
    %1804 = vmatpush1.bf16.msra.mxu0 0
    %1805 = vmatprep.mubr.bf16.mxu0 0
    %1806 = vmatmul.mubr.bf16.gmra.mrb[0].mxu0 %v1771
    %v1807 = vpop.f32.mrb[0].mxu0
    %v1808 = vadd.f32 0.0, %v1807
    %v1809 = vpop.f32.mrb[0].mxu0
    %v1810 = vpop.f32.mrb[0].mxu0
    %v1811 = vpop.f32.mrb[0].mxu0
    %1812 = vdwg.mxu0
    %1813 = vmatprep.subr.bf16.mxu0 0
    %1814 = vmatpush1.bf16.msra.mxu0 %v361
    %1815 = vmatprep.subr.bf16.mxu0 0
    %1816 = vmatpush1.bf16.msra.mxu0 %v362
    %1817 = vmatprep.subr.bf16.mxu0 0
    %1818 = vmatpush1.bf16.msra.mxu0 0
    %1819 = vmatprep.subr.bf16.mxu0 0
    %1820 = vmatpush1.bf16.msra.mxu0 0
    %1821 = vmatprep.subr.bf16.mxu0 0
    %1822 = vmatpush1.bf16.msra.mxu0 0
    %1823 = vmatprep.subr.bf16.mxu0 0
    %1824 = vmatpush1.bf16.msra.mxu0 0
    %1825 = vmatprep.subr.bf16.mxu0 0
    %1826 = vmatpush1.bf16.msra.mxu0 0
    %1827 = vmatprep.subr.bf16.mxu0 0
    %1828 = vmatpush1.bf16.msra.mxu0 0
    %1829 = vmatprep.subr.bf16.mxu0 0
    %1830 = vmatpush1.bf16.msra.mxu0 0
    %1831 = vmatprep.subr.bf16.mxu0 0
    %1832 = vmatpush1.bf16.msra.mxu0 0
    %1833 = vmatprep.subr.bf16.mxu0 0
    %1834 = vmatpush1.bf16.msra.mxu0 0
    %1835 = vmatprep.subr.bf16.mxu0 0
    %1836 = vmatpush1.bf16.msra.mxu0 0
    %1837 = vmatprep.subr.bf16.mxu0 0
    %1838 = vmatpush1.bf16.msra.mxu0 0
    %1839 = vmatprep.subr.bf16.mxu0 0
    %1840 = vmatpush1.bf16.msra.mxu0 0
    %1841 = vmatprep.subr.bf16.mxu0 0
    %1842 = vmatpush1.bf16.msra.mxu0 0
    %1843 = vmatprep.subr.bf16.mxu0 0
    %1844 = vmatpush1.bf16.msra.mxu0 0
    %1845 = vmatprep.mubr.bf16.mxu0 0
    %1846 = vmatmul.mubr.bf16.gmra.mrb[0].mxu0 %v1771
    %v1847 = vpop.f32.mrb[0].mxu0
    %v1848 = vadd.f32 0.0, %v1847
    %v1849 = vpop.f32.mrb[0].mxu0
    %v1850 = vpop.f32.mrb[0].mxu0
    %v1851 = vpop.f32.mrb[0].mxu0
    %1852 = vdwg.mxu0
    %v1853 = vadd.f32 %v1626, %v1808
    %v1854 = vxor.u32 %v1853, 2147483648
    %v1855 = vmul.f32 %v1854, 1.442695
    %v1856 = vpow.pop %v1855
    %v1857 = vadd.f32 %v1856, 1.0
    %v1858 = vrcp.pop %v1857
    %v1859 = vmul.f32 1.0, %v1858
    %v1860 = vadd.f32 %v1696, %v1848
    %v1861 = vxor.u32 %v1860, 2147483648
    %v1862 = vmul.f32 %v1861, 1.442695
    %v1863 = vpow.pop %v1862
    %v1864 = vadd.f32 %v1863, 1.0
    %v1865 = vrcp.pop %v1864
    %v1866 = vmul.f32 1.0, %v1865
    %1867 = vmatprep.subr.bf16.mxu0 0
    %1868 = vmatpush1.bf16.msra.mxu0 %v427
    %1869 = vmatprep.subr.bf16.mxu0 0
    %1870 = vmatpush1.bf16.msra.mxu0 %v428
    %1871 = vmatprep.subr.bf16.mxu0 0
    %1872 = vmatpush1.bf16.msra.mxu0 0
    %1873 = vmatprep.subr.bf16.mxu0 0
    %1874 = vmatpush1.bf16.msra.mxu0 0
    %1875 = vmatprep.subr.bf16.mxu0 0
    %1876 = vmatpush1.bf16.msra.mxu0 0
    %1877 = vmatprep.subr.bf16.mxu0 0
    %1878 = vmatpush1.bf16.msra.mxu0 0
    %1879 = vmatprep.subr.bf16.mxu0 0
    %1880 = vmatpush1.bf16.msra.mxu0 0
    %1881 = vmatprep.subr.bf16.mxu0 0
    %1882 = vmatpush1.bf16.msra.mxu0 0
    %1883 = vmatprep.subr.bf16.mxu0 0
    %1884 = vmatpush1.bf16.msra.mxu0 0
    %1885 = vmatprep.subr.bf16.mxu0 0
    %1886 = vmatpush1.bf16.msra.mxu0 0
    %1887 = vmatprep.subr.bf16.mxu0 0
    %1888 = vmatpush1.bf16.msra.mxu0 0
    %1889 = vmatprep.subr.bf16.mxu0 0
    %1890 = vmatpush1.bf16.msra.mxu0 0
    %1891 = vmatprep.subr.bf16.mxu0 0
    %1892 = vmatpush1.bf16.msra.mxu0 0
    %1893 = vmatprep.subr.bf16.mxu0 0
    %1894 = vmatpush1.bf16.msra.mxu0 0
    %1895 = vmatprep.subr.bf16.mxu0 0
    %1896 = vmatpush1.bf16.msra.mxu0 0
    %1897 = vmatprep.subr.bf16.mxu0 0
    %1898 = vmatpush1.bf16.msra.mxu0 0
    %1899 = vmatprep.mubr.bf16.mxu0 0
    %1900 = vmatmul.mubr.bf16.gmra.mrb[0].mxu0 %v1771
    %v1901 = vpop.f32.mrb[0].mxu0
    %v1902 = vadd.f32 %v70, %v1901
    %v1903 = vpop.f32.mrb[0].mxu0
    %v1904 = vpop.f32.mrb[0].mxu0
    %v1905 = vpop.f32.mrb[0].mxu0
    %1906 = vdwg.mxu0
    %v1907 = vmul.f32 %v1859, %v1902
    %v1908 = vadd.f32 %v1766, %v1907
    %v1909 = vtanh.pop %v1908
    %v1910 = vsub.f32 %v1553, %v1909
    %v1911 = vmul.f32 %v1866, %v1910
    %v1912 = vadd.f32 %v1909, %v1911
    %s1913 = scalar_lea.vmem %s0, 10
    %v1914 = vld [vmem:[%s1913] sm:$0x3]
    %v1916 = vsel %vm73, %v1914, 0
    %1918 = vmatprep.subr.mxu0 0.0
    %1919 = vmatpush1.msra.mxu0 %v79
    %1920 = vmatprep.subr.mxu0 0.0
    %1921 = vmatpush1.msra.mxu0 0.0
    %1922 = vmatprep.subr.mxu0 0.0
    %1923 = vmatpush1.msra.mxu0 0.0
    %1924 = vmatprep.subr.mxu0 0.0
    %1925 = vmatpush1.msra.mxu0 0.0
    %1926 = vmatprep.subr.mxu0 0.0
    %1927 = vmatpush1.msra.mxu0 0.0
    %1928 = vmatprep.subr.mxu0 0.0
    %1929 = vmatpush1.msra.mxu0 0.0
    %1930 = vmatprep.subr.mxu0 0.0
    %1931 = vmatpush1.msra.mxu0 0.0
    %1932 = vmatprep.subr.mxu0 0.0
    %1933 = vmatpush1.msra.mxu0 0.0
    %1934 = vmatprep.subr.mxu0 0.0
    %1935 = vmatpush1.msra.mxu0 0.0
    %1936 = vmatprep.subr.mxu0 0.0
    %1937 = vmatpush1.msra.mxu0 0.0
    %1938 = vmatprep.subr.mxu0 0.0
    %1939 = vmatpush1.msra.mxu0 0.0
    %1940 = vmatprep.subr.mxu0 0.0
    %1941 = vmatpush1.msra.mxu0 0.0
    %1942 = vmatprep.subr.mxu0 0.0
    %1943 = vmatpush1.msra.mxu0 0.0
    %1944 = vmatprep.subr.mxu0 0.0
    %1945 = vmatpush1.msra.mxu0 0.0
    %1946 = vmatprep.subr.mxu0 0.0
    %1947 = vmatpush1.msra.mxu0 0.0
    %1948 = vmatprep.subr.mxu0 0.0
    %1949 = vmatpush1.msra.mxu0 0.0
    %1950 = vmatprep.subr.mxu0 0.0
    %1951 = vmatpush1.msra.mxu0 0.0
    %1952 = vmatprep.subr.mxu0 0.0
    %1953 = vmatpush1.msra.mxu0 0.0
    %1954 = vmatprep.subr.mxu0 0.0
    %1955 = vmatpush1.msra.mxu0 0.0
    %1956 = vmatprep.subr.mxu0 0.0
    %1957 = vmatpush1.msra.mxu0 0.0
    %1958 = vmatprep.subr.mxu0 0.0
    %1959 = vmatpush1.msra.mxu0 0.0
    %1960 = vmatprep.subr.mxu0 0.0
    %1961 = vmatpush1.msra.mxu0 0.0
    %1962 = vmatprep.subr.mxu0 0.0
    %1963 = vmatpush1.msra.mxu0 0.0
    %1964 = vmatprep.subr.mxu0 0.0
    %1965 = vmatpush1.msra.mxu0 0.0
    %1966 = vmatprep.subr.mxu0 0.0
    %1967 = vmatpush1.msra.mxu0 0.0
    %1968 = vmatprep.subr.mxu0 0.0
    %1969 = vmatpush1.msra.mxu0 0.0
    %1970 = vmatprep.subr.mxu0 0.0
    %1971 = vmatpush1.msra.mxu0 0.0
    %1972 = vmatprep.subr.mxu0 0.0
    %1973 = vmatpush1.msra.mxu0 0.0
    %1974 = vmatprep.subr.mxu0 0.0
    %1975 = vmatpush1.msra.mxu0 0.0
    %1976 = vmatprep.subr.mxu0 0.0
    %1977 = vmatpush1.msra.mxu0 0.0
    %1978 = vmatprep.subr.mxu0 0.0
    %1979 = vmatpush1.msra.mxu0 0.0
    %1980 = vmatprep.subr.mxu0 0.0
    %1981 = vmatpush1.msra.mxu0 0.0
    %1982 = vmatprep.mubr.f32.mxu0 0.0
    %1983 = vmatmul.mubr.f32.gmra.mrb[0].mxu0 %v1916
    %v1984 = vpop.f32.mrb[0].mxu0
    %v1985 = vadd.f32 %v46, %v1984
    %v1986 = vpop.f32.mrb[0].mxu0
    %1987 = vdwg.mxu0
    %1988 = vmatprep.subr.mxu0 0.0
    %1989 = vmatpush1.msra.mxu0 %v152
    %1990 = vmatprep.subr.mxu0 0.0
    %1991 = vmatpush1.msra.mxu0 0.0
    %1992 = vmatprep.subr.mxu0 0.0
    %1993 = vmatpush1.msra.mxu0 0.0
    %1994 = vmatprep.subr.mxu0 0.0
    %1995 = vmatpush1.msra.mxu0 0.0
    %1996 = vmatprep.subr.mxu0 0.0
    %1997 = vmatpush1.msra.mxu0 0.0
    %1998 = vmatprep.subr.mxu0 0.0
    %1999 = vmatpush1.msra.mxu0 0.0
    %2000 = vmatprep.subr.mxu0 0.0
    %2001 = vmatpush1.msra.mxu0 0.0
    %2002 = vmatprep.subr.mxu0 0.0
    %2003 = vmatpush1.msra.mxu0 0.0
    %2004 = vmatprep.subr.mxu0 0.0
    %2005 = vmatpush1.msra.mxu0 0.0
    %2006 = vmatprep.subr.mxu0 0.0
    %2007 = vmatpush1.msra.mxu0 0.0
    %2008 = vmatprep.subr.mxu0 0.0
    %2009 = vmatpush1.msra.mxu0 0.0
    %2010 = vmatprep.subr.mxu0 0.0
    %2011 = vmatpush1.msra.mxu0 0.0
    %2012 = vmatprep.subr.mxu0 0.0
    %2013 = vmatpush1.msra.mxu0 0.0
    %2014 = vmatprep.subr.mxu0 0.0
    %2015 = vmatpush1.msra.mxu0 0.0
    %2016 = vmatprep.subr.mxu0 0.0
    %2017 = vmatpush1.msra.mxu0 0.0
    %2018 = vmatprep.subr.mxu0 0.0
    %2019 = vmatpush1.msra.mxu0 0.0
    %2020 = vmatprep.subr.mxu0 0.0
    %2021 = vmatpush1.msra.mxu0 0.0
    %2022 = vmatprep.subr.mxu0 0.0
    %2023 = vmatpush1.msra.mxu0 0.0
    %2024 = vmatprep.subr.mxu0 0.0
    %2025 = vmatpush1.msra.mxu0 0.0
    %2026 = vmatprep.subr.mxu0 0.0
    %2027 = vmatpush1.msra.mxu0 0.0
    %2028 = vmatprep.subr.mxu0 0.0
    %2029 = vmatpush1.msra.mxu0 0.0
    %2030 = vmatprep.subr.mxu0 0.0
    %2031 = vmatpush1.msra.mxu0 0.0
    %2032 = vmatprep.subr.mxu0 0.0
    %2033 = vmatpush1.msra.mxu0 0.0
    %2034 = vmatprep.subr.mxu0 0.0
    %2035 = vmatpush1.msra.mxu0 0.0
    %2036 = vmatprep.subr.mxu0 0.0
    %2037 = vmatpush1.msra.mxu0 0.0
    %2038 = vmatprep.subr.mxu0 0.0
    %2039 = vmatpush1.msra.mxu0 0.0
    %2040 = vmatprep.subr.mxu0 0.0
    %2041 = vmatpush1.msra.mxu0 0.0
    %2042 = vmatprep.subr.mxu0 0.0
    %2043 = vmatpush1.msra.mxu0 0.0
    %2044 = vmatprep.subr.mxu0 0.0
    %2045 = vmatpush1.msra.mxu0 0.0
    %2046 = vmatprep.subr.mxu0 0.0
    %2047 = vmatpush1.msra.mxu0 0.0
    %2048 = vmatprep.subr.mxu0 0.0
    %2049 = vmatpush1.msra.mxu0 0.0
    %2050 = vmatprep.subr.mxu0 0.0
    %2051 = vmatpush1.msra.mxu0 0.0
    %2052 = vmatprep.mubr.f32.mxu0 0.0
    %2053 = vmatmul.mubr.f32.gmra.mrb[0].mxu0 %v1916
    %v2054 = vpop.f32.mrb[0].mxu0
    %v2055 = vadd.f32 %v54, %v2054
    %v2056 = vpop.f32.mrb[0].mxu0
    %2057 = vdwg.mxu0
    %2058 = vmatprep.subr.mxu0 0.0
    %2059 = vmatpush1.msra.mxu0 %v225
    %2060 = vmatprep.subr.mxu0 0.0
    %2061 = vmatpush1.msra.mxu0 0.0
    %2062 = vmatprep.subr.mxu0 0.0
    %2063 = vmatpush1.msra.mxu0 0.0
    %2064 = vmatprep.subr.mxu0 0.0
    %2065 = vmatpush1.msra.mxu0 0.0
    %2066 = vmatprep.subr.mxu0 0.0
    %2067 = vmatpush1.msra.mxu0 0.0
    %2068 = vmatprep.subr.mxu0 0.0
    %2069 = vmatpush1.msra.mxu0 0.0
    %2070 = vmatprep.subr.mxu0 0.0
    %2071 = vmatpush1.msra.mxu0 0.0
    %2072 = vmatprep.subr.mxu0 0.0
    %2073 = vmatpush1.msra.mxu0 0.0
    %2074 = vmatprep.subr.mxu0 0.0
    %2075 = vmatpush1.msra.mxu0 0.0
    %2076 = vmatprep.subr.mxu0 0.0
    %2077 = vmatpush1.msra.mxu0 0.0
    %2078 = vmatprep.subr.mxu0 0.0
    %2079 = vmatpush1.msra.mxu0 0.0
    %2080 = vmatprep.subr.mxu0 0.0
    %2081 = vmatpush1.msra.mxu0 0.0
    %2082 = vmatprep.subr.mxu0 0.0
    %2083 = vmatpush1.msra.mxu0 0.0
    %2084 = vmatprep.subr.mxu0 0.0
    %2085 = vmatpush1.msra.mxu0 0.0
    %2086 = vmatprep.subr.mxu0 0.0
    %2087 = vmatpush1.msra.mxu0 0.0
    %2088 = vmatprep.subr.mxu0 0.0
    %2089 = vmatpush1.msra.mxu0 0.0
    %2090 = vmatprep.subr.mxu0 0.0
    %2091 = vmatpush1.msra.mxu0 0.0
    %2092 = vmatprep.subr.mxu0 0.0
    %2093 = vmatpush1.msra.mxu0 0.0
    %2094 = vmatprep.subr.mxu0 0.0
    %2095 = vmatpush1.msra.mxu0 0.0
    %2096 = vmatprep.subr.mxu0 0.0
    %2097 = vmatpush1.msra.mxu0 0.0
    %2098 = vmatprep.subr.mxu0 0.0
    %2099 = vmatpush1.msra.mxu0 0.0
    %2100 = vmatprep.subr.mxu0 0.0
    %2101 = vmatpush1.msra.mxu0 0.0
    %2102 = vmatprep.subr.mxu0 0.0
    %2103 = vmatpush1.msra.mxu0 0.0
    %2104 = vmatprep.subr.mxu0 0.0
    %2105 = vmatpush1.msra.mxu0 0.0
    %2106 = vmatprep.subr.mxu0 0.0
    %2107 = vmatpush1.msra.mxu0 0.0
    %2108 = vmatprep.subr.mxu0 0.0
    %2109 = vmatpush1.msra.mxu0 0.0
    %2110 = vmatprep.subr.mxu0 0.0
    %2111 = vmatpush1.msra.mxu0 0.0
    %2112 = vmatprep.subr.mxu0 0.0
    %2113 = vmatpush1.msra.mxu0 0.0
    %2114 = vmatprep.subr.mxu0 0.0
    %2115 = vmatpush1.msra.mxu0 0.0
    %2116 = vmatprep.subr.mxu0 0.0
    %2117 = vmatpush1.msra.mxu0 0.0
    %2118 = vmatprep.subr.mxu0 0.0
    %2119 = vmatpush1.msra.mxu0 0.0
    %2120 = vmatprep.subr.mxu0 0.0
    %2121 = vmatpush1.msra.mxu0 0.0
    %2122 = vmatprep.mubr.f32.mxu0 0.0
    %2123 = vmatmul.mubr.f32.gmra.mrb[0].mxu0 %v1916
    %v2124 = vpop.f32.mrb[0].mxu0
    %v2125 = vadd.f32 %v62, %v2124
    %v2126 = vpop.f32.mrb[0].mxu0
    %2127 = vdwg.mxu0
    %v2128 = vpack.c.bf16 %v1912, %v1912
    %v2130 = vsel %vm309, %v2128, 0
    %2132 = vmatprep.subr.bf16.mxu0 0
    %2133 = vmatpush1.bf16.msra.mxu0 %v305
    %2134 = vmatprep.subr.bf16.mxu0 0
    %2135 = vmatpush1.bf16.msra.mxu0 %v306
    %2136 = vmatprep.subr.bf16.mxu0 0
    %2137 = vmatpush1.bf16.msra.mxu0 0
    %2138 = vmatprep.subr.bf16.mxu0 0
    %2139 = vmatpush1.bf16.msra.mxu0 0
    %2140 = vmatprep.subr.bf16.mxu0 0
    %2141 = vmatpush1.bf16.msra.mxu0 0
    %2142 = vmatprep.subr.bf16.mxu0 0
    %2143 = vmatpush1.bf16.msra.mxu0 0
    %2144 = vmatprep.subr.bf16.mxu0 0
    %2145 = vmatpush1.bf16.msra.mxu0 0
    %2146 = vmatprep.subr.bf16.mxu0 0
    %2147 = vmatpush1.bf16.msra.mxu0 0
    %2148 = vmatprep.subr.bf16.mxu0 0
    %2149 = vmatpush1.bf16.msra.mxu0 0
    %2150 = vmatprep.subr.bf16.mxu0 0
    %2151 = vmatpush1.bf16.msra.mxu0 0
    %2152 = vmatprep.subr.bf16.mxu0 0
    %2153 = vmatpush1.bf16.msra.mxu0 0
    %2154 = vmatprep.subr.bf16.mxu0 0
    %2155 = vmatpush1.bf16.msra.mxu0 0
    %2156 = vmatprep.subr.bf16.mxu0 0
    %2157 = vmatpush1.bf16.msra.mxu0 0
    %2158 = vmatprep.subr.bf16.mxu0 0
    %2159 = vmatpush1.bf16.msra.mxu0 0
    %2160 = vmatprep.subr.bf16.mxu0 0
    %2161 = vmatpush1.bf16.msra.mxu0 0
    %2162 = vmatprep.subr.bf16.mxu0 0
    %2163 = vmatpush1.bf16.msra.mxu0 0
    %2164 = vmatprep.mubr.bf16.mxu0 0
    %2165 = vmatmul.mubr.bf16.gmra.mrb[0].mxu0 %v2130
    %v2166 = vpop.f32.mrb[0].mxu0
    %v2167 = vadd.f32 0.0, %v2166
    %v2168 = vpop.f32.mrb[0].mxu0
    %v2169 = vpop.f32.mrb[0].mxu0
    %v2170 = vpop.f32.mrb[0].mxu0
    %2171 = vdwg.mxu0
    %2172 = vmatprep.subr.bf16.mxu0 0
    %2173 = vmatpush1.bf16.msra.mxu0 %v361
    %2174 = vmatprep.subr.bf16.mxu0 0
    %2175 = vmatpush1.bf16.msra.mxu0 %v362
    %2176 = vmatprep.subr.bf16.mxu0 0
    %2177 = vmatpush1.bf16.msra.mxu0 0
    %2178 = vmatprep.subr.bf16.mxu0 0
    %2179 = vmatpush1.bf16.msra.mxu0 0
    %2180 = vmatprep.subr.bf16.mxu0 0
    %2181 = vmatpush1.bf16.msra.mxu0 0
    %2182 = vmatprep.subr.bf16.mxu0 0
    %2183 = vmatpush1.bf16.msra.mxu0 0
    %2184 = vmatprep.subr.bf16.mxu0 0
    %2185 = vmatpush1.bf16.msra.mxu0 0
    %2186 = vmatprep.subr.bf16.mxu0 0
    %2187 = vmatpush1.bf16.msra.mxu0 0
    %2188 = vmatprep.subr.bf16.mxu0 0
    %2189 = vmatpush1.bf16.msra.mxu0 0
    %2190 = vmatprep.subr.bf16.mxu0 0
    %2191 = vmatpush1.bf16.msra.mxu0 0
    %2192 = vmatprep.subr.bf16.mxu0 0
    %2193 = vmatpush1.bf16.msra.mxu0 0
    %2194 = vmatprep.subr.bf16.mxu0 0
    %2195 = vmatpush1.bf16.msra.mxu0 0
    %2196 = vmatprep.subr.bf16.mxu0 0
    %2197 = vmatpush1.bf16.msra.mxu0 0
    %2198 = vmatprep.subr.bf16.mxu0 0
    %2199 = vmatpush1.bf16.msra.mxu0 0
    %2200 = vmatprep.subr.bf16.mxu0 0
    %2201 = vmatpush1.bf16.msra.mxu0 0
    %2202 = vmatprep.subr.bf16.mxu0 0
    %2203 = vmatpush1.bf16.msra.mxu0 0
    %2204 = vmatprep.mubr.bf16.mxu0 0
    %2205 = vmatmul.mubr.bf16.gmra.mrb[0].mxu0 %v2130
    %v2206 = vpop.f32.mrb[0].mxu0
    %v2207 = vadd.f32 0.0, %v2206
    %v2208 = vpop.f32.mrb[0].mxu0
    %v2209 = vpop.f32.mrb[0].mxu0
    %v2210 = vpop.f32.mrb[0].mxu0
    %2211 = vdwg.mxu0
    %v2212 = vadd.f32 %v1985, %v2167
    %v2213 = vxor.u32 %v2212, 2147483648
    %v2214 = vmul.f32 %v2213, 1.442695
    %v2215 = vpow.pop %v2214
    %v2216 = vadd.f32 %v2215, 1.0
    %v2217 = vrcp.pop %v2216
    %v2218 = vmul.f32 1.0, %v2217
    %v2219 = vadd.f32 %v2055, %v2207
    %v2220 = vxor.u32 %v2219, 2147483648
    %v2221 = vmul.f32 %v2220, 1.442695
    %v2222 = vpow.pop %v2221
    %v2223 = vadd.f32 %v2222, 1.0
    %v2224 = vrcp.pop %v2223
    %v2225 = vmul.f32 1.0, %v2224
    %2226 = vmatprep.subr.bf16.mxu0 0
    %2227 = vmatpush1.bf16.msra.mxu0 %v427
    %2228 = vmatprep.subr.bf16.mxu0 0
    %2229 = vmatpush1.bf16.msra.mxu0 %v428
    %2230 = vmatprep.subr.bf16.mxu0 0
    %2231 = vmatpush1.bf16.msra.mxu0 0
    %2232 = vmatprep.subr.bf16.mxu0 0
    %2233 = vmatpush1.bf16.msra.mxu0 0
    %2234 = vmatprep.subr.bf16.mxu0 0
    %2235 = vmatpush1.bf16.msra.mxu0 0
    %2236 = vmatprep.subr.bf16.mxu0 0
    %2237 = vmatpush1.bf16.msra.mxu0 0
    %2238 = vmatprep.subr.bf16.mxu0 0
    %2239 = vmatpush1.bf16.msra.mxu0 0
    %2240 = vmatprep.subr.bf16.mxu0 0
    %2241 = vmatpush1.bf16.msra.mxu0 0
    %2242 = vmatprep.subr.bf16.mxu0 0
    %2243 = vmatpush1.bf16.msra.mxu0 0
    %2244 = vmatprep.subr.bf16.mxu0 0
    %2245 = vmatpush1.bf16.msra.mxu0 0
    %2246 = vmatprep.subr.bf16.mxu0 0
    %2247 = vmatpush1.bf16.msra.mxu0 0
    %2248 = vmatprep.subr.bf16.mxu0 0
    %2249 = vmatpush1.bf16.msra.mxu0 0
    %2250 = vmatprep.subr.bf16.mxu0 0
    %2251 = vmatpush1.bf16.msra.mxu0 0
    %2252 = vmatprep.subr.bf16.mxu0 0
    %2253 = vmatpush1.bf16.msra.mxu0 0
    %2254 = vmatprep.subr.bf16.mxu0 0
    %2255 = vmatpush1.bf16.msra.mxu0 0
    %2256 = vmatprep.subr.bf16.mxu0 0
    %2257 = vmatpush1.bf16.msra.mxu0 0
    %2258 = vmatprep.mubr.bf16.mxu0 0
    %2259 = vmatmul.mubr.bf16.gmra.mrb[0].mxu0 %v2130
    %v2260 = vpop.f32.mrb[0].mxu0
    %v2261 = vadd.f32 %v70, %v2260
    %v2262 = vpop.f32.mrb[0].mxu0
    %v2263 = vpop.f32.mrb[0].mxu0
    %v2264 = vpop.f32.mrb[0].mxu0
    %2265 = vdwg.mxu0
    %v2266 = vmul.f32 %v2218, %v2261
    %v2267 = vadd.f32 %v2125, %v2266
    %v2268 = vtanh.pop %v2267
    %v2269 = vsub.f32 %v1912, %v2268
    %v2270 = vmul.f32 %v2225, %v2269
    %v2271 = vadd.f32 %v2268, %v2270
    %s2272 = scalar_lea.vmem %s0, 12
    %v2273 = vld [vmem:[%s2272] sm:$0x3]
    %v2275 = vsel %vm73, %v2273, 0
    %2277 = vmatprep.subr.mxu0 0.0
    %2278 = vmatpush1.msra.mxu0 %v79
    %2279 = vmatprep.subr.mxu0 0.0
    %2280 = vmatpush1.msra.mxu0 0.0
    %2281 = vmatprep.subr.mxu0 0.0
    %2282 = vmatpush1.msra.mxu0 0.0
    %2283 = vmatprep.subr.mxu0 0.0
    %2284 = vmatpush1.msra.mxu0 0.0
    %2285 = vmatprep.subr.mxu0 0.0
    %2286 = vmatpush1.msra.mxu0 0.0
    %2287 = vmatprep.subr.mxu0 0.0
    %2288 = vmatpush1.msra.mxu0 0.0
    %2289 = vmatprep.subr.mxu0 0.0
    %2290 = vmatpush1.msra.mxu0 0.0
    %2291 = vmatprep.subr.mxu0 0.0
    %2292 = vmatpush1.msra.mxu0 0.0
    %2293 = vmatprep.subr.mxu0 0.0
    %2294 = vmatpush1.msra.mxu0 0.0
    %2295 = vmatprep.subr.mxu0 0.0
    %2296 = vmatpush1.msra.mxu0 0.0
    %2297 = vmatprep.subr.mxu0 0.0
    %2298 = vmatpush1.msra.mxu0 0.0
    %2299 = vmatprep.subr.mxu0 0.0
    %2300 = vmatpush1.msra.mxu0 0.0
    %2301 = vmatprep.subr.mxu0 0.0
    %2302 = vmatpush1.msra.mxu0 0.0
    %2303 = vmatprep.subr.mxu0 0.0
    %2304 = vmatpush1.msra.mxu0 0.0
    %2305 = vmatprep.subr.mxu0 0.0
    %2306 = vmatpush1.msra.mxu0 0.0
    %2307 = vmatprep.subr.mxu0 0.0
    %2308 = vmatpush1.msra.mxu0 0.0
    %2309 = vmatprep.subr.mxu0 0.0
    %2310 = vmatpush1.msra.mxu0 0.0
    %2311 = vmatprep.subr.mxu0 0.0
    %2312 = vmatpush1.msra.mxu0 0.0
    %2313 = vmatprep.subr.mxu0 0.0
    %2314 = vmatpush1.msra.mxu0 0.0
    %2315 = vmatprep.subr.mxu0 0.0
    %2316 = vmatpush1.msra.mxu0 0.0
    %2317 = vmatprep.subr.mxu0 0.0
    %2318 = vmatpush1.msra.mxu0 0.0
    %2319 = vmatprep.subr.mxu0 0.0
    %2320 = vmatpush1.msra.mxu0 0.0
    %2321 = vmatprep.subr.mxu0 0.0
    %2322 = vmatpush1.msra.mxu0 0.0
    %2323 = vmatprep.subr.mxu0 0.0
    %2324 = vmatpush1.msra.mxu0 0.0
    %2325 = vmatprep.subr.mxu0 0.0
    %2326 = vmatpush1.msra.mxu0 0.0
    %2327 = vmatprep.subr.mxu0 0.0
    %2328 = vmatpush1.msra.mxu0 0.0
    %2329 = vmatprep.subr.mxu0 0.0
    %2330 = vmatpush1.msra.mxu0 0.0
    %2331 = vmatprep.subr.mxu0 0.0
    %2332 = vmatpush1.msra.mxu0 0.0
    %2333 = vmatprep.subr.mxu0 0.0
    %2334 = vmatpush1.msra.mxu0 0.0
    %2335 = vmatprep.subr.mxu0 0.0
    %2336 = vmatpush1.msra.mxu0 0.0
    %2337 = vmatprep.subr.mxu0 0.0
    %2338 = vmatpush1.msra.mxu0 0.0
    %2339 = vmatprep.subr.mxu0 0.0
    %2340 = vmatpush1.msra.mxu0 0.0
    %2341 = vmatprep.mubr.f32.mxu0 0.0
    %2342 = vmatmul.mubr.f32.gmra.mrb[0].mxu0 %v2275
    %v2343 = vpop.f32.mrb[0].mxu0
    %v2344 = vadd.f32 %v46, %v2343
    %v2345 = vpop.f32.mrb[0].mxu0
    %2346 = vdwg.mxu0
    %2347 = vmatprep.subr.mxu0 0.0
    %2348 = vmatpush1.msra.mxu0 %v152
    %2349 = vmatprep.subr.mxu0 0.0
    %2350 = vmatpush1.msra.mxu0 0.0
    %2351 = vmatprep.subr.mxu0 0.0
    %2352 = vmatpush1.msra.mxu0 0.0
    %2353 = vmatprep.subr.mxu0 0.0
    %2354 = vmatpush1.msra.mxu0 0.0
    %2355 = vmatprep.subr.mxu0 0.0
    %2356 = vmatpush1.msra.mxu0 0.0
    %2357 = vmatprep.subr.mxu0 0.0
    %2358 = vmatpush1.msra.mxu0 0.0
    %2359 = vmatprep.subr.mxu0 0.0
    %2360 = vmatpush1.msra.mxu0 0.0
    %2361 = vmatprep.subr.mxu0 0.0
    %2362 = vmatpush1.msra.mxu0 0.0
    %2363 = vmatprep.subr.mxu0 0.0
    %2364 = vmatpush1.msra.mxu0 0.0
    %2365 = vmatprep.subr.mxu0 0.0
    %2366 = vmatpush1.msra.mxu0 0.0
    %2367 = vmatprep.subr.mxu0 0.0
    %2368 = vmatpush1.msra.mxu0 0.0
    %2369 = vmatprep.subr.mxu0 0.0
    %2370 = vmatpush1.msra.mxu0 0.0
    %2371 = vmatprep.subr.mxu0 0.0
    %2372 = vmatpush1.msra.mxu0 0.0
    %2373 = vmatprep.subr.mxu0 0.0
    %2374 = vmatpush1.msra.mxu0 0.0
    %2375 = vmatprep.subr.mxu0 0.0
    %2376 = vmatpush1.msra.mxu0 0.0
    %2377 = vmatprep.subr.mxu0 0.0
    %2378 = vmatpush1.msra.mxu0 0.0
    %2379 = vmatprep.subr.mxu0 0.0
    %2380 = vmatpush1.msra.mxu0 0.0
    %2381 = vmatprep.subr.mxu0 0.0
    %2382 = vmatpush1.msra.mxu0 0.0
    %2383 = vmatprep.subr.mxu0 0.0
    %2384 = vmatpush1.msra.mxu0 0.0
    %2385 = vmatprep.subr.mxu0 0.0
    %2386 = vmatpush1.msra.mxu0 0.0
    %2387 = vmatprep.subr.mxu0 0.0
    %2388 = vmatpush1.msra.mxu0 0.0
    %2389 = vmatprep.subr.mxu0 0.0
    %2390 = vmatpush1.msra.mxu0 0.0
    %2391 = vmatprep.subr.mxu0 0.0
    %2392 = vmatpush1.msra.mxu0 0.0
    %2393 = vmatprep.subr.mxu0 0.0
    %2394 = vmatpush1.msra.mxu0 0.0
    %2395 = vmatprep.subr.mxu0 0.0
    %2396 = vmatpush1.msra.mxu0 0.0
    %2397 = vmatprep.subr.mxu0 0.0
    %2398 = vmatpush1.msra.mxu0 0.0
    %2399 = vmatprep.subr.mxu0 0.0
    %2400 = vmatpush1.msra.mxu0 0.0
    %2401 = vmatprep.subr.mxu0 0.0
    %2402 = vmatpush1.msra.mxu0 0.0
    %2403 = vmatprep.subr.mxu0 0.0
    %2404 = vmatpush1.msra.mxu0 0.0
    %2405 = vmatprep.subr.mxu0 0.0
    %2406 = vmatpush1.msra.mxu0 0.0
    %2407 = vmatprep.subr.mxu0 0.0
    %2408 = vmatpush1.msra.mxu0 0.0
    %2409 = vmatprep.subr.mxu0 0.0
    %2410 = vmatpush1.msra.mxu0 0.0
    %2411 = vmatprep.mubr.f32.mxu0 0.0
    %2412 = vmatmul.mubr.f32.gmra.mrb[0].mxu0 %v2275
    %v2413 = vpop.f32.mrb[0].mxu0
    %v2414 = vadd.f32 %v54, %v2413
    %v2415 = vpop.f32.mrb[0].mxu0
    %2416 = vdwg.mxu0
    %2417 = vmatprep.subr.mxu0 0.0
    %2418 = vmatpush1.msra.mxu0 %v225
    %2419 = vmatprep.subr.mxu0 0.0
    %2420 = vmatpush1.msra.mxu0 0.0
    %2421 = vmatprep.subr.mxu0 0.0
    %2422 = vmatpush1.msra.mxu0 0.0
    %2423 = vmatprep.subr.mxu0 0.0
    %2424 = vmatpush1.msra.mxu0 0.0
    %2425 = vmatprep.subr.mxu0 0.0
    %2426 = vmatpush1.msra.mxu0 0.0
    %2427 = vmatprep.subr.mxu0 0.0
    %2428 = vmatpush1.msra.mxu0 0.0
    %2429 = vmatprep.subr.mxu0 0.0
    %2430 = vmatpush1.msra.mxu0 0.0
    %2431 = vmatprep.subr.mxu0 0.0
    %2432 = vmatpush1.msra.mxu0 0.0
    %2433 = vmatprep.subr.mxu0 0.0
    %2434 = vmatpush1.msra.mxu0 0.0
    %2435 = vmatprep.subr.mxu0 0.0
    %2436 = vmatpush1.msra.mxu0 0.0
    %2437 = vmatprep.subr.mxu0 0.0
    %2438 = vmatpush1.msra.mxu0 0.0
    %2439 = vmatprep.subr.mxu0 0.0
    %2440 = vmatpush1.msra.mxu0 0.0
    %2441 = vmatprep.subr.mxu0 0.0
    %2442 = vmatpush1.msra.mxu0 0.0
    %2443 = vmatprep.subr.mxu0 0.0
    %2444 = vmatpush1.msra.mxu0 0.0
    %2445 = vmatprep.subr.mxu0 0.0
    %2446 = vmatpush1.msra.mxu0 0.0
    %2447 = vmatprep.subr.mxu0 0.0
    %2448 = vmatpush1.msra.mxu0 0.0
    %2449 = vmatprep.subr.mxu0 0.0
    %2450 = vmatpush1.msra.mxu0 0.0
    %2451 = vmatprep.subr.mxu0 0.0
    %2452 = vmatpush1.msra.mxu0 0.0
    %2453 = vmatprep.subr.mxu0 0.0
    %2454 = vmatpush1.msra.mxu0 0.0
    %2455 = vmatprep.subr.mxu0 0.0
    %2456 = vmatpush1.msra.mxu0 0.0
    %2457 = vmatprep.subr.mxu0 0.0
    %2458 = vmatpush1.msra.mxu0 0.0
    %2459 = vmatprep.subr.mxu0 0.0
    %2460 = vmatpush1.msra.mxu0 0.0
    %2461 = vmatprep.subr.mxu0 0.0
    %2462 = vmatpush1.msra.mxu0 0.0
    %2463 = vmatprep.subr.mxu0 0.0
    %2464 = vmatpush1.msra.mxu0 0.0
    %2465 = vmatprep.subr.mxu0 0.0
    %2466 = vmatpush1.msra.mxu0 0.0
    %2467 = vmatprep.subr.mxu0 0.0
    %2468 = vmatpush1.msra.mxu0 0.0
    %2469 = vmatprep.subr.mxu0 0.0
    %2470 = vmatpush1.msra.mxu0 0.0
    %2471 = vmatprep.subr.mxu0 0.0
    %2472 = vmatpush1.msra.mxu0 0.0
    %2473 = vmatprep.subr.mxu0 0.0
    %2474 = vmatpush1.msra.mxu0 0.0
    %2475 = vmatprep.subr.mxu0 0.0
    %2476 = vmatpush1.msra.mxu0 0.0
    %2477 = vmatprep.subr.mxu0 0.0
    %2478 = vmatpush1.msra.mxu0 0.0
    %2479 = vmatprep.subr.mxu0 0.0
    %2480 = vmatpush1.msra.mxu0 0.0
    %2481 = vmatprep.mubr.f32.mxu0 0.0
    %2482 = vmatmul.mubr.f32.gmra.mrb[0].mxu0 %v2275
    %v2483 = vpop.f32.mrb[0].mxu0
    %v2484 = vadd.f32 %v62, %v2483
    %v2485 = vpop.f32.mrb[0].mxu0
    %2486 = vdwg.mxu0
    %v2487 = vpack.c.bf16 %v2271, %v2271
    %v2489 = vsel %vm309, %v2487, 0
    %2491 = vmatprep.subr.bf16.mxu0 0
    %2492 = vmatpush1.bf16.msra.mxu0 %v305
    %2493 = vmatprep.subr.bf16.mxu0 0
    %2494 = vmatpush1.bf16.msra.mxu0 %v306
    %2495 = vmatprep.subr.bf16.mxu0 0
    %2496 = vmatpush1.bf16.msra.mxu0 0
    %2497 = vmatprep.subr.bf16.mxu0 0
    %2498 = vmatpush1.bf16.msra.mxu0 0
    %2499 = vmatprep.subr.bf16.mxu0 0
    %2500 = vmatpush1.bf16.msra.mxu0 0
    %2501 = vmatprep.subr.bf16.mxu0 0
    %2502 = vmatpush1.bf16.msra.mxu0 0
    %2503 = vmatprep.subr.bf16.mxu0 0
    %2504 = vmatpush1.bf16.msra.mxu0 0
    %2505 = vmatprep.subr.bf16.mxu0 0
    %2506 = vmatpush1.bf16.msra.mxu0 0
    %2507 = vmatprep.subr.bf16.mxu0 0
    %2508 = vmatpush1.bf16.msra.mxu0 0
    %2509 = vmatprep.subr.bf16.mxu0 0
    %2510 = vmatpush1.bf16.msra.mxu0 0
    %2511 = vmatprep.subr.bf16.mxu0 0
    %2512 = vmatpush1.bf16.msra.mxu0 0
    %2513 = vmatprep.subr.bf16.mxu0 0
    %2514 = vmatpush1.bf16.msra.mxu0 0
    %2515 = vmatprep.subr.bf16.mxu0 0
    %2516 = vmatpush1.bf16.msra.mxu0 0
    %2517 = vmatprep.subr.bf16.mxu0 0
    %2518 = vmatpush1.bf16.msra.mxu0 0
    %2519 = vmatprep.subr.bf16.mxu0 0
    %2520 = vmatpush1.bf16.msra.mxu0 0
    %2521 = vmatprep.subr.bf16.mxu0 0
    %2522 = vmatpush1.bf16.msra.mxu0 0
    %2523 = vmatprep.mubr.bf16.mxu0 0
    %2524 = vmatmul.mubr.bf16.gmra.mrb[0].mxu0 %v2489
    %v2525 = vpop.f32.mrb[0].mxu0
    %v2526 = vadd.f32 0.0, %v2525
    %v2527 = vpop.f32.mrb[0].mxu0
    %v2528 = vpop.f32.mrb[0].mxu0
    %v2529 = vpop.f32.mrb[0].mxu0
    %2530 = vdwg.mxu0
    %2531 = vmatprep.subr.bf16.mxu0 0
    %2532 = vmatpush1.bf16.msra.mxu0 %v361
    %2533 = vmatprep.subr.bf16.mxu0 0
    %2534 = vmatpush1.bf16.msra.mxu0 %v362
    %2535 = vmatprep.subr.bf16.mxu0 0
    %2536 = vmatpush1.bf16.msra.mxu0 0
    %2537 = vmatprep.subr.bf16.mxu0 0
    %2538 = vmatpush1.bf16.msra.mxu0 0
    %2539 = vmatprep.subr.bf16.mxu0 0
    %2540 = vmatpush1.bf16.msra.mxu0 0
    %2541 = vmatprep.subr.bf16.mxu0 0
    %2542 = vmatpush1.bf16.msra.mxu0 0
    %2543 = vmatprep.subr.bf16.mxu0 0
    %2544 = vmatpush1.bf16.msra.mxu0 0
    %2545 = vmatprep.subr.bf16.mxu0 0
    %2546 = vmatpush1.bf16.msra.mxu0 0
    %2547 = vmatprep.subr.bf16.mxu0 0
    %2548 = vmatpush1.bf16.msra.mxu0 0
    %2549 = vmatprep.subr.bf16.mxu0 0
    %2550 = vmatpush1.bf16.msra.mxu0 0
    %2551 = vmatprep.subr.bf16.mxu0 0
    %2552 = vmatpush1.bf16.msra.mxu0 0
    %2553 = vmatprep.subr.bf16.mxu0 0
    %2554 = vmatpush1.bf16.msra.mxu0 0
    %2555 = vmatprep.subr.bf16.mxu0 0
    %2556 = vmatpush1.bf16.msra.mxu0 0
    %2557 = vmatprep.subr.bf16.mxu0 0
    %2558 = vmatpush1.bf16.msra.mxu0 0
    %2559 = vmatprep.subr.bf16.mxu0 0
    %2560 = vmatpush1.bf16.msra.mxu0 0
    %2561 = vmatprep.subr.bf16.mxu0 0
    %2562 = vmatpush1.bf16.msra.mxu0 0
    %2563 = vmatprep.mubr.bf16.mxu0 0
    %2564 = vmatmul.mubr.bf16.gmra.mrb[0].mxu0 %v2489
    %v2565 = vpop.f32.mrb[0].mxu0
    %v2566 = vadd.f32 0.0, %v2565
    %v2567 = vpop.f32.mrb[0].mxu0
    %v2568 = vpop.f32.mrb[0].mxu0
    %v2569 = vpop.f32.mrb[0].mxu0
    %2570 = vdwg.mxu0
    %v2571 = vadd.f32 %v2344, %v2526
    %v2572 = vxor.u32 %v2571, 2147483648
    %v2573 = vmul.f32 %v2572, 1.442695
    %v2574 = vpow.pop %v2573
    %v2575 = vadd.f32 %v2574, 1.0
    %v2576 = vrcp.pop %v2575
    %v2577 = vmul.f32 1.0, %v2576
    %v2578 = vadd.f32 %v2414, %v2566
    %v2579 = vxor.u32 %v2578, 2147483648
    %v2580 = vmul.f32 %v2579, 1.442695
    %v2581 = vpow.pop %v2580
    %v2582 = vadd.f32 %v2581, 1.0
    %v2583 = vrcp.pop %v2582
    %v2584 = vmul.f32 1.0, %v2583
    %2585 = vmatprep.subr.bf16.mxu0 0
    %2586 = vmatpush1.bf16.msra.mxu0 %v427
    %2587 = vmatprep.subr.bf16.mxu0 0
    %2588 = vmatpush1.bf16.msra.mxu0 %v428
    %2589 = vmatprep.subr.bf16.mxu0 0
    %2590 = vmatpush1.bf16.msra.mxu0 0
    %2591 = vmatprep.subr.bf16.mxu0 0
    %2592 = vmatpush1.bf16.msra.mxu0 0
    %2593 = vmatprep.subr.bf16.mxu0 0
    %2594 = vmatpush1.bf16.msra.mxu0 0
    %2595 = vmatprep.subr.bf16.mxu0 0
    %2596 = vmatpush1.bf16.msra.mxu0 0
    %2597 = vmatprep.subr.bf16.mxu0 0
    %2598 = vmatpush1.bf16.msra.mxu0 0
    %2599 = vmatprep.subr.bf16.mxu0 0
    %2600 = vmatpush1.bf16.msra.mxu0 0
    %2601 = vmatprep.subr.bf16.mxu0 0
    %2602 = vmatpush1.bf16.msra.mxu0 0
    %2603 = vmatprep.subr.bf16.mxu0 0
    %2604 = vmatpush1.bf16.msra.mxu0 0
    %2605 = vmatprep.subr.bf16.mxu0 0
    %2606 = vmatpush1.bf16.msra.mxu0 0
    %2607 = vmatprep.subr.bf16.mxu0 0
    %2608 = vmatpush1.bf16.msra.mxu0 0
    %2609 = vmatprep.subr.bf16.mxu0 0
    %2610 = vmatpush1.bf16.msra.mxu0 0
    %2611 = vmatprep.subr.bf16.mxu0 0
    %2612 = vmatpush1.bf16.msra.mxu0 0
    %2613 = vmatprep.subr.bf16.mxu0 0
    %2614 = vmatpush1.bf16.msra.mxu0 0
    %2615 = vmatprep.subr.bf16.mxu0 0
    %2616 = vmatpush1.bf16.msra.mxu0 0
    %2617 = vmatprep.mubr.bf16.mxu0 0
    %2618 = vmatmul.mubr.bf16.gmra.mrb[0].mxu0 %v2489
    %v2619 = vpop.f32.mrb[0].mxu0
    %v2620 = vadd.f32 %v70, %v2619
    %v2621 = vpop.f32.mrb[0].mxu0
    %v2622 = vpop.f32.mrb[0].mxu0
    %v2623 = vpop.f32.mrb[0].mxu0
    %2624 = vdwg.mxu0
    %v2625 = vmul.f32 %v2577, %v2620
    %v2626 = vadd.f32 %v2484, %v2625
    %v2627 = vtanh.pop %v2626
    %v2628 = vsub.f32 %v2271, %v2627
    %v2629 = vmul.f32 %v2584, %v2628
    %v2630 = vadd.f32 %v2627, %v2629
    %s2631 = scalar_lea.vmem %s0, 14
    %v2632 = vld [vmem:[%s2631] sm:$0x3]
    %v2634 = vsel %vm73, %v2632, 0
    %2636 = vmatprep.subr.mxu0 0.0
    %2637 = vmatpush1.msra.mxu0 %v79
    %2638 = vmatprep.subr.mxu0 0.0
    %2639 = vmatpush1.msra.mxu0 0.0
    %2640 = vmatprep.subr.mxu0 0.0
    %2641 = vmatpush1.msra.mxu0 0.0
    %2642 = vmatprep.subr.mxu0 0.0
    %2643 = vmatpush1.msra.mxu0 0.0
    %2644 = vmatprep.subr.mxu0 0.0
    %2645 = vmatpush1.msra.mxu0 0.0
    %2646 = vmatprep.subr.mxu0 0.0
    %2647 = vmatpush1.msra.mxu0 0.0
    %2648 = vmatprep.subr.mxu0 0.0
    %2649 = vmatpush1.msra.mxu0 0.0
    %2650 = vmatprep.subr.mxu0 0.0
    %2651 = vmatpush1.msra.mxu0 0.0
    %2652 = vmatprep.subr.mxu0 0.0
    %2653 = vmatpush1.msra.mxu0 0.0
    %2654 = vmatprep.subr.mxu0 0.0
    %2655 = vmatpush1.msra.mxu0 0.0
    %2656 = vmatprep.subr.mxu0 0.0
    %2657 = vmatpush1.msra.mxu0 0.0
    %2658 = vmatprep.subr.mxu0 0.0
    %2659 = vmatpush1.msra.mxu0 0.0
    %2660 = vmatprep.subr.mxu0 0.0
    %2661 = vmatpush1.msra.mxu0 0.0
    %2662 = vmatprep.subr.mxu0 0.0
    %2663 = vmatpush1.msra.mxu0 0.0
    %2664 = vmatprep.subr.mxu0 0.0
    %2665 = vmatpush1.msra.mxu0 0.0
    %2666 = vmatprep.subr.mxu0 0.0
    %2667 = vmatpush1.msra.mxu0 0.0
    %2668 = vmatprep.subr.mxu0 0.0
    %2669 = vmatpush1.msra.mxu0 0.0
    %2670 = vmatprep.subr.mxu0 0.0
    %2671 = vmatpush1.msra.mxu0 0.0
    %2672 = vmatprep.subr.mxu0 0.0
    %2673 = vmatpush1.msra.mxu0 0.0
    %2674 = vmatprep.subr.mxu0 0.0
    %2675 = vmatpush1.msra.mxu0 0.0
    %2676 = vmatprep.subr.mxu0 0.0
    %2677 = vmatpush1.msra.mxu0 0.0
    %2678 = vmatprep.subr.mxu0 0.0
    %2679 = vmatpush1.msra.mxu0 0.0
    %2680 = vmatprep.subr.mxu0 0.0
    %2681 = vmatpush1.msra.mxu0 0.0
    %2682 = vmatprep.subr.mxu0 0.0
    %2683 = vmatpush1.msra.mxu0 0.0
    %2684 = vmatprep.subr.mxu0 0.0
    %2685 = vmatpush1.msra.mxu0 0.0
    %2686 = vmatprep.subr.mxu0 0.0
    %2687 = vmatpush1.msra.mxu0 0.0
    %2688 = vmatprep.subr.mxu0 0.0
    %2689 = vmatpush1.msra.mxu0 0.0
    %2690 = vmatprep.subr.mxu0 0.0
    %2691 = vmatpush1.msra.mxu0 0.0
    %2692 = vmatprep.subr.mxu0 0.0
    %2693 = vmatpush1.msra.mxu0 0.0
    %2694 = vmatprep.subr.mxu0 0.0
    %2695 = vmatpush1.msra.mxu0 0.0
    %2696 = vmatprep.subr.mxu0 0.0
    %2697 = vmatpush1.msra.mxu0 0.0
    %2698 = vmatprep.subr.mxu0 0.0
    %2699 = vmatpush1.msra.mxu0 0.0
    %2700 = vmatprep.mubr.f32.mxu0 0.0
    %2701 = vmatmul.mubr.f32.gmra.mrb[0].mxu0 %v2634
    %v2702 = vpop.f32.mrb[0].mxu0
    %v2703 = vadd.f32 %v46, %v2702
    %v2704 = vpop.f32.mrb[0].mxu0
    %2705 = vdwg.mxu0
    %2706 = vmatprep.subr.mxu0 0.0
    %2707 = vmatpush1.msra.mxu0 %v152
    %2708 = vmatprep.subr.mxu0 0.0
    %2709 = vmatpush1.msra.mxu0 0.0
    %2710 = vmatprep.subr.mxu0 0.0
    %2711 = vmatpush1.msra.mxu0 0.0
    %2712 = vmatprep.subr.mxu0 0.0
    %2713 = vmatpush1.msra.mxu0 0.0
    %2714 = vmatprep.subr.mxu0 0.0
    %2715 = vmatpush1.msra.mxu0 0.0
    %2716 = vmatprep.subr.mxu0 0.0
    %2717 = vmatpush1.msra.mxu0 0.0
    %2718 = vmatprep.subr.mxu0 0.0
    %2719 = vmatpush1.msra.mxu0 0.0
    %2720 = vmatprep.subr.mxu0 0.0
    %2721 = vmatpush1.msra.mxu0 0.0
    %2722 = vmatprep.subr.mxu0 0.0
    %2723 = vmatpush1.msra.mxu0 0.0
    %2724 = vmatprep.subr.mxu0 0.0
    %2725 = vmatpush1.msra.mxu0 0.0
    %2726 = vmatprep.subr.mxu0 0.0
    %2727 = vmatpush1.msra.mxu0 0.0
    %2728 = vmatprep.subr.mxu0 0.0
    %2729 = vmatpush1.msra.mxu0 0.0
    %2730 = vmatprep.subr.mxu0 0.0
    %2731 = vmatpush1.msra.mxu0 0.0
    %2732 = vmatprep.subr.mxu0 0.0
    %2733 = vmatpush1.msra.mxu0 0.0
    %2734 = vmatprep.subr.mxu0 0.0
    %2735 = vmatpush1.msra.mxu0 0.0
    %2736 = vmatprep.subr.mxu0 0.0
    %2737 = vmatpush1.msra.mxu0 0.0
    %2738 = vmatprep.subr.mxu0 0.0
    %2739 = vmatpush1.msra.mxu0 0.0
    %2740 = vmatprep.subr.mxu0 0.0
    %2741 = vmatpush1.msra.mxu0 0.0
    %2742 = vmatprep.subr.mxu0 0.0
    %2743 = vmatpush1.msra.mxu0 0.0
    %2744 = vmatprep.subr.mxu0 0.0
    %2745 = vmatpush1.msra.mxu0 0.0
    %2746 = vmatprep.subr.mxu0 0.0
    %2747 = vmatpush1.msra.mxu0 0.0
    %2748 = vmatprep.subr.mxu0 0.0
    %2749 = vmatpush1.msra.mxu0 0.0
    %2750 = vmatprep.subr.mxu0 0.0
    %2751 = vmatpush1.msra.mxu0 0.0
    %2752 = vmatprep.subr.mxu0 0.0
    %2753 = vmatpush1.msra.mxu0 0.0
    %2754 = vmatprep.subr.mxu0 0.0
    %2755 = vmatpush1.msra.mxu0 0.0
    %2756 = vmatprep.subr.mxu0 0.0
    %2757 = vmatpush1.msra.mxu0 0.0
    %2758 = vmatprep.subr.mxu0 0.0
    %2759 = vmatpush1.msra.mxu0 0.0
    %2760 = vmatprep.subr.mxu0 0.0
    %2761 = vmatpush1.msra.mxu0 0.0
    %2762 = vmatprep.subr.mxu0 0.0
    %2763 = vmatpush1.msra.mxu0 0.0
    %2764 = vmatprep.subr.mxu0 0.0
    %2765 = vmatpush1.msra.mxu0 0.0
    %2766 = vmatprep.subr.mxu0 0.0
    %2767 = vmatpush1.msra.mxu0 0.0
    %2768 = vmatprep.subr.mxu0 0.0
    %2769 = vmatpush1.msra.mxu0 0.0
    %2770 = vmatprep.mubr.f32.mxu0 0.0
    %2771 = vmatmul.mubr.f32.gmra.mrb[0].mxu0 %v2634
    %v2772 = vpop.f32.mrb[0].mxu0
    %v2773 = vadd.f32 %v54, %v2772
    %v2774 = vpop.f32.mrb[0].mxu0
    %2775 = vdwg.mxu0
    %2776 = vmatprep.subr.mxu0 0.0
    %2777 = vmatpush1.msra.mxu0 %v225
    %2778 = vmatprep.subr.mxu0 0.0
    %2779 = vmatpush1.msra.mxu0 0.0
    %2780 = vmatprep.subr.mxu0 0.0
    %2781 = vmatpush1.msra.mxu0 0.0
    %2782 = vmatprep.subr.mxu0 0.0
    %2783 = vmatpush1.msra.mxu0 0.0
    %2784 = vmatprep.subr.mxu0 0.0
    %2785 = vmatpush1.msra.mxu0 0.0
    %2786 = vmatprep.subr.mxu0 0.0
    %2787 = vmatpush1.msra.mxu0 0.0
    %2788 = vmatprep.subr.mxu0 0.0
    %2789 = vmatpush1.msra.mxu0 0.0
    %2790 = vmatprep.subr.mxu0 0.0
    %2791 = vmatpush1.msra.mxu0 0.0
    %2792 = vmatprep.subr.mxu0 0.0
    %2793 = vmatpush1.msra.mxu0 0.0
    %2794 = vmatprep.subr.mxu0 0.0
    %2795 = vmatpush1.msra.mxu0 0.0
    %2796 = vmatprep.subr.mxu0 0.0
    %2797 = vmatpush1.msra.mxu0 0.0
    %2798 = vmatprep.subr.mxu0 0.0
    %2799 = vmatpush1.msra.mxu0 0.0
    %2800 = vmatprep.subr.mxu0 0.0
    %2801 = vmatpush1.msra.mxu0 0.0
    %2802 = vmatprep.subr.mxu0 0.0
    %2803 = vmatpush1.msra.mxu0 0.0
    %2804 = vmatprep.subr.mxu0 0.0
    %2805 = vmatpush1.msra.mxu0 0.0
    %2806 = vmatprep.subr.mxu0 0.0
    %2807 = vmatpush1.msra.mxu0 0.0
    %2808 = vmatprep.subr.mxu0 0.0
    %2809 = vmatpush1.msra.mxu0 0.0
    %2810 = vmatprep.subr.mxu0 0.0
    %2811 = vmatpush1.msra.mxu0 0.0
    %2812 = vmatprep.subr.mxu0 0.0
    %2813 = vmatpush1.msra.mxu0 0.0
    %2814 = vmatprep.subr.mxu0 0.0
    %2815 = vmatpush1.msra.mxu0 0.0
    %2816 = vmatprep.subr.mxu0 0.0
    %2817 = vmatpush1.msra.mxu0 0.0
    %2818 = vmatprep.subr.mxu0 0.0
    %2819 = vmatpush1.msra.mxu0 0.0
    %2820 = vmatprep.subr.mxu0 0.0
    %2821 = vmatpush1.msra.mxu0 0.0
    %2822 = vmatprep.subr.mxu0 0.0
    %2823 = vmatpush1.msra.mxu0 0.0
    %2824 = vmatprep.subr.mxu0 0.0
    %2825 = vmatpush1.msra.mxu0 0.0
    %2826 = vmatprep.subr.mxu0 0.0
    %2827 = vmatpush1.msra.mxu0 0.0
    %2828 = vmatprep.subr.mxu0 0.0
    %2829 = vmatpush1.msra.mxu0 0.0
    %2830 = vmatprep.subr.mxu0 0.0
    %2831 = vmatpush1.msra.mxu0 0.0
    %2832 = vmatprep.subr.mxu0 0.0
    %2833 = vmatpush1.msra.mxu0 0.0
    %2834 = vmatprep.subr.mxu0 0.0
    %2835 = vmatpush1.msra.mxu0 0.0
    %2836 = vmatprep.subr.mxu0 0.0
    %2837 = vmatpush1.msra.mxu0 0.0
    %2838 = vmatprep.subr.mxu0 0.0
    %2839 = vmatpush1.msra.mxu0 0.0
    %2840 = vmatprep.mubr.f32.mxu0 0.0
    %2841 = vmatmul.mubr.f32.gmra.mrb[0].mxu0 %v2634
    %v2842 = vpop.f32.mrb[0].mxu0
    %v2843 = vadd.f32 %v62, %v2842
    %v2844 = vpop.f32.mrb[0].mxu0
    %2845 = vdwg.mxu0
    %v2846 = vpack.c.bf16 %v2630, %v2630
    %v2848 = vsel %vm309, %v2846, 0
    %2850 = vmatprep.subr.bf16.mxu0 0
    %2851 = vmatpush1.bf16.msra.mxu0 %v305
    %2852 = vmatprep.subr.bf16.mxu0 0
    %2853 = vmatpush1.bf16.msra.mxu0 %v306
    %2854 = vmatprep.subr.bf16.mxu0 0
    %2855 = vmatpush1.bf16.msra.mxu0 0
    %2856 = vmatprep.subr.bf16.mxu0 0
    %2857 = vmatpush1.bf16.msra.mxu0 0
    %2858 = vmatprep.subr.bf16.mxu0 0
    %2859 = vmatpush1.bf16.msra.mxu0 0
    %2860 = vmatprep.subr.bf16.mxu0 0
    %2861 = vmatpush1.bf16.msra.mxu0 0
    %2862 = vmatprep.subr.bf16.mxu0 0
    %2863 = vmatpush1.bf16.msra.mxu0 0
    %2864 = vmatprep.subr.bf16.mxu0 0
    %2865 = vmatpush1.bf16.msra.mxu0 0
    %2866 = vmatprep.subr.bf16.mxu0 0
    %2867 = vmatpush1.bf16.msra.mxu0 0
    %2868 = vmatprep.subr.bf16.mxu0 0
    %2869 = vmatpush1.bf16.msra.mxu0 0
    %2870 = vmatprep.subr.bf16.mxu0 0
    %2871 = vmatpush1.bf16.msra.mxu0 0
    %2872 = vmatprep.subr.bf16.mxu0 0
    %2873 = vmatpush1.bf16.msra.mxu0 0
    %2874 = vmatprep.subr.bf16.mxu0 0
    %2875 = vmatpush1.bf16.msra.mxu0 0
    %2876 = vmatprep.subr.bf16.mxu0 0
    %2877 = vmatpush1.bf16.msra.mxu0 0
    %2878 = vmatprep.subr.bf16.mxu0 0
    %2879 = vmatpush1.bf16.msra.mxu0 0
    %2880 = vmatprep.subr.bf16.mxu0 0
    %2881 = vmatpush1.bf16.msra.mxu0 0
    %2882 = vmatprep.mubr.bf16.mxu0 0
    %2883 = vmatmul.mubr.bf16.gmra.mrb[0].mxu0 %v2848
    %v2884 = vpop.f32.mrb[0].mxu0
    %v2885 = vadd.f32 0.0, %v2884
    %v2886 = vpop.f32.mrb[0].mxu0
    %v2887 = vpop.f32.mrb[0].mxu0
    %v2888 = vpop.f32.mrb[0].mxu0
    %2889 = vdwg.mxu0
    %2890 = vmatprep.subr.bf16.mxu0 0
    %2891 = vmatpush1.bf16.msra.mxu0 %v361
    %2892 = vmatprep.subr.bf16.mxu0 0
    %2893 = vmatpush1.bf16.msra.mxu0 %v362
    %2894 = vmatprep.subr.bf16.mxu0 0
    %2895 = vmatpush1.bf16.msra.mxu0 0
    %2896 = vmatprep.subr.bf16.mxu0 0
    %2897 = vmatpush1.bf16.msra.mxu0 0
    %2898 = vmatprep.subr.bf16.mxu0 0
    %2899 = vmatpush1.bf16.msra.mxu0 0
    %2900 = vmatprep.subr.bf16.mxu0 0
    %2901 = vmatpush1.bf16.msra.mxu0 0
    %2902 = vmatprep.subr.bf16.mxu0 0
    %2903 = vmatpush1.bf16.msra.mxu0 0
    %2904 = vmatprep.subr.bf16.mxu0 0
    %2905 = vmatpush1.bf16.msra.mxu0 0
    %2906 = vmatprep.subr.bf16.mxu0 0
    %2907 = vmatpush1.bf16.msra.mxu0 0
    %2908 = vmatprep.subr.bf16.mxu0 0
    %2909 = vmatpush1.bf16.msra.mxu0 0
    %2910 = vmatprep.subr.bf16.mxu0 0
    %2911 = vmatpush1.bf16.msra.mxu0 0
    %2912 = vmatprep.subr.bf16.mxu0 0
    %2913 = vmatpush1.bf16.msra.mxu0 0
    %2914 = vmatprep.subr.bf16.mxu0 0
    %2915 = vmatpush1.bf16.msra.mxu0 0
    %2916 = vmatprep.subr.bf16.mxu0 0
    %2917 = vmatpush1.bf16.msra.mxu0 0
    %2918 = vmatprep.subr.bf16.mxu0 0
    %2919 = vmatpush1.bf16.msra.mxu0 0
    %2920 = vmatprep.subr.bf16.mxu0 0
    %2921 = vmatpush1.bf16.msra.mxu0 0
    %2922 = vmatprep.mubr.bf16.mxu0 0
    %2923 = vmatmul.mubr.bf16.gmra.mrb[0].mxu0 %v2848
    %v2924 = vpop.f32.mrb[0].mxu0
    %v2925 = vadd.f32 0.0, %v2924
    %v2926 = vpop.f32.mrb[0].mxu0
    %v2927 = vpop.f32.mrb[0].mxu0
    %v2928 = vpop.f32.mrb[0].mxu0
    %2929 = vdwg.mxu0
    %v2930 = vadd.f32 %v2703, %v2885
    %v2931 = vxor.u32 %v2930, 2147483648
    %v2932 = vmul.f32 %v2931, 1.442695
    %v2933 = vpow.pop %v2932
    %v2934 = vadd.f32 %v2933, 1.0
    %v2935 = vrcp.pop %v2934
    %v2936 = vmul.f32 1.0, %v2935
    %v2937 = vadd.f32 %v2773, %v2925
    %v2938 = vxor.u32 %v2937, 2147483648
    %v2939 = vmul.f32 %v2938, 1.442695
    %v2940 = vpow.pop %v2939
    %v2941 = vadd.f32 %v2940, 1.0
    %v2942 = vrcp.pop %v2941
    %v2943 = vmul.f32 1.0, %v2942
    %2944 = vmatprep.subr.bf16.mxu0 0
    %2945 = vmatpush1.bf16.msra.mxu0 %v427
    %2946 = vmatprep.subr.bf16.mxu0 0
    %2947 = vmatpush1.bf16.msra.mxu0 %v428
    %2948 = vmatprep.subr.bf16.mxu0 0
    %2949 = vmatpush1.bf16.msra.mxu0 0
    %2950 = vmatprep.subr.bf16.mxu0 0
    %2951 = vmatpush1.bf16.msra.mxu0 0
    %2952 = vmatprep.subr.bf16.mxu0 0
    %2953 = vmatpush1.bf16.msra.mxu0 0
    %2954 = vmatprep.subr.bf16.mxu0 0
    %2955 = vmatpush1.bf16.msra.mxu0 0
    %2956 = vmatprep.subr.bf16.mxu0 0
    %2957 = vmatpush1.bf16.msra.mxu0 0
    %2958 = vmatprep.subr.bf16.mxu0 0
    %2959 = vmatpush1.bf16.msra.mxu0 0
    %2960 = vmatprep.subr.bf16.mxu0 0
    %2961 = vmatpush1.bf16.msra.mxu0 0
    %2962 = vmatprep.subr.bf16.mxu0 0
    %2963 = vmatpush1.bf16.msra.mxu0 0
    %2964 = vmatprep.subr.bf16.mxu0 0
    %2965 = vmatpush1.bf16.msra.mxu0 0
    %2966 = vmatprep.subr.bf16.mxu0 0
    %2967 = vmatpush1.bf16.msra.mxu0 0
    %2968 = vmatprep.subr.bf16.mxu0 0
    %2969 = vmatpush1.bf16.msra.mxu0 0
    %2970 = vmatprep.subr.bf16.mxu0 0
    %2971 = vmatpush1.bf16.msra.mxu0 0
    %2972 = vmatprep.subr.bf16.mxu0 0
    %2973 = vmatpush1.bf16.msra.mxu0 0
    %2974 = vmatprep.subr.bf16.mxu0 0
    %2975 = vmatpush1.bf16.msra.mxu0 0
    %2976 = vmatprep.mubr.bf16.mxu0 0
    %2977 = vmatmul.mubr.bf16.gmra.mrb[0].mxu0 %v2848
    %v2978 = vpop.f32.mrb[0].mxu0
    %v2979 = vadd.f32 %v70, %v2978
    %v2980 = vpop.f32.mrb[0].mxu0
    %v2981 = vpop.f32.mrb[0].mxu0
    %v2982 = vpop.f32.mrb[0].mxu0
    %2983 = vdwg.mxu0
    %v2984 = vmul.f32 %v2936, %v2979
    %v2985 = vadd.f32 %v2843, %v2984
    %v2986 = vtanh.pop %v2985
    %v2987 = vsub.f32 %v2630, %v2986
    %v2988 = vmul.f32 %v2943, %v2987
    %v2989 = vadd.f32 %v2986, %v2988
    %v2990 = vld [vmem:[%s4] sm:$0xff]
    %v2991 = vld [vmem:[%s4 + $0x8] sm:$0xff]
    %v2992 = vld [vmem:[%s4 + $0x10] sm:$0xff]
    %v2993 = vld [vmem:[%s4 + $0x18] sm:$0xff]
    %v2994 = vld [vmem:[%s4 + $0x20] sm:$0x1]
    %v2995 = vlaneseq
    %v2996 = vshrl.u32 %v2995, 7
    %v2997 = vsub.s32 0, %v2996
    %v2998 = vrot.slane %v2994, %v2997
    %v3000 = vsel %vm309, %v2989, 0
    %3002 = vmatprep.subr.mxu0 0.0
    %3003 = vmatpush1.msra.mxu0 %v2990
    %3004 = vmatprep.subr.mxu0 0.0
    %3005 = vmatpush1.msra.mxu0 %v2991
    %3006 = vmatprep.subr.mxu0 0.0
    %3007 = vmatpush1.msra.mxu0 %v2992
    %3008 = vmatprep.subr.mxu0 0.0
    %3009 = vmatpush1.msra.mxu0 %v2993
    %3010 = vmatprep.subr.mxu0 0.0
    %3011 = vmatpush1.msra.mxu0 0.0
    %3012 = vmatprep.subr.mxu0 0.0
    %3013 = vmatpush1.msra.mxu0 0.0
    %3014 = vmatprep.subr.mxu0 0.0
    %3015 = vmatpush1.msra.mxu0 0.0
    %3016 = vmatprep.subr.mxu0 0.0
    %3017 = vmatpush1.msra.mxu0 0.0
    %3018 = vmatprep.subr.mxu0 0.0
    %3019 = vmatpush1.msra.mxu0 0.0
    %3020 = vmatprep.subr.mxu0 0.0
    %3021 = vmatpush1.msra.mxu0 0.0
    %3022 = vmatprep.subr.mxu0 0.0
    %3023 = vmatpush1.msra.mxu0 0.0
    %3024 = vmatprep.subr.mxu0 0.0
    %3025 = vmatpush1.msra.mxu0 0.0
    %3026 = vmatprep.subr.mxu0 0.0
    %3027 = vmatpush1.msra.mxu0 0.0
    %3028 = vmatprep.subr.mxu0 0.0
    %3029 = vmatpush1.msra.mxu0 0.0
    %3030 = vmatprep.subr.mxu0 0.0
    %3031 = vmatpush1.msra.mxu0 0.0
    %3032 = vmatprep.subr.mxu0 0.0
    %3033 = vmatpush1.msra.mxu0 0.0
    %3034 = vmatprep.subr.mxu0 0.0
    %3035 = vmatpush1.msra.mxu0 0.0
    %3036 = vmatprep.subr.mxu0 0.0
    %3037 = vmatpush1.msra.mxu0 0.0
    %3038 = vmatprep.subr.mxu0 0.0
    %3039 = vmatpush1.msra.mxu0 0.0
    %3040 = vmatprep.subr.mxu0 0.0
    %3041 = vmatpush1.msra.mxu0 0.0
    %3042 = vmatprep.subr.mxu0 0.0
    %3043 = vmatpush1.msra.mxu0 0.0
    %3044 = vmatprep.subr.mxu0 0.0
    %3045 = vmatpush1.msra.mxu0 0.0
    %3046 = vmatprep.subr.mxu0 0.0
    %3047 = vmatpush1.msra.mxu0 0.0
    %3048 = vmatprep.subr.mxu0 0.0
    %3049 = vmatpush1.msra.mxu0 0.0
    %3050 = vmatprep.subr.mxu0 0.0
    %3051 = vmatpush1.msra.mxu0 0.0
    %3052 = vmatprep.subr.mxu0 0.0
    %3053 = vmatpush1.msra.mxu0 0.0
    %3054 = vmatprep.subr.mxu0 0.0
    %3055 = vmatpush1.msra.mxu0 0.0
    %3056 = vmatprep.subr.mxu0 0.0
    %3057 = vmatpush1.msra.mxu0 0.0
    %3058 = vmatprep.subr.mxu0 0.0
    %3059 = vmatpush1.msra.mxu0 0.0
    %3060 = vmatprep.subr.mxu0 0.0
    %3061 = vmatpush1.msra.mxu0 0.0
    %3062 = vmatprep.subr.mxu0 0.0
    %3063 = vmatpush1.msra.mxu0 0.0
    %3064 = vmatprep.subr.mxu0 0.0
    %3065 = vmatpush1.msra.mxu0 0.0
    %3066 = vmatprep.mubr.f32.mxu0 0.0
    %3067 = vmatmul.mubr.f32.gmra.mrb[0].mxu0 %v3000
    %v3068 = vpop.f32.mrb[0].mxu0
    %v3069 = vadd.f32 %v2998, %v3068
    %v3070 = vpop.f32.mrb[0].mxu0
    %3071 = vdwg.mxu0
    %vm3072 = vcmask 17408
    %3073 = vst.msk [vmem:[#allocation2] sm:$0x3] %vm3072, %v3069
    // Predicated region
    $region22: #{gru_model_forward.1} parent=1 // pred_check
      _
    $region23: #{gru_model_forward.1} parent=1 // pred_check_branch
      %3075 = sbr.rel (0) target = $region25
    $region24: #{gru_model_forward.1} parent=1 // pred_region
      %s3077 = ssub.s32 32, 32
      %3078 = vsyncadd [#allocation3], %s3077
      %s3080 = sshll.u32 [#allocation2], 4
      %s3081 = int_to_ptr.vmem [resolvable:$true] %s3080
      %3083 = dma.vmem_to_hbm [thread:$0]  %s3081, 32, %s5, [#allocation3]
    $region25: #{gru_model_forward.1} parent=1 // pred_fallthru
      _
    // Predicated region
    $region26: #{gru_model_forward.1} parent=1 // pred_check
      _
    $region27: #{gru_model_forward.1} parent=1 // pred_check_branch
      %3085 = sbr.rel (0) target = $region29
    $region28: #{gru_model_forward.1} parent=1 // pred_region
      %3086 = dma.done [#allocation3], 32
    $region29: #{gru_model_forward.1} parent=1 // pred_fallthru
      _
    %3087 = vsyncpa [#allocation3], 1

</llo_original>
